<compile_context>
chip_gen: v7x
topology: tpu7x:2x2x1
jax: 0.10.0
libtpu: 0.0.40
codegen_flags: <defaults>
</compile_context>

<pallas_src>
import functools

import jax
import jax.numpy as jnp
from jax.experimental import pallas as pl
from jax.experimental.pallas import tpu as pltpu


def _shift_lanes(arr, d):
    """Return s with s[:, t] = arr[:, t + d], zero-filled where t + d is out of range."""
    if d == 0:
        return arr
    tp = arr.shape[-1]
    rolled = pltpu.roll(arr, shift=(-d) % tp, axis=1)          # rolled[:, t] = arr[:, (t + d) % tp]
    t_idx = jax.lax.broadcasted_iota(jnp.int32, arr.shape, 1)
    ok = (t_idx + d >= 0) & (t_idx + d < tp)
    return jnp.where(ok, rolled, jnp.zeros_like(rolled))


def _conv_block_kernel(x_ref, m_ref, w1_ref, b1_ref, w2_ref, b2_ref, o_ref, *, ksize):
    pad = ksize // 2
    x = x_ref[0].astype(jnp.float32)            # (C, Tp)
    mask = m_ref[0].astype(jnp.float32)         # (1, Tp)

    width = w1_ref.shape[1]
    n_out = w2_ref.shape[1]
    tp = x.shape[-1]

    # conv1 (+ bias, mask, ReLU) — f32 accumulation on the MXU.
    acc1 = jnp.zeros((width, tp), jnp.float32)
    for k in range(ksize):
        xk = _shift_lanes(x, k - pad)
        acc1 = acc1 + jnp.dot(w1_ref[k], xk,
                              preferred_element_type=jnp.float32,
                              precision=jax.lax.Precision.HIGHEST)
    h = jnp.maximum((acc1 + b1_ref[...]) * mask, 0.0)          # (width, Tp)

    # conv2 (+ bias, mask).
    acc2 = jnp.zeros((n_out, tp), jnp.float32)
    for k in range(ksize):
        hk = _shift_lanes(h, k - pad)
        acc2 = acc2 + jnp.dot(w2_ref[k], hk,
                              preferred_element_type=jnp.float32,
                              precision=jax.lax.Precision.HIGHEST)
    out = (acc2 + b2_ref[...]) * mask

    # Residual with the raw (unmasked) input, then final ReLU — matches PyTorch ConvBlock.
    out = jnp.maximum(out + x, 0.0)
    o_ref[0] = out.astype(o_ref.dtype)


def conv_block_forward(x, mask, params, *, kernel_size=3, n_ds_stride=1):
    """JAX/Pallas mirror of ConvBlock.forward (n_ds_stride == 1 path)."""
    assert n_ds_stride == 1, "only the stride-1 (no downsample) path is implemented"
    # TODO(synk): implement n_ds_stride > 1 (strided convs, 1x1 downsample conv,
    # nearest-neighbor mask interpolation).

    w1, b1, w2, b2 = params["w1"], params["b1"], params["w2"], params["b2"]
    B, C, T = x.shape
    width, _, K = w1.shape
    n_out = w2.shape[0]
    assert K == kernel_size and K % 2 == 1 and K > 1
    assert w1.shape == (width, C, K) and w2.shape == (n_out, width, K)
    assert n_out == C, "residual add without downsample requires n_out == n_embd"

    # Pad T up to a lane-dense multiple of 128 (unmasked stores). Padded tail has
    # x == 0 and mask == 0, so results on [0, T) are identical; slice back below.
    LANE = 128
    Tp = ((T + LANE - 1) // LANE) * LANE
    pad_t = Tp - T
    xp = jnp.pad(x, ((0, 0), (0, 0), (0, pad_t)))
    mp = jnp.pad(mask.astype(x.dtype), ((0, 0), (0, 0), (0, pad_t)))

    # Kernel tap as the leading axis -> cheap static indexing inside the kernel.
    w1k = jnp.transpose(w1, (2, 0, 1)).astype(jnp.float32)     # (K, width, C)
    w2k = jnp.transpose(w2, (2, 0, 1)).astype(jnp.float32)     # (K, n_out, width)
    b1c = b1.reshape(width, 1).astype(jnp.float32)
    b2c = b2.reshape(n_out, 1).astype(jnp.float32)

    kernel = functools.partial(_conv_block_kernel, ksize=K)

    out = pl.pallas_call(
        kernel,
        out_shape=jax.ShapeDtypeStruct((B, n_out, Tp), x.dtype),
        grid=(B,),
        in_specs=[
            pl.BlockSpec((1, C, Tp), lambda b: (b, 0, 0)),        # x (per sample)
            pl.BlockSpec((1, 1, Tp), lambda b: (b, 0, 0)),        # mask (per sample)
            pl.BlockSpec((K, width, C), lambda b: (0, 0, 0)),     # conv1 weights (resident)
            pl.BlockSpec((width, 1), lambda b: (0, 0)),           # conv1 bias
            pl.BlockSpec((K, n_out, width), lambda b: (0, 0, 0)), # conv2 weights (resident)
            pl.BlockSpec((n_out, 1), lambda b: (0, 0)),           # conv2 bias
        ],
        out_specs=pl.BlockSpec((1, n_out, Tp), lambda b: (b, 0, 0)),
        compiler_params=pltpu.CompilerParams(
            dimension_semantics=("parallel",),
        ),
    )(xp, mp, w1k, b1c, w2k, b2c)

    return out[:, :, :T], mask


def conv_block_reference(x, mask, params, kernel_size=3):
    """Pure-JAX reference with the same math as the PyTorch ConvBlock."""
    w1, b1, w2, b2 = params["w1"], params["b1"], params["w2"], params["b2"]
    pad = kernel_size // 2
    mf = mask.astype(jnp.float32)

    def conv1d(inp, w, b):
        out = jax.lax.conv_general_dilated(
            inp.astype(jnp.float32), w.astype(jnp.float32),
            window_strides=(1,), padding=[(pad, pad)],
            dimension_numbers=("NCH", "OIH", "NCH"),
            precision=jax.lax.Precision.HIGHEST)
        return out + b.astype(jnp.float32)[None, :, None]

    out = jnp.maximum(conv1d(x, w1, b1) * mf, 0.0)
    out = conv1d(out, w2, b2) * mf
    out = jnp.maximum(out + x.astype(jnp.float32), 0.0)
    return out.astype(x.dtype), mask


if __name__ == "__main__":
    key = jax.random.PRNGKey(0)
    k1, k2, k3, k4, k5 = jax.random.split(key, 5)

    B, C, T = 2, 4, 16          # n_embd = 4, seq = 16
    K = 3
    expansion = 2
    width = C * expansion       # 8
    n_out = C                   # 4

    x = jax.random.normal(k1, (B, C, T), dtype=jnp.float32)

    # Per-sample valid lengths -> boolean mask (B, 1, T).
    lengths = jnp.array([T, T - 5], dtype=jnp.int32)
    t_idx = jnp.arange(T)[None, None, :]
    mask = t_idx < lengths[:, None, None]

    params = {
        "w1": 0.3 * jax.random.normal(k2, (width, C, K), dtype=jnp.float32),
        "b1": 0.1 * jax.random.normal(k3, (width,), dtype=jnp.float32),
        "w2": 0.3 * jax.random.normal(k4, (n_out, width, K), dtype=jnp.float32),
        "b2": 0.1 * jax.random.normal(k5, (n_out,), dtype=jnp.float32),
    }

    out, out_mask = conv_block_forward(x, mask, params, kernel_size=K)
    out = jax.block_until_ready(out)

    ref, ref_mask = conv_block_reference(x, mask, params, kernel_size=K)
    assert out.shape == (B, n_out, T)
    max_err = jnp.max(jnp.abs(out - ref))
    assert jnp.allclose(out, ref, atol=1e-2, rtol=1e-2), f"mismatch vs reference, max err {max_err}"
    assert jnp.array_equal(out_mask, ref_mask), "mask passthrough mismatch"

    print("KERNEL_OK")
</pallas_src>

<mosaic_0001>
module attributes {stable_mosaic.version = 11 : i64} {
  func.func @_conv_block_kernel(%arg0: i32, %arg1: memref<1x4x128xf32, #tpu.memory_space<vmem>>, %arg2: memref<1x1x128xf32, #tpu.memory_space<vmem>>, %arg3: memref<3x8x4xf32, #tpu.memory_space<vmem>>, %arg4: memref<8x1xf32, #tpu.memory_space<vmem>>, %arg5: memref<3x4x8xf32, #tpu.memory_space<vmem>>, %arg6: memref<4x1xf32, #tpu.memory_space<vmem>>, %arg7: memref<1x4x128xf32, #tpu.memory_space<vmem>>) attributes {dimension_semantics = [#tpu.dimension_semantics<parallel>], iteration_bounds = array<i64: 2>, scalar_prefetch = 0 : i64, scratch_operands = 0 : i64, tpu.core_type = #tpu.core_type<tc>, window_params = [{transform_indices = @transform_0, window_bounds = array<i64: 1, 4, 128>}, {transform_indices = @transform_1, window_bounds = array<i64: 1, 1, 128>}, {pipeline_mode = #tpu.pipeline_mode<synchronous>, transform_indices = @transform_2, window_bounds = array<i64: 3, 8, 4>}, {pipeline_mode = #tpu.pipeline_mode<synchronous>, transform_indices = @transform_3, window_bounds = array<i64: 8, 1>}, {pipeline_mode = #tpu.pipeline_mode<synchronous>, transform_indices = @transform_4, window_bounds = array<i64: 3, 4, 8>}, {pipeline_mode = #tpu.pipeline_mode<synchronous>, transform_indices = @transform_5, window_bounds = array<i64: 4, 1>}, {transform_indices = @transform_6, window_bounds = array<i64: 1, 4, 128>}]} {
    %c0 = arith.constant 0 : index
    %c0_0 = arith.constant 0 : index
    %c0_1 = arith.constant 0 : index
    %0 = vector.load %arg1[%c0, %c0_0, %c0_1] : memref<1x4x128xf32, #tpu.memory_space<vmem>>, vector<1x4x128xf32>
    %1 = vector.shape_cast %0 : vector<1x4x128xf32> to vector<4x128xf32>
    %c0_2 = arith.constant 0 : index
    %c0_3 = arith.constant 0 : index
    %c0_4 = arith.constant 0 : index
    %2 = vector.load %arg2[%c0_2, %c0_3, %c0_4] : memref<1x1x128xf32, #tpu.memory_space<vmem>>, vector<1x1x128xf32>
    %3 = vector.shape_cast %2 : vector<1x1x128xf32> to vector<1x128xf32>
    %cst = arith.constant 0.000000e+00 : f32
    %4 = vector.broadcast %cst : f32 to vector<8x128xf32>
    %c1_i32 = arith.constant 1 : i32
    %5 = tpu.dynamic_rotate %1 by %c1_i32 dim 1 : vector<4x128xf32>, i32 -> vector<4x128xf32>
    %6 = tpu.iota {dimensions = array<i32: 1>} : vector<4x128xi32>
    %c-1_i32 = arith.constant -1 : i32
    %7 = vector.broadcast %c-1_i32 : i32 to vector<4x128xi32>
    %8 = arith.addi %6, %7 : vector<4x128xi32>
    %c0_i32 = arith.constant 0 : i32
    %9 = vector.broadcast %c0_i32 : i32 to vector<4x128xi32>
    %10 = arith.cmpi sge, %8, %9 : vector<4x128xi32>
    %c-1_i32_5 = arith.constant -1 : i32
    %11 = vector.broadcast %c-1_i32_5 : i32 to vector<4x128xi32>
    %12 = arith.addi %6, %11 : vector<4x128xi32>
    %c128_i32 = arith.constant 128 : i32
    %13 = vector.broadcast %c128_i32 : i32 to vector<4x128xi32>
    %14 = arith.cmpi slt, %12, %13 : vector<4x128xi32>
    %15 = arith.andi %10, %14 : vector<4x128xi1>
    %cst_6 = arith.constant 0.000000e+00 : f32
    %16 = vector.broadcast %cst_6 : f32 to vector<4x128xf32>
    %17 = arith.select %15, %5, %16 : vector<4x128xi1>, vector<4x128xf32>
    %c0_7 = arith.constant 0 : index
    %c0_8 = arith.constant 0 : index
    %c0_9 = arith.constant 0 : index
    %18 = vector.load %arg3[%c0_7, %c0_8, %c0_9] : memref<3x8x4xf32, #tpu.memory_space<vmem>>, vector<1x8x4xf32>
    %19 = vector.shape_cast %18 : vector<1x8x4xf32> to vector<8x4xf32>
    %cst_10 = arith.constant dense<0.000000e+00> : vector<8x128xf32>
    %20 = tpu.matmul %19, %17, %cst_10 {dimension_numbers = #tpu.dot_dimension_numbers<[1], [0], [0], [1], [0, 0, 1, 1], [], []>, precision = #tpu.contract_precision<fp32>} : vector<8x4xf32>, vector<4x128xf32>, vector<8x128xf32> -> vector<8x128xf32>
    %21 = arith.addf %4, %20 : vector<8x128xf32>
    %c1 = arith.constant 1 : index
    %c0_11 = arith.constant 0 : index
    %c0_12 = arith.constant 0 : index
    %22 = vector.load %arg3[%c1, %c0_11, %c0_12] : memref<3x8x4xf32, #tpu.memory_space<vmem>>, vector<1x8x4xf32>
    %23 = vector.shape_cast %22 : vector<1x8x4xf32> to vector<8x4xf32>
    %cst_13 = arith.constant dense<0.000000e+00> : vector<8x128xf32>
    %24 = tpu.matmul %23, %1, %cst_13 {dimension_numbers = #tpu.dot_dimension_numbers<[1], [0], [0], [1], [0, 0, 1, 1], [], []>, precision = #tpu.contract_precision<fp32>} : vector<8x4xf32>, vector<4x128xf32>, vector<8x128xf32> -> vector<8x128xf32>
    %25 = arith.addf %21, %24 : vector<8x128xf32>
    %c127_i32 = arith.constant 127 : i32
    %26 = tpu.dynamic_rotate %1 by %c127_i32 dim 1 : vector<4x128xf32>, i32 -> vector<4x128xf32>
    %27 = tpu.iota {dimensions = array<i32: 1>} : vector<4x128xi32>
    %c1_i32_14 = arith.constant 1 : i32
    %28 = vector.broadcast %c1_i32_14 : i32 to vector<4x128xi32>
    %29 = arith.addi %27, %28 : vector<4x128xi32>
    %c0_i32_15 = arith.constant 0 : i32
    %30 = vector.broadcast %c0_i32_15 : i32 to vector<4x128xi32>
    %31 = arith.cmpi sge, %29, %30 : vector<4x128xi32>
    %c1_i32_16 = arith.constant 1 : i32
    %32 = vector.broadcast %c1_i32_16 : i32 to vector<4x128xi32>
    %33 = arith.addi %27, %32 : vector<4x128xi32>
    %c128_i32_17 = arith.constant 128 : i32
    %34 = vector.broadcast %c128_i32_17 : i32 to vector<4x128xi32>
    %35 = arith.cmpi slt, %33, %34 : vector<4x128xi32>
    %36 = arith.andi %31, %35 : vector<4x128xi1>
    %cst_18 = arith.constant 0.000000e+00 : f32
    %37 = vector.broadcast %cst_18 : f32 to vector<4x128xf32>
    %38 = arith.select %36, %26, %37 : vector<4x128xi1>, vector<4x128xf32>
    %c2 = arith.constant 2 : index
    %c0_19 = arith.constant 0 : index
    %c0_20 = arith.constant 0 : index
    %39 = vector.load %arg3[%c2, %c0_19, %c0_20] : memref<3x8x4xf32, #tpu.memory_space<vmem>>, vector<1x8x4xf32>
    %40 = vector.shape_cast %39 : vector<1x8x4xf32> to vector<8x4xf32>
    %cst_21 = arith.constant dense<0.000000e+00> : vector<8x128xf32>
    %41 = tpu.matmul %40, %38, %cst_21 {dimension_numbers = #tpu.dot_dimension_numbers<[1], [0], [0], [1], [0, 0, 1, 1], [], []>, precision = #tpu.contract_precision<fp32>} : vector<8x4xf32>, vector<4x128xf32>, vector<8x128xf32> -> vector<8x128xf32>
    %42 = arith.addf %25, %41 : vector<8x128xf32>
    %c0_22 = arith.constant 0 : index
    %c0_23 = arith.constant 0 : index
    %43 = vector.load %arg4[%c0_22, %c0_23] : memref<8x1xf32, #tpu.memory_space<vmem>>, vector<8x1xf32>
    %44 = vector.broadcast %43 : vector<8x1xf32> to vector<8x128xf32>
    %45 = arith.addf %42, %44 : vector<8x128xf32>
    %46 = vector.broadcast %3 : vector<1x128xf32> to vector<8x128xf32>
    %47 = arith.mulf %45, %46 : vector<8x128xf32>
    %cst_24 = arith.constant 0.000000e+00 : f32
    %48 = vector.broadcast %cst_24 : f32 to vector<8x128xf32>
    %49 = arith.maximumf %47, %48 : vector<8x128xf32>
    %cst_25 = arith.constant 0.000000e+00 : f32
    %50 = vector.broadcast %cst_25 : f32 to vector<4x128xf32>
    %c1_i32_26 = arith.constant 1 : i32
    %51 = tpu.dynamic_rotate %49 by %c1_i32_26 dim 1 : vector<8x128xf32>, i32 -> vector<8x128xf32>
    %52 = tpu.iota {dimensions = array<i32: 1>} : vector<8x128xi32>
    %c-1_i32_27 = arith.constant -1 : i32
    %53 = vector.broadcast %c-1_i32_27 : i32 to vector<8x128xi32>
    %54 = arith.addi %52, %53 : vector<8x128xi32>
    %c0_i32_28 = arith.constant 0 : i32
    %55 = vector.broadcast %c0_i32_28 : i32 to vector<8x128xi32>
    %56 = arith.cmpi sge, %54, %55 : vector<8x128xi32>
    %c-1_i32_29 = arith.constant -1 : i32
    %57 = vector.broadcast %c-1_i32_29 : i32 to vector<8x128xi32>
    %58 = arith.addi %52, %57 : vector<8x128xi32>
    %c128_i32_30 = arith.constant 128 : i32
    %59 = vector.broadcast %c128_i32_30 : i32 to vector<8x128xi32>
    %60 = arith.cmpi slt, %58, %59 : vector<8x128xi32>
    %61 = arith.andi %56, %60 : vector<8x128xi1>
    %cst_31 = arith.constant 0.000000e+00 : f32
    %62 = vector.broadcast %cst_31 : f32 to vector<8x128xf32>
    %63 = arith.select %61, %51, %62 : vector<8x128xi1>, vector<8x128xf32>
    %c0_32 = arith.constant 0 : index
    %c0_33 = arith.constant 0 : index
    %c0_34 = arith.constant 0 : index
    %64 = vector.load %arg5[%c0_32, %c0_33, %c0_34] : memref<3x4x8xf32, #tpu.memory_space<vmem>>, vector<1x4x8xf32>
    %65 = vector.shape_cast %64 : vector<1x4x8xf32> to vector<4x8xf32>
    %cst_35 = arith.constant dense<0.000000e+00> : vector<4x128xf32>
    %66 = tpu.matmul %65, %63, %cst_35 {dimension_numbers = #tpu.dot_dimension_numbers<[1], [0], [0], [1], [0, 0, 1, 1], [], []>, precision = #tpu.contract_precision<fp32>} : vector<4x8xf32>, vector<8x128xf32>, vector<4x128xf32> -> vector<4x128xf32>
    %67 = arith.addf %50, %66 : vector<4x128xf32>
    %c1_36 = arith.constant 1 : index
    %c0_37 = arith.constant 0 : index
    %c0_38 = arith.constant 0 : index
    %68 = vector.load %arg5[%c1_36, %c0_37, %c0_38] : memref<3x4x8xf32, #tpu.memory_space<vmem>>, vector<1x4x8xf32>
    %69 = vector.shape_cast %68 : vector<1x4x8xf32> to vector<4x8xf32>
    %cst_39 = arith.constant dense<0.000000e+00> : vector<4x128xf32>
    %70 = tpu.matmul %69, %49, %cst_39 {dimension_numbers = #tpu.dot_dimension_numbers<[1], [0], [0], [1], [0, 0, 1, 1], [], []>, precision = #tpu.contract_precision<fp32>} : vector<4x8xf32>, vector<8x128xf32>, vector<4x128xf32> -> vector<4x128xf32>
    %71 = arith.addf %67, %70 : vector<4x128xf32>
    %c127_i32_40 = arith.constant 127 : i32
    %72 = tpu.dynamic_rotate %49 by %c127_i32_40 dim 1 : vector<8x128xf32>, i32 -> vector<8x128xf32>
    %73 = tpu.iota {dimensions = array<i32: 1>} : vector<8x128xi32>
    %c1_i32_41 = arith.constant 1 : i32
    %74 = vector.broadcast %c1_i32_41 : i32 to vector<8x128xi32>
    %75 = arith.addi %73, %74 : vector<8x128xi32>
    %c0_i32_42 = arith.constant 0 : i32
    %76 = vector.broadcast %c0_i32_42 : i32 to vector<8x128xi32>
    %77 = arith.cmpi sge, %75, %76 : vector<8x128xi32>
    %c1_i32_43 = arith.constant 1 : i32
    %78 = vector.broadcast %c1_i32_43 : i32 to vector<8x128xi32>
    %79 = arith.addi %73, %78 : vector<8x128xi32>
    %c128_i32_44 = arith.constant 128 : i32
    %80 = vector.broadcast %c128_i32_44 : i32 to vector<8x128xi32>
    %81 = arith.cmpi slt, %79, %80 : vector<8x128xi32>
    %82 = arith.andi %77, %81 : vector<8x128xi1>
    %cst_45 = arith.constant 0.000000e+00 : f32
    %83 = vector.broadcast %cst_45 : f32 to vector<8x128xf32>
    %84 = arith.select %82, %72, %83 : vector<8x128xi1>, vector<8x128xf32>
    %c2_46 = arith.constant 2 : index
    %c0_47 = arith.constant 0 : index
    %c0_48 = arith.constant 0 : index
    %85 = vector.load %arg5[%c2_46, %c0_47, %c0_48] : memref<3x4x8xf32, #tpu.memory_space<vmem>>, vector<1x4x8xf32>
    %86 = vector.shape_cast %85 : vector<1x4x8xf32> to vector<4x8xf32>
    %cst_49 = arith.constant dense<0.000000e+00> : vector<4x128xf32>
    %87 = tpu.matmul %86, %84, %cst_49 {dimension_numbers = #tpu.dot_dimension_numbers<[1], [0], [0], [1], [0, 0, 1, 1], [], []>, precision = #tpu.contract_precision<fp32>} : vector<4x8xf32>, vector<8x128xf32>, vector<4x128xf32> -> vector<4x128xf32>
    %88 = arith.addf %71, %87 : vector<4x128xf32>
    %c0_50 = arith.constant 0 : index
    %c0_51 = arith.constant 0 : index
    %89 = vector.load %arg6[%c0_50, %c0_51] : memref<4x1xf32, #tpu.memory_space<vmem>>, vector<4x1xf32>
    %90 = vector.broadcast %89 : vector<4x1xf32> to vector<4x128xf32>
    %91 = arith.addf %88, %90 : vector<4x128xf32>
    %92 = vector.broadcast %3 : vector<1x128xf32> to vector<4x128xf32>
    %93 = arith.mulf %91, %92 : vector<4x128xf32>
    %94 = arith.addf %93, %1 : vector<4x128xf32>
    %cst_52 = arith.constant 0.000000e+00 : f32
    %95 = vector.broadcast %cst_52 : f32 to vector<4x128xf32>
    %96 = arith.maximumf %94, %95 : vector<4x128xf32>
    %c0_53 = arith.constant 0 : index
    %c0_54 = arith.constant 0 : index
    %c0_55 = arith.constant 0 : index
    %97 = vector.load %arg7[%c0_53, %c0_54, %c0_55] : memref<1x4x128xf32, #tpu.memory_space<vmem>>, vector<1x4x128xf32>
    %98 = vector.shape_cast %97 : vector<1x4x128xf32> to vector<4x128xf32>
    %99 = vector.shape_cast %96 : vector<4x128xf32> to vector<1x4x128xf32>
    tpu.vector_store %arg7[%c0_53, %c0_54, %c0_55], %99 {strides = array<i32>} : memref<1x4x128xf32, #tpu.memory_space<vmem>>, vector<1x4x128xf32>,
    return
  }
  func.func @transform_0(%arg0: i32) -> (i32, i32, i32) {
    %c0_i32 = arith.constant 0 : i32
    %c0_i32_0 = arith.constant 0 : i32
    %c0_i32_1 = arith.constant 0 : i32
    return %arg0, %c0_i32, %c0_i32_0 : i32, i32, i32
  }
  func.func @transform_1(%arg0: i32) -> (i32, i32, i32) {
    %c0_i32 = arith.constant 0 : i32
    %c0_i32_0 = arith.constant 0 : i32
    %c0_i32_1 = arith.constant 0 : i32
    return %arg0, %c0_i32, %c0_i32_0 : i32, i32, i32
  }
  func.func @transform_2(%arg0: i32) -> (i32, i32, i32) {
    %c0_i32 = arith.constant 0 : i32
    %c0_i32_0 = arith.constant 0 : i32
    %c0_i32_1 = arith.constant 0 : i32
    %c0_i32_2 = arith.constant 0 : i32
    return %c0_i32, %c0_i32_0, %c0_i32_1 : i32, i32, i32
  }
  func.func @transform_3(%arg0: i32) -> (i32, i32) {
    %c0_i32 = arith.constant 0 : i32
    %c0_i32_0 = arith.constant 0 : i32
    %c0_i32_1 = arith.constant 0 : i32
    return %c0_i32, %c0_i32_0 : i32, i32
  }
  func.func @transform_4(%arg0: i32) -> (i32, i32, i32) {
    %c0_i32 = arith.constant 0 : i32
    %c0_i32_0 = arith.constant 0 : i32
    %c0_i32_1 = arith.constant 0 : i32
    %c0_i32_2 = arith.constant 0 : i32
    return %c0_i32, %c0_i32_0, %c0_i32_1 : i32, i32, i32
  }
  func.func @transform_5(%arg0: i32) -> (i32, i32) {
    %c0_i32 = arith.constant 0 : i32
    %c0_i32_0 = arith.constant 0 : i32
    %c0_i32_1 = arith.constant 0 : i32
    return %c0_i32, %c0_i32_0 : i32, i32
  }
  func.func @transform_6(%arg0: i32) -> (i32, i32, i32) {
    %c0_i32 = arith.constant 0 : i32
    %c0_i32_0 = arith.constant 0 : i32
    %c0_i32_1 = arith.constant 0 : i32
    return %arg0, %c0_i32, %c0_i32_0 : i32, i32, i32
  }
}

</mosaic_0001>

<llo_original>
// kernel: tpu_custom_call.1
$region0: #{tpu_custom_call.1}
  #allocation0 [shape = 'u32[]', space=smem, size = 0x4, offset = 0x4, fixed_abs, tag = 'smem constant byte address 0x4 - core index']
  #allocation1 [shape = 'u32[144,128]{1,0:T(1,128)}', space=vmem, size = 0x12000, scoped, tag = 'internal scratch']
  %s0 = inlined_call_operand.vmem [shape: f32[2,4,128], index: 0, kind: input, shape index: {}]
  %s1 = inlined_call_operand.vmem [shape: f32[2,1,128], index: 1, kind: input, shape index: {}]
  %s2 = inlined_call_operand.vmem [shape: f32[3,8,4], index: 2, kind: input, shape index: {}]
  %s3 = inlined_call_operand.vmem [shape: f32[8,1], index: 3, kind: input, shape index: {}]
  %s4 = inlined_call_operand.vmem [shape: f32[3,4,8], index: 4, kind: input, shape index: {}]
  %s5 = inlined_call_operand.vmem [shape: f32[4,1], index: 5, kind: input, shape index: {}]
  %s6 = inlined_call_operand.hbm [shape: f32[2,4,128], index: 6, kind: output, shape index: {}]
  %s7 = sld [smem:[#allocation0]]
  $region57: #{tpu_custom_call.1} parent=0
    _
  %s9 = ssub.s32 1, %s7
  %s10 = scalar_select 0, %s9, %s7
  $region1: #{tpu_custom_call.1} parent=0
    #allocation2 [shape = 'u8[4096]{0}', space=vmem, size = 0x1000, scoped, tag = 'output window, operand 0']
    #allocation3 [shape = 's32[2]{0}', space=sflag, size = 0x8, scoped, tag = 'scoped memory for tpu_custom_call.1']
    %11 = vsyncpa [#allocation3], 0
    %s12 = scalar_lea.sflag [#allocation3], 1
    %13 = vsyncpa %s12, 0
    loop: start=0, step=1, limit=4
    $region2: #{tpu_custom_call.1} parent=1 // loop_pre_header
      _
    $region3: #{tpu_custom_call.1} parent=1 // loop_header
      %s15 = sphi 0, %s19
      %p16 = scmp.ge.s32.totalorder %s15, 4
      %s25 = sphi 0, %s27
      %s28 = sphi 0, %s25
      %s29 = sphi 0, %s28
      %s45 = sphi 0, %s29
      %s51 = sphi 0, %s53
      %s54 = sphi 0, %s51
      %s55 = sphi 0, %s54
      %s71 = sphi 0, %s55
      %s75 = sphi 0, %s75
      %s77 = sphi 0, %s75
      %s78 = sphi 0, %s77
      %s92 = sphi 0, %s78
      %s96 = sphi 0, %s96
      %s98 = sphi 0, %s96
      %s99 = sphi 0, %s98
      %s113 = sphi 0, %s99
      %s117 = sphi 0, %s117
      %s119 = sphi 0, %s117
      %s120 = sphi 0, %s119
      %s134 = sphi 0, %s120
      %s138 = sphi 0, %s138
      %s140 = sphi 0, %s138
      %s141 = sphi 0, %s140
      %s155 = sphi 0, %s141
      %s161 = sphi 0, %s163
      %s164 = sphi 0, %s161
      %s165 = sphi 0, %s164
      %s181 = sphi 0, %s165
    $region4: #{tpu_custom_call.1} parent=1 // loop_header_branch
      %18 = sbr.rel (%p16) target = $region8
    $region5: #{tpu_custom_call.1} parent=1 // loop_body
      %s20 = ssub.s32 %s15, 1
      %s21 = ssub.s32 %s15, 2
      %s22 = sadd.s32 %s15, 1
      %s23 = ssub.s32 %s15, %s22
      %p24 = scmp.eq.s32.totalorder %s23, 0
      %s26 = sadd.s32 %s25, 1
      %s27 = scalar_select %p24, %s25, %s26
      %p30 = pneg %p24
      %p31 = scmp.eq.s32.totalorder %s15, 1
      %p32 = por %p30, %p31
      %p33 = scmp.ne.s32.totalorder %s25, %s28
      %p34 = scmp.eq.s32.totalorder %s15, 0
      %p35 = por %p33, %p34
      %p36 = scmp.ne.s32.totalorder %s25, %s28
      %p37 = scmp.eq.s32.totalorder %s20, 1
      %p38 = por %p36, %p37
      %p39 = scmp.ne.s32.totalorder %s28, %s29
      %p40 = scmp.eq.s32.totalorder %s20, 0
      %p41 = por %p39, %p40
      %p42 = scmp.ne.s32.totalorder %s28, %s29
      %p43 = scmp.eq.s32.totalorder %s21, 1
      %p44 = por %p42, %p43
      %p46 = scmp.ne.s32.totalorder %s29, %s45
      %p47 = scmp.eq.s32.totalorder %s21, 0
      %p48 = por %p46, %p47
      %s49 = ssub.s32 %s15, %s22
      %p50 = scmp.eq.s32.totalorder %s49, 0
      %s52 = sadd.s32 %s51, 1
      %s53 = scalar_select %p50, %s51, %s52
      %p56 = pneg %p50
      %p57 = scmp.eq.s32.totalorder %s15, 1
      %p58 = por %p56, %p57
      %p59 = scmp.ne.s32.totalorder %s51, %s54
      %p60 = scmp.eq.s32.totalorder %s15, 0
      %p61 = por %p59, %p60
      %p62 = scmp.ne.s32.totalorder %s51, %s54
      %p63 = scmp.eq.s32.totalorder %s20, 1
      %p64 = por %p62, %p63
      %p65 = scmp.ne.s32.totalorder %s54, %s55
      %p66 = scmp.eq.s32.totalorder %s20, 0
      %p67 = por %p65, %p66
      %p68 = scmp.ne.s32.totalorder %s54, %s55
      %p69 = scmp.eq.s32.totalorder %s21, 1
      %p70 = por %p68, %p69
      %p72 = scmp.ne.s32.totalorder %s55, %s71
      %p73 = scmp.eq.s32.totalorder %s21, 0
      %p74 = por %p72, %p73
      %s76 = sadd.s32 %s75, 1
      %p79 = scmp.eq.s32.totalorder %s15, 1
      %p80 = scmp.ne.s32.totalorder %s75, %s77
      %p81 = scmp.eq.s32.totalorder %s15, 0
      %p82 = por %p80, %p81
      %p83 = scmp.ne.s32.totalorder %s75, %s77
      %p84 = scmp.eq.s32.totalorder %s20, 1
      %p85 = por %p83, %p84
      %p86 = scmp.ne.s32.totalorder %s77, %s78
      %p87 = scmp.eq.s32.totalorder %s20, 0
      %p88 = por %p86, %p87
      %p89 = scmp.ne.s32.totalorder %s77, %s78
      %p90 = scmp.eq.s32.totalorder %s21, 1
      %p91 = por %p89, %p90
      %p93 = scmp.ne.s32.totalorder %s78, %s92
      %p94 = scmp.eq.s32.totalorder %s21, 0
      %p95 = por %p93, %p94
      %s97 = sadd.s32 %s96, 1
      %p100 = scmp.eq.s32.totalorder %s15, 1
      %p101 = scmp.ne.s32.totalorder %s96, %s98
      %p102 = scmp.eq.s32.totalorder %s15, 0
      %p103 = por %p101, %p102
      %p104 = scmp.ne.s32.totalorder %s96, %s98
      %p105 = scmp.eq.s32.totalorder %s20, 1
      %p106 = por %p104, %p105
      %p107 = scmp.ne.s32.totalorder %s98, %s99
      %p108 = scmp.eq.s32.totalorder %s20, 0
      %p109 = por %p107, %p108
      %p110 = scmp.ne.s32.totalorder %s98, %s99
      %p111 = scmp.eq.s32.totalorder %s21, 1
      %p112 = por %p110, %p111
      %p114 = scmp.ne.s32.totalorder %s99, %s113
      %p115 = scmp.eq.s32.totalorder %s21, 0
      %p116 = por %p114, %p115
      %s118 = sadd.s32 %s117, 1
      %p121 = scmp.eq.s32.totalorder %s15, 1
      %p122 = scmp.ne.s32.totalorder %s117, %s119
      %p123 = scmp.eq.s32.totalorder %s15, 0
      %p124 = por %p122, %p123
      %p125 = scmp.ne.s32.totalorder %s117, %s119
      %p126 = scmp.eq.s32.totalorder %s20, 1
      %p127 = por %p125, %p126
      %p128 = scmp.ne.s32.totalorder %s119, %s120
      %p129 = scmp.eq.s32.totalorder %s20, 0
      %p130 = por %p128, %p129
      %p131 = scmp.ne.s32.totalorder %s119, %s120
      %p132 = scmp.eq.s32.totalorder %s21, 1
      %p133 = por %p131, %p132
      %p135 = scmp.ne.s32.totalorder %s120, %s134
      %p136 = scmp.eq.s32.totalorder %s21, 0
      %p137 = por %p135, %p136
      %s139 = sadd.s32 %s138, 1
      %p142 = scmp.eq.s32.totalorder %s15, 1
      %p143 = scmp.ne.s32.totalorder %s138, %s140
      %p144 = scmp.eq.s32.totalorder %s15, 0
      %p145 = por %p143, %p144
      %p146 = scmp.ne.s32.totalorder %s138, %s140
      %p147 = scmp.eq.s32.totalorder %s20, 1
      %p148 = por %p146, %p147
      %p149 = scmp.ne.s32.totalorder %s140, %s141
      %p150 = scmp.eq.s32.totalorder %s20, 0
      %p151 = por %p149, %p150
      %p152 = scmp.ne.s32.totalorder %s140, %s141
      %p153 = scmp.eq.s32.totalorder %s21, 1
      %p154 = por %p152, %p153
      %p156 = scmp.ne.s32.totalorder %s141, %s155
      %p157 = scmp.eq.s32.totalorder %s21, 0
      %p158 = por %p156, %p157
      %s159 = ssub.s32 %s15, %s22
      %p160 = scmp.eq.s32.totalorder %s159, 0
      %s162 = sadd.s32 %s161, 1
      %s163 = scalar_select %p160, %s161, %s162
      %p166 = pneg %p160
      %p167 = scmp.eq.s32.totalorder %s15, 1
      %p168 = por %p166, %p167
      %p169 = scmp.ne.s32.totalorder %s161, %s164
      %p170 = scmp.eq.s32.totalorder %s15, 0
      %p171 = por %p169, %p170
      %p172 = scmp.ne.s32.totalorder %s161, %s164
      %p173 = scmp.eq.s32.totalorder %s20, 1
      %p174 = por %p172, %p173
      %p175 = scmp.ne.s32.totalorder %s164, %s165
      %p176 = scmp.eq.s32.totalorder %s20, 0
      %p177 = por %p175, %p176
      %p178 = scmp.ne.s32.totalorder %s164, %s165
      %p179 = scmp.eq.s32.totalorder %s21, 1
      %p180 = por %p178, %p179
      %p182 = scmp.ne.s32.totalorder %s165, %s181
      %p183 = scmp.eq.s32.totalorder %s21, 0
      %p184 = por %p182, %p183
      %p185 = scmp.le.s32.totalorder 1, %s15
      %p186 = scmp.lt.s32.totalorder %s15, 3
      %p187 = pnand %p185, %p186
      %p188 = pneg %p187
      // Predicated region
      $region9: #{tpu_custom_call.1} parent=5 // pred_check
        _
      $region10: #{tpu_custom_call.1} parent=5 // pred_check_branch
        %190 = sbr.rel (%p187) target = $region12
      $region11: #{tpu_custom_call.1} parent=5 // pred_region
        %s191 = ssub.s32 %s15, 1
        // Predicated region
        $region13: #{tpu_custom_call.1} parent=11 // pred_check
          %p192 = pneg %p88
        $region14: #{tpu_custom_call.1} parent=11 // pred_check_branch
          %194 = sbr.rel (%p192) target = $region16
        $region15: #{tpu_custom_call.1} parent=11 // pred_region
          _
        $region16: #{tpu_custom_call.1} parent=11 // pred_fallthru
          _
        // Predicated region
        $region17: #{tpu_custom_call.1} parent=11 // pred_check
          %p195 = pneg %p109
        $region18: #{tpu_custom_call.1} parent=11 // pred_check_branch
          %197 = sbr.rel (%p195) target = $region20
        $region19: #{tpu_custom_call.1} parent=11 // pred_region
          _
        $region20: #{tpu_custom_call.1} parent=11 // pred_fallthru
          _
        // Predicated region
        $region21: #{tpu_custom_call.1} parent=11 // pred_check
          %p198 = pneg %p130
        $region22: #{tpu_custom_call.1} parent=11 // pred_check_branch
          %200 = sbr.rel (%p198) target = $region24
        $region23: #{tpu_custom_call.1} parent=11 // pred_region
          _
        $region24: #{tpu_custom_call.1} parent=11 // pred_fallthru
          _
        // Predicated region
        $region25: #{tpu_custom_call.1} parent=11 // pred_check
          %p201 = pneg %p151
        $region26: #{tpu_custom_call.1} parent=11 // pred_check_branch
          %203 = sbr.rel (%p201) target = $region28
        $region27: #{tpu_custom_call.1} parent=11 // pred_region
          _
        $region28: #{tpu_custom_call.1} parent=11 // pred_fallthru
          _
      $region12: #{tpu_custom_call.1} parent=5 // pred_fallthru
        _
      %p204 = scmp.lt.s32.totalorder %s15, 2
      // Predicated region
      $region29: #{tpu_custom_call.1} parent=5 // pred_check
        %p205 = pneg %p204
      $region30: #{tpu_custom_call.1} parent=5 // pred_check_branch
        %207 = sbr.rel (%p205) target = $region32
      $region31: #{tpu_custom_call.1} parent=5 // pred_region
        // Predicated region
        $region33: #{tpu_custom_call.1} parent=31 // pred_check
          %p208 = pneg %p35
        $region34: #{tpu_custom_call.1} parent=31 // pred_check_branch
          %210 = sbr.rel (%p208) target = $region36
        $region35: #{tpu_custom_call.1} parent=31 // pred_region
          %p211 = scmp.lt.s32.totalorder %s15, 1
          %s212 = scalar_select %p211, %s15, 1
          %s213 = smul.addr %s212, 4
          %s214 = scalar_lea.vmem %s0, %s213
        $region36: #{tpu_custom_call.1} parent=31 // pred_fallthru
          _
        // Predicated region
        $region37: #{tpu_custom_call.1} parent=31 // pred_check
          %p215 = pneg %p61
        $region38: #{tpu_custom_call.1} parent=31 // pred_check_branch
          %217 = sbr.rel (%p215) target = $region40
        $region39: #{tpu_custom_call.1} parent=31 // pred_region
          %p218 = scmp.lt.s32.totalorder %s15, 1
          %s219 = scalar_select %p218, %s15, 1
          %s220 = scalar_lea.vmem %s1, %s219
        $region40: #{tpu_custom_call.1} parent=31 // pred_fallthru
          _
      $region32: #{tpu_custom_call.1} parent=5 // pred_fallthru
        _
      %p221 = scmp.le.s32.totalorder 1, %s15
      %p222 = scmp.lt.s32.totalorder %s15, 3
      %p223 = pnand %p221, %p222
      %p224 = pneg %p223
      // Predicated region
      $region41: #{tpu_custom_call.1} parent=5 // pred_check
        _
      $region42: #{tpu_custom_call.1} parent=5 // pred_check_branch
        %226 = sbr.rel (%p223) target = $region44
      $region43: #{tpu_custom_call.1} parent=5 // pred_region
        %s227 = ssub.s32 %s15, 1
        %p228 = scmp.lt.s32.totalorder %s20, 1
        %s229 = scalar_select %p228, %s20, 1
        %s230 = smul.addr %s229, 4
        %s231 = scalar_lea.vmem %s0, %s230
        %p232 = pneg %p41
        %p233 = pneg %p38
        %p234 = scmp.lt.s32.totalorder %s20, 1
        %s235 = scalar_select %p234, %s20, 1
        %s236 = scalar_lea.vmem %s1, %s235
        %p237 = pneg %p67
        %p238 = pneg %p64
        %p239 = pneg %p88
        %p240 = pneg %p85
        %p241 = pneg %p109
        %p242 = pneg %p106
        %p243 = pneg %p130
        %p244 = pneg %p127
        %p245 = pneg %p151
        %p246 = pneg %p148
        %p247 = pneg %p177
        %p248 = pneg %p174
        %s249 = sand.u32 %s164, 1
        %s250 = scalar_lea.sflag [#allocation3], %s249
        %s251 = sand.u32 %s164, 1
        %s252 = smul.addr %s251, 4
        %s253 = scalar_lea.vmem [#allocation2], %s252
        %p254 = scmp.lt.s32.totalorder %s20, 1
        %s255 = scalar_select %p254, %s20, 1
        %s256 = smul.addr %s255, 4
        %s257 = scalar_lea.vmem %s0, %s256
        %p258 = scmp.lt.s32.totalorder %s20, 1
        %s259 = scalar_select %p258, %s20, 1
        %s260 = scalar_lea.vmem %s1, %s259
        %v261 = vld [vmem:[%s257] sm:$0xf]
        %v262 = vld [vmem:[%s260] sm:$0x1]
        %263 = vrot.lane.b32.xlu0 %v261, 1
        %v264 = vpop.permute.xlu0 %263
        %v265 = vlaneseq
        %v266 = vand.u32 %v265, 127
        %v267 = vadd.s32 %v266, 4294967295
        %vm268 = vcmp.ge.s32.totalorder %v267, 0
        %vm269 = vcmp.lt.s32.totalorder %v267, 128
        %vm270 = vmand %vm268, %vm269
        %v271 = vsel %vm270, %v264, 0.0
        %v272 = vld [vmem:[%s2] sm:$0xff]
        %s273 = scalar_lea.vmem %s2, 8
        %v274 = vld [vmem:[%s273] sm:$0xff]
        %vm275 = vcmask 31744
        %v277 = vsel %vm275, %v274, 0
        %vm279 = vcmask 1043456
        %v281 = vsel %vm279, %v261, 0
        %283 = vmatprep.subr.mxu0 0.0
        %v284 = vand.u32 %v281, 4294901760
        %285 = vmatpush1.msra.mxu0 %v284
        %286 = vmatprep.subr.mxu0 0.0
        %287 = vmatpush1.msra.mxu0 0.0
        %288 = vmatprep.subr.mxu0 0.0
        %289 = vmatpush1.msra.mxu0 0.0
        %290 = vmatprep.subr.mxu0 0.0
        %291 = vmatpush1.msra.mxu0 0.0
        %292 = vmatprep.subr.mxu0 0.0
        %293 = vmatpush1.msra.mxu0 0.0
        %294 = vmatprep.subr.mxu0 0.0
        %295 = vmatpush1.msra.mxu0 0.0
        %296 = vmatprep.subr.mxu0 0.0
        %297 = vmatpush1.msra.mxu0 0.0
        %298 = vmatprep.subr.mxu0 0.0
        %299 = vmatpush1.msra.mxu0 0.0
        %300 = vmatprep.subr.mxu0 0.0
        %301 = vmatpush1.msra.mxu0 0.0
        %302 = vmatprep.subr.mxu0 0.0
        %303 = vmatpush1.msra.mxu0 0.0
        %304 = vmatprep.subr.mxu0 0.0
        %305 = vmatpush1.msra.mxu0 0.0
        %306 = vmatprep.subr.mxu0 0.0
        %307 = vmatpush1.msra.mxu0 0.0
        %308 = vmatprep.subr.mxu0 0.0
        %309 = vmatpush1.msra.mxu0 0.0
        %310 = vmatprep.subr.mxu0 0.0
        %311 = vmatpush1.msra.mxu0 0.0
        %312 = vmatprep.subr.mxu0 0.0
        %313 = vmatpush1.msra.mxu0 0.0
        %314 = vmatprep.subr.mxu0 0.0
        %315 = vmatpush1.msra.mxu0 0.0
        %316 = vmatprep.subr.mxu0 0.0
        %317 = vmatpush1.msra.mxu0 0.0
        %318 = vmatprep.subr.mxu0 0.0
        %319 = vmatpush1.msra.mxu0 0.0
        %320 = vmatprep.subr.mxu0 0.0
        %321 = vmatpush1.msra.mxu0 0.0
        %322 = vmatprep.subr.mxu0 0.0
        %323 = vmatpush1.msra.mxu0 0.0
        %324 = vmatprep.subr.mxu0 0.0
        %325 = vmatpush1.msra.mxu0 0.0
        %326 = vmatprep.subr.mxu0 0.0
        %327 = vmatpush1.msra.mxu0 0.0
        %328 = vmatprep.subr.mxu0 0.0
        %329 = vmatpush1.msra.mxu0 0.0
        %330 = vmatprep.subr.mxu0 0.0
        %331 = vmatpush1.msra.mxu0 0.0
        %332 = vmatprep.subr.mxu0 0.0
        %333 = vmatpush1.msra.mxu0 0.0
        %334 = vmatprep.subr.mxu0 0.0
        %335 = vmatpush1.msra.mxu0 0.0
        %336 = vmatprep.subr.mxu0 0.0
        %337 = vmatpush1.msra.mxu0 0.0
        %338 = vmatprep.subr.mxu0 0.0
        %339 = vmatpush1.msra.mxu0 0.0
        %340 = vmatprep.subr.mxu0 0.0
        %341 = vmatpush1.msra.mxu0 0.0
        %342 = vmatprep.subr.mxu0 0.0
        %343 = vmatpush1.msra.mxu0 0.0
        %344 = vmatprep.subr.mxu0 0.0
        %345 = vmatpush1.msra.mxu0 0.0
        %346 = vmatprep.subr.mxu0 0.0
        %347 = vmatpush1.msra.mxu0 0.0
        %348 = vmatprep.mubr.f32.mxu0 0.0
        %v349 = vand.u32 %v277, 4294901760
        %v350 = vsub.f32 %v277, %v349
        %v351 = vand.u32 %v350, 4294901760
        %v352 = vsub.f32 %v350, %v351
        %v353 = vand.u32 %v352, 4294901760
        %354 = vmatmul.mubr.f32.gmra.mrb[0].mxu0 %v353
        %v355 = vpop.f32.mrb[0].mxu0
        %v356 = vadd.f32 0.0, %v355
        %v357 = vpop.f32.mrb[0].mxu0
        %358 = vdwg.mxu0
        %359 = vmatprep.subr.mxu0 0.0
        %v360 = vand.u32 %v281, 4294901760
        %v361 = vsub.f32 %v281, %v360
        %v362 = vand.u32 %v361, 4294901760
        %v363 = vsub.f32 %v361, %v362
        %v364 = vand.u32 %v363, 4294901760
        %365 = vmatpush1.msra.mxu0 %v364
        %366 = vmatprep.subr.mxu0 0.0
        %367 = vmatpush1.msra.mxu0 0.0
        %368 = vmatprep.subr.mxu0 0.0
        %369 = vmatpush1.msra.mxu0 0.0
        %370 = vmatprep.subr.mxu0 0.0
        %371 = vmatpush1.msra.mxu0 0.0
        %372 = vmatprep.subr.mxu0 0.0
        %373 = vmatpush1.msra.mxu0 0.0
        %374 = vmatprep.subr.mxu0 0.0
        %375 = vmatpush1.msra.mxu0 0.0
        %376 = vmatprep.subr.mxu0 0.0
        %377 = vmatpush1.msra.mxu0 0.0
        %378 = vmatprep.subr.mxu0 0.0
        %379 = vmatpush1.msra.mxu0 0.0
        %380 = vmatprep.subr.mxu0 0.0
        %381 = vmatpush1.msra.mxu0 0.0
        %382 = vmatprep.subr.mxu0 0.0
        %383 = vmatpush1.msra.mxu0 0.0
        %384 = vmatprep.subr.mxu0 0.0
        %385 = vmatpush1.msra.mxu0 0.0
        %386 = vmatprep.subr.mxu0 0.0
        %387 = vmatpush1.msra.mxu0 0.0
        %388 = vmatprep.subr.mxu0 0.0
        %389 = vmatpush1.msra.mxu0 0.0
        %390 = vmatprep.subr.mxu0 0.0
        %391 = vmatpush1.msra.mxu0 0.0
        %392 = vmatprep.subr.mxu0 0.0
        %393 = vmatpush1.msra.mxu0 0.0
        %394 = vmatprep.subr.mxu0 0.0
        %395 = vmatpush1.msra.mxu0 0.0
        %396 = vmatprep.subr.mxu0 0.0
        %397 = vmatpush1.msra.mxu0 0.0
        %398 = vmatprep.subr.mxu0 0.0
        %399 = vmatpush1.msra.mxu0 0.0
        %400 = vmatprep.subr.mxu0 0.0
        %401 = vmatpush1.msra.mxu0 0.0
        %402 = vmatprep.subr.mxu0 0.0
        %403 = vmatpush1.msra.mxu0 0.0
        %404 = vmatprep.subr.mxu0 0.0
        %405 = vmatpush1.msra.mxu0 0.0
        %406 = vmatprep.subr.mxu0 0.0
        %407 = vmatpush1.msra.mxu0 0.0
        %408 = vmatprep.subr.mxu0 0.0
        %409 = vmatpush1.msra.mxu0 0.0
        %410 = vmatprep.subr.mxu0 0.0
        %411 = vmatpush1.msra.mxu0 0.0
        %412 = vmatprep.subr.mxu0 0.0
        %413 = vmatpush1.msra.mxu0 0.0
        %414 = vmatprep.subr.mxu0 0.0
        %415 = vmatpush1.msra.mxu0 0.0
        %416 = vmatprep.subr.mxu0 0.0
        %417 = vmatpush1.msra.mxu0 0.0
        %418 = vmatprep.subr.mxu0 0.0
        %419 = vmatpush1.msra.mxu0 0.0
        %420 = vmatprep.subr.mxu0 0.0
        %421 = vmatpush1.msra.mxu0 0.0
        %422 = vmatprep.subr.mxu0 0.0
        %423 = vmatpush1.msra.mxu0 0.0
        %424 = vmatprep.subr.mxu0 0.0
        %425 = vmatpush1.msra.mxu0 0.0
        %426 = vmatprep.subr.mxu0 0.0
        %427 = vmatpush1.msra.mxu0 0.0
        %428 = vmatprep.mubr.f32.mxu0 0.0
        %v429 = vand.u32 %v277, 4294901760
        %430 = vmatmul.mubr.f32.gmra.mrb[0].mxu0 %v429
        %v431 = vpop.f32.mrb[0].mxu0
        %v432 = vadd.f32 %v356, %v431
        %v433 = vpop.f32.mrb[0].mxu0
        %434 = vdwg.mxu0
        %435 = vmatprep.subr.mxu0 0.0
        %v436 = vand.u32 %v281, 4294901760
        %v437 = vsub.f32 %v281, %v436
        %438 = vmatpush1.msra.mxu0 %v437
        %439 = vmatprep.subr.mxu0 0.0
        %440 = vmatpush1.msra.mxu0 0.0
        %441 = vmatprep.subr.mxu0 0.0
        %442 = vmatpush1.msra.mxu0 0.0
        %443 = vmatprep.subr.mxu0 0.0
        %444 = vmatpush1.msra.mxu0 0.0
        %445 = vmatprep.subr.mxu0 0.0
        %446 = vmatpush1.msra.mxu0 0.0
        %447 = vmatprep.subr.mxu0 0.0
        %448 = vmatpush1.msra.mxu0 0.0
        %449 = vmatprep.subr.mxu0 0.0
        %450 = vmatpush1.msra.mxu0 0.0
        %451 = vmatprep.subr.mxu0 0.0
        %452 = vmatpush1.msra.mxu0 0.0
        %453 = vmatprep.subr.mxu0 0.0
        %454 = vmatpush1.msra.mxu0 0.0
        %455 = vmatprep.subr.mxu0 0.0
        %456 = vmatpush1.msra.mxu0 0.0
        %457 = vmatprep.subr.mxu0 0.0
        %458 = vmatpush1.msra.mxu0 0.0
        %459 = vmatprep.subr.mxu0 0.0
        %460 = vmatpush1.msra.mxu0 0.0
        %461 = vmatprep.subr.mxu0 0.0
        %462 = vmatpush1.msra.mxu0 0.0
        %463 = vmatprep.subr.mxu0 0.0
        %464 = vmatpush1.msra.mxu0 0.0
        %465 = vmatprep.subr.mxu0 0.0
        %466 = vmatpush1.msra.mxu0 0.0
        %467 = vmatprep.subr.mxu0 0.0
        %468 = vmatpush1.msra.mxu0 0.0
        %469 = vmatprep.subr.mxu0 0.0
        %470 = vmatpush1.msra.mxu0 0.0
        %471 = vmatprep.subr.mxu0 0.0
        %472 = vmatpush1.msra.mxu0 0.0
        %473 = vmatprep.subr.mxu0 0.0
        %474 = vmatpush1.msra.mxu0 0.0
        %475 = vmatprep.subr.mxu0 0.0
        %476 = vmatpush1.msra.mxu0 0.0
        %477 = vmatprep.subr.mxu0 0.0
        %478 = vmatpush1.msra.mxu0 0.0
        %479 = vmatprep.subr.mxu0 0.0
        %480 = vmatpush1.msra.mxu0 0.0
        %481 = vmatprep.subr.mxu0 0.0
        %482 = vmatpush1.msra.mxu0 0.0
        %483 = vmatprep.subr.mxu0 0.0
        %484 = vmatpush1.msra.mxu0 0.0
        %485 = vmatprep.subr.mxu0 0.0
        %486 = vmatpush1.msra.mxu0 0.0
        %487 = vmatprep.subr.mxu0 0.0
        %488 = vmatpush1.msra.mxu0 0.0
        %489 = vmatprep.subr.mxu0 0.0
        %490 = vmatpush1.msra.mxu0 0.0
        %491 = vmatprep.subr.mxu0 0.0
        %492 = vmatpush1.msra.mxu0 0.0
        %493 = vmatprep.subr.mxu0 0.0
        %494 = vmatpush1.msra.mxu0 0.0
        %495 = vmatprep.subr.mxu0 0.0
        %496 = vmatpush1.msra.mxu0 0.0
        %497 = vmatprep.subr.mxu0 0.0
        %498 = vmatpush1.msra.mxu0 0.0
        %499 = vmatprep.subr.mxu0 0.0
        %500 = vmatpush1.msra.mxu0 0.0
        %501 = vmatprep.mubr.f32.mxu0 0.0
        %v502 = vand.u32 %v277, 4294901760
        %v503 = vsub.f32 %v277, %v502
        %504 = vmatmul.mubr.f32.gmra.mrb[0].mxu0 %v503
        %v505 = vpop.f32.mrb[0].mxu0
        %v506 = vadd.f32 %v432, %v505
        %v507 = vpop.f32.mrb[0].mxu0
        %508 = vdwg.mxu0
        %509 = vmatprep.subr.mxu0 0.0
        %v510 = vand.u32 %v281, 4294901760
        %511 = vmatpush1.msra.mxu0 %v510
        %512 = vmatprep.subr.mxu0 0.0
        %513 = vmatpush1.msra.mxu0 0.0
        %514 = vmatprep.subr.mxu0 0.0
        %515 = vmatpush1.msra.mxu0 0.0
        %516 = vmatprep.subr.mxu0 0.0
        %517 = vmatpush1.msra.mxu0 0.0
        %518 = vmatprep.subr.mxu0 0.0
        %519 = vmatpush1.msra.mxu0 0.0
        %520 = vmatprep.subr.mxu0 0.0
        %521 = vmatpush1.msra.mxu0 0.0
        %522 = vmatprep.subr.mxu0 0.0
        %523 = vmatpush1.msra.mxu0 0.0
        %524 = vmatprep.subr.mxu0 0.0
        %525 = vmatpush1.msra.mxu0 0.0
        %526 = vmatprep.subr.mxu0 0.0
        %527 = vmatpush1.msra.mxu0 0.0
        %528 = vmatprep.subr.mxu0 0.0
        %529 = vmatpush1.msra.mxu0 0.0
        %530 = vmatprep.subr.mxu0 0.0
        %531 = vmatpush1.msra.mxu0 0.0
        %532 = vmatprep.subr.mxu0 0.0
        %533 = vmatpush1.msra.mxu0 0.0
        %534 = vmatprep.subr.mxu0 0.0
        %535 = vmatpush1.msra.mxu0 0.0
        %536 = vmatprep.subr.mxu0 0.0
        %537 = vmatpush1.msra.mxu0 0.0
        %538 = vmatprep.subr.mxu0 0.0
        %539 = vmatpush1.msra.mxu0 0.0
        %540 = vmatprep.subr.mxu0 0.0
        %541 = vmatpush1.msra.mxu0 0.0
        %542 = vmatprep.subr.mxu0 0.0
        %543 = vmatpush1.msra.mxu0 0.0
        %544 = vmatprep.subr.mxu0 0.0
        %545 = vmatpush1.msra.mxu0 0.0
        %546 = vmatprep.subr.mxu0 0.0
        %547 = vmatpush1.msra.mxu0 0.0
        %548 = vmatprep.subr.mxu0 0.0
        %549 = vmatpush1.msra.mxu0 0.0
        %550 = vmatprep.subr.mxu0 0.0
        %551 = vmatpush1.msra.mxu0 0.0
        %552 = vmatprep.subr.mxu0 0.0
        %553 = vmatpush1.msra.mxu0 0.0
        %554 = vmatprep.subr.mxu0 0.0
        %555 = vmatpush1.msra.mxu0 0.0
        %556 = vmatprep.subr.mxu0 0.0
        %557 = vmatpush1.msra.mxu0 0.0
        %558 = vmatprep.subr.mxu0 0.0
        %559 = vmatpush1.msra.mxu0 0.0
        %560 = vmatprep.subr.mxu0 0.0
        %561 = vmatpush1.msra.mxu0 0.0
        %562 = vmatprep.subr.mxu0 0.0
        %563 = vmatpush1.msra.mxu0 0.0
        %564 = vmatprep.subr.mxu0 0.0
        %565 = vmatpush1.msra.mxu0 0.0
        %566 = vmatprep.subr.mxu0 0.0
        %567 = vmatpush1.msra.mxu0 0.0
        %568 = vmatprep.subr.mxu0 0.0
        %569 = vmatpush1.msra.mxu0 0.0
        %570 = vmatprep.subr.mxu0 0.0
        %571 = vmatpush1.msra.mxu0 0.0
        %572 = vmatprep.subr.mxu0 0.0
        %573 = vmatpush1.msra.mxu0 0.0
        %574 = vmatprep.mubr.f32.mxu0 0.0
        %v575 = vand.u32 %v277, 4294901760
        %v576 = vsub.f32 %v277, %v575
        %v577 = vand.u32 %v576, 4294901760
        %578 = vmatmul.mubr.f32.gmra.mrb[0].mxu0 %v577
        %v579 = vpop.f32.mrb[0].mxu0
        %v580 = vadd.f32 %v506, %v579
        %v581 = vpop.f32.mrb[0].mxu0
        %582 = vdwg.mxu0
        %583 = vmatprep.subr.mxu0 0.0
        %v584 = vand.u32 %v281, 4294901760
        %v585 = vsub.f32 %v281, %v584
        %v586 = vand.u32 %v585, 4294901760
        %587 = vmatpush1.msra.mxu0 %v586
        %588 = vmatprep.subr.mxu0 0.0
        %589 = vmatpush1.msra.mxu0 0.0
        %590 = vmatprep.subr.mxu0 0.0
        %591 = vmatpush1.msra.mxu0 0.0
        %592 = vmatprep.subr.mxu0 0.0
        %593 = vmatpush1.msra.mxu0 0.0
        %594 = vmatprep.subr.mxu0 0.0
        %595 = vmatpush1.msra.mxu0 0.0
        %596 = vmatprep.subr.mxu0 0.0
        %597 = vmatpush1.msra.mxu0 0.0
        %598 = vmatprep.subr.mxu0 0.0
        %599 = vmatpush1.msra.mxu0 0.0
        %600 = vmatprep.subr.mxu0 0.0
        %601 = vmatpush1.msra.mxu0 0.0
        %602 = vmatprep.subr.mxu0 0.0
        %603 = vmatpush1.msra.mxu0 0.0
        %604 = vmatprep.subr.mxu0 0.0
        %605 = vmatpush1.msra.mxu0 0.0
        %606 = vmatprep.subr.mxu0 0.0
        %607 = vmatpush1.msra.mxu0 0.0
        %608 = vmatprep.subr.mxu0 0.0
        %609 = vmatpush1.msra.mxu0 0.0
        %610 = vmatprep.subr.mxu0 0.0
        %611 = vmatpush1.msra.mxu0 0.0
        %612 = vmatprep.subr.mxu0 0.0
        %613 = vmatpush1.msra.mxu0 0.0
        %614 = vmatprep.subr.mxu0 0.0
        %615 = vmatpush1.msra.mxu0 0.0
        %616 = vmatprep.subr.mxu0 0.0
        %617 = vmatpush1.msra.mxu0 0.0
        %618 = vmatprep.subr.mxu0 0.0
        %619 = vmatpush1.msra.mxu0 0.0
        %620 = vmatprep.subr.mxu0 0.0
        %621 = vmatpush1.msra.mxu0 0.0
        %622 = vmatprep.subr.mxu0 0.0
        %623 = vmatpush1.msra.mxu0 0.0
        %624 = vmatprep.subr.mxu0 0.0
        %625 = vmatpush1.msra.mxu0 0.0
        %626 = vmatprep.subr.mxu0 0.0
        %627 = vmatpush1.msra.mxu0 0.0
        %628 = vmatprep.subr.mxu0 0.0
        %629 = vmatpush1.msra.mxu0 0.0
        %630 = vmatprep.subr.mxu0 0.0
        %631 = vmatpush1.msra.mxu0 0.0
        %632 = vmatprep.subr.mxu0 0.0
        %633 = vmatpush1.msra.mxu0 0.0
        %634 = vmatprep.subr.mxu0 0.0
        %635 = vmatpush1.msra.mxu0 0.0
        %636 = vmatprep.subr.mxu0 0.0
        %637 = vmatpush1.msra.mxu0 0.0
        %638 = vmatprep.subr.mxu0 0.0
        %639 = vmatpush1.msra.mxu0 0.0
        %640 = vmatprep.subr.mxu0 0.0
        %641 = vmatpush1.msra.mxu0 0.0
        %642 = vmatprep.subr.mxu0 0.0
        %643 = vmatpush1.msra.mxu0 0.0
        %644 = vmatprep.subr.mxu0 0.0
        %645 = vmatpush1.msra.mxu0 0.0
        %646 = vmatprep.subr.mxu0 0.0
        %647 = vmatpush1.msra.mxu0 0.0
        %648 = vmatprep.subr.mxu0 0.0
        %649 = vmatpush1.msra.mxu0 0.0
        %650 = vmatprep.mubr.f32.mxu0 0.0
        %v651 = vand.u32 %v277, 4294901760
        %652 = vmatmul.mubr.f32.gmra.mrb[0].mxu0 %v651
        %v653 = vpop.f32.mrb[0].mxu0
        %v654 = vadd.f32 %v580, %v653
        %v655 = vpop.f32.mrb[0].mxu0
        %656 = vdwg.mxu0
        %657 = vmatprep.subr.mxu0 0.0
        %v658 = vand.u32 %v281, 4294901760
        %659 = vmatpush1.msra.mxu0 %v658
        %660 = vmatprep.subr.mxu0 0.0
        %661 = vmatpush1.msra.mxu0 0.0
        %662 = vmatprep.subr.mxu0 0.0
        %663 = vmatpush1.msra.mxu0 0.0
        %664 = vmatprep.subr.mxu0 0.0
        %665 = vmatpush1.msra.mxu0 0.0
        %666 = vmatprep.subr.mxu0 0.0
        %667 = vmatpush1.msra.mxu0 0.0
        %668 = vmatprep.subr.mxu0 0.0
        %669 = vmatpush1.msra.mxu0 0.0
        %670 = vmatprep.subr.mxu0 0.0
        %671 = vmatpush1.msra.mxu0 0.0
        %672 = vmatprep.subr.mxu0 0.0
        %673 = vmatpush1.msra.mxu0 0.0
        %674 = vmatprep.subr.mxu0 0.0
        %675 = vmatpush1.msra.mxu0 0.0
        %676 = vmatprep.subr.mxu0 0.0
        %677 = vmatpush1.msra.mxu0 0.0
        %678 = vmatprep.subr.mxu0 0.0
        %679 = vmatpush1.msra.mxu0 0.0
        %680 = vmatprep.subr.mxu0 0.0
        %681 = vmatpush1.msra.mxu0 0.0
        %682 = vmatprep.subr.mxu0 0.0
        %683 = vmatpush1.msra.mxu0 0.0
        %684 = vmatprep.subr.mxu0 0.0
        %685 = vmatpush1.msra.mxu0 0.0
        %686 = vmatprep.subr.mxu0 0.0
        %687 = vmatpush1.msra.mxu0 0.0
        %688 = vmatprep.subr.mxu0 0.0
        %689 = vmatpush1.msra.mxu0 0.0
        %690 = vmatprep.subr.mxu0 0.0
        %691 = vmatpush1.msra.mxu0 0.0
        %692 = vmatprep.subr.mxu0 0.0
        %693 = vmatpush1.msra.mxu0 0.0
        %694 = vmatprep.subr.mxu0 0.0
        %695 = vmatpush1.msra.mxu0 0.0
        %696 = vmatprep.subr.mxu0 0.0
        %697 = vmatpush1.msra.mxu0 0.0
        %698 = vmatprep.subr.mxu0 0.0
        %699 = vmatpush1.msra.mxu0 0.0
        %700 = vmatprep.subr.mxu0 0.0
        %701 = vmatpush1.msra.mxu0 0.0
        %702 = vmatprep.subr.mxu0 0.0
        %703 = vmatpush1.msra.mxu0 0.0
        %704 = vmatprep.subr.mxu0 0.0
        %705 = vmatpush1.msra.mxu0 0.0
        %706 = vmatprep.subr.mxu0 0.0
        %707 = vmatpush1.msra.mxu0 0.0
        %708 = vmatprep.subr.mxu0 0.0
        %709 = vmatpush1.msra.mxu0 0.0
        %710 = vmatprep.subr.mxu0 0.0
        %711 = vmatpush1.msra.mxu0 0.0
        %712 = vmatprep.subr.mxu0 0.0
        %713 = vmatpush1.msra.mxu0 0.0
        %714 = vmatprep.subr.mxu0 0.0
        %715 = vmatpush1.msra.mxu0 0.0
        %716 = vmatprep.subr.mxu0 0.0
        %717 = vmatpush1.msra.mxu0 0.0
        %718 = vmatprep.subr.mxu0 0.0
        %719 = vmatpush1.msra.mxu0 0.0
        %720 = vmatprep.subr.mxu0 0.0
        %721 = vmatpush1.msra.mxu0 0.0
        %722 = vmatprep.mubr.f32.mxu0 0.0
        %v723 = vand.u32 %v277, 4294901760
        %724 = vmatmul.mubr.f32.gmra.mrb[0].mxu0 %v723
        %v725 = vpop.f32.mrb[0].mxu0
        %v726 = vadd.f32 %v654, %v725
        %v727 = vpop.f32.mrb[0].mxu0
        %728 = vdwg.mxu0
        %v730 = vsel %vm275, %v272, 0
        %v733 = vsel %vm279, %v271, 0
        %735 = vmatprep.subr.mxu0 0.0
        %v736 = vand.u32 %v733, 4294901760
        %737 = vmatpush1.msra.mxu0 %v736
        %738 = vmatprep.subr.mxu0 0.0
        %739 = vmatpush1.msra.mxu0 0.0
        %740 = vmatprep.subr.mxu0 0.0
        %741 = vmatpush1.msra.mxu0 0.0
        %742 = vmatprep.subr.mxu0 0.0
        %743 = vmatpush1.msra.mxu0 0.0
        %744 = vmatprep.subr.mxu0 0.0
        %745 = vmatpush1.msra.mxu0 0.0
        %746 = vmatprep.subr.mxu0 0.0
        %747 = vmatpush1.msra.mxu0 0.0
        %748 = vmatprep.subr.mxu0 0.0
        %749 = vmatpush1.msra.mxu0 0.0
        %750 = vmatprep.subr.mxu0 0.0
        %751 = vmatpush1.msra.mxu0 0.0
        %752 = vmatprep.subr.mxu0 0.0
        %753 = vmatpush1.msra.mxu0 0.0
        %754 = vmatprep.subr.mxu0 0.0
        %755 = vmatpush1.msra.mxu0 0.0
        %756 = vmatprep.subr.mxu0 0.0
        %757 = vmatpush1.msra.mxu0 0.0
        %758 = vmatprep.subr.mxu0 0.0
        %759 = vmatpush1.msra.mxu0 0.0
        %760 = vmatprep.subr.mxu0 0.0
        %761 = vmatpush1.msra.mxu0 0.0
        %762 = vmatprep.subr.mxu0 0.0
        %763 = vmatpush1.msra.mxu0 0.0
        %764 = vmatprep.subr.mxu0 0.0
        %765 = vmatpush1.msra.mxu0 0.0
        %766 = vmatprep.subr.mxu0 0.0
        %767 = vmatpush1.msra.mxu0 0.0
        %768 = vmatprep.subr.mxu0 0.0
        %769 = vmatpush1.msra.mxu0 0.0
        %770 = vmatprep.subr.mxu0 0.0
        %771 = vmatpush1.msra.mxu0 0.0
        %772 = vmatprep.subr.mxu0 0.0
        %773 = vmatpush1.msra.mxu0 0.0
        %774 = vmatprep.subr.mxu0 0.0
        %775 = vmatpush1.msra.mxu0 0.0
        %776 = vmatprep.subr.mxu0 0.0
        %777 = vmatpush1.msra.mxu0 0.0
        %778 = vmatprep.subr.mxu0 0.0
        %779 = vmatpush1.msra.mxu0 0.0
        %780 = vmatprep.subr.mxu0 0.0
        %781 = vmatpush1.msra.mxu0 0.0
        %782 = vmatprep.subr.mxu0 0.0
        %783 = vmatpush1.msra.mxu0 0.0
        %784 = vmatprep.subr.mxu0 0.0
        %785 = vmatpush1.msra.mxu0 0.0
        %786 = vmatprep.subr.mxu0 0.0
        %787 = vmatpush1.msra.mxu0 0.0
        %788 = vmatprep.subr.mxu0 0.0
        %789 = vmatpush1.msra.mxu0 0.0
        %790 = vmatprep.subr.mxu0 0.0
        %791 = vmatpush1.msra.mxu0 0.0
        %792 = vmatprep.subr.mxu0 0.0
        %793 = vmatpush1.msra.mxu0 0.0
        %794 = vmatprep.subr.mxu0 0.0
        %795 = vmatpush1.msra.mxu0 0.0
        %796 = vmatprep.subr.mxu0 0.0
        %797 = vmatpush1.msra.mxu0 0.0
        %798 = vmatprep.subr.mxu0 0.0
        %799 = vmatpush1.msra.mxu0 0.0
        %800 = vmatprep.mubr.f32.mxu0 0.0
        %v801 = vand.u32 %v730, 4294901760
        %v802 = vsub.f32 %v730, %v801
        %v803 = vand.u32 %v802, 4294901760
        %v804 = vsub.f32 %v802, %v803
        %v805 = vand.u32 %v804, 4294901760
        %806 = vmatmul.mubr.f32.gmra.mrb[0].mxu0 %v805
        %v807 = vpop.f32.mrb[0].mxu0
        %v808 = vadd.f32 %v726, %v807
        %v809 = vpop.f32.mrb[0].mxu0
        %810 = vdwg.mxu0
        %811 = vmatprep.subr.mxu0 0.0
        %v812 = vand.u32 %v733, 4294901760
        %v813 = vsub.f32 %v733, %v812
        %v814 = vand.u32 %v813, 4294901760
        %v815 = vsub.f32 %v813, %v814
        %v816 = vand.u32 %v815, 4294901760
        %817 = vmatpush1.msra.mxu0 %v816
        %818 = vmatprep.subr.mxu0 0.0
        %819 = vmatpush1.msra.mxu0 0.0
        %820 = vmatprep.subr.mxu0 0.0
        %821 = vmatpush1.msra.mxu0 0.0
        %822 = vmatprep.subr.mxu0 0.0
        %823 = vmatpush1.msra.mxu0 0.0
        %824 = vmatprep.subr.mxu0 0.0
        %825 = vmatpush1.msra.mxu0 0.0
        %826 = vmatprep.subr.mxu0 0.0
        %827 = vmatpush1.msra.mxu0 0.0
        %828 = vmatprep.subr.mxu0 0.0
        %829 = vmatpush1.msra.mxu0 0.0
        %830 = vmatprep.subr.mxu0 0.0
        %831 = vmatpush1.msra.mxu0 0.0
        %832 = vmatprep.subr.mxu0 0.0
        %833 = vmatpush1.msra.mxu0 0.0
        %834 = vmatprep.subr.mxu0 0.0
        %835 = vmatpush1.msra.mxu0 0.0
        %836 = vmatprep.subr.mxu0 0.0
        %837 = vmatpush1.msra.mxu0 0.0
        %838 = vmatprep.subr.mxu0 0.0
        %839 = vmatpush1.msra.mxu0 0.0
        %840 = vmatprep.subr.mxu0 0.0
        %841 = vmatpush1.msra.mxu0 0.0
        %842 = vmatprep.subr.mxu0 0.0
        %843 = vmatpush1.msra.mxu0 0.0
        %844 = vmatprep.subr.mxu0 0.0
        %845 = vmatpush1.msra.mxu0 0.0
        %846 = vmatprep.subr.mxu0 0.0
        %847 = vmatpush1.msra.mxu0 0.0
        %848 = vmatprep.subr.mxu0 0.0
        %849 = vmatpush1.msra.mxu0 0.0
        %850 = vmatprep.subr.mxu0 0.0
        %851 = vmatpush1.msra.mxu0 0.0
        %852 = vmatprep.subr.mxu0 0.0
        %853 = vmatpush1.msra.mxu0 0.0
        %854 = vmatprep.subr.mxu0 0.0
        %855 = vmatpush1.msra.mxu0 0.0
        %856 = vmatprep.subr.mxu0 0.0
        %857 = vmatpush1.msra.mxu0 0.0
        %858 = vmatprep.subr.mxu0 0.0
        %859 = vmatpush1.msra.mxu0 0.0
        %860 = vmatprep.subr.mxu0 0.0
        %861 = vmatpush1.msra.mxu0 0.0
        %862 = vmatprep.subr.mxu0 0.0
        %863 = vmatpush1.msra.mxu0 0.0
        %864 = vmatprep.subr.mxu0 0.0
        %865 = vmatpush1.msra.mxu0 0.0
        %866 = vmatprep.subr.mxu0 0.0
        %867 = vmatpush1.msra.mxu0 0.0
        %868 = vmatprep.subr.mxu0 0.0
        %869 = vmatpush1.msra.mxu0 0.0
        %870 = vmatprep.subr.mxu0 0.0
        %871 = vmatpush1.msra.mxu0 0.0
        %872 = vmatprep.subr.mxu0 0.0
        %873 = vmatpush1.msra.mxu0 0.0
        %874 = vmatprep.subr.mxu0 0.0
        %875 = vmatpush1.msra.mxu0 0.0
        %876 = vmatprep.subr.mxu0 0.0
        %877 = vmatpush1.msra.mxu0 0.0
        %878 = vmatprep.subr.mxu0 0.0
        %879 = vmatpush1.msra.mxu0 0.0
        %880 = vmatprep.mubr.f32.mxu0 0.0
        %v881 = vand.u32 %v730, 4294901760
        %882 = vmatmul.mubr.f32.gmra.mrb[0].mxu0 %v881
        %v883 = vpop.f32.mrb[0].mxu0
        %v884 = vadd.f32 %v808, %v883
        %v885 = vpop.f32.mrb[0].mxu0
        %886 = vdwg.mxu0
        %887 = vmatprep.subr.mxu0 0.0
        %v888 = vand.u32 %v733, 4294901760
        %v889 = vsub.f32 %v733, %v888
        %890 = vmatpush1.msra.mxu0 %v889
        %891 = vmatprep.subr.mxu0 0.0
        %892 = vmatpush1.msra.mxu0 0.0
        %893 = vmatprep.subr.mxu0 0.0
        %894 = vmatpush1.msra.mxu0 0.0
        %895 = vmatprep.subr.mxu0 0.0
        %896 = vmatpush1.msra.mxu0 0.0
        %897 = vmatprep.subr.mxu0 0.0
        %898 = vmatpush1.msra.mxu0 0.0
        %899 = vmatprep.subr.mxu0 0.0
        %900 = vmatpush1.msra.mxu0 0.0
        %901 = vmatprep.subr.mxu0 0.0
        %902 = vmatpush1.msra.mxu0 0.0
        %903 = vmatprep.subr.mxu0 0.0
        %904 = vmatpush1.msra.mxu0 0.0
        %905 = vmatprep.subr.mxu0 0.0
        %906 = vmatpush1.msra.mxu0 0.0
        %907 = vmatprep.subr.mxu0 0.0
        %908 = vmatpush1.msra.mxu0 0.0
        %909 = vmatprep.subr.mxu0 0.0
        %910 = vmatpush1.msra.mxu0 0.0
        %911 = vmatprep.subr.mxu0 0.0
        %912 = vmatpush1.msra.mxu0 0.0
        %913 = vmatprep.subr.mxu0 0.0
        %914 = vmatpush1.msra.mxu0 0.0
        %915 = vmatprep.subr.mxu0 0.0
        %916 = vmatpush1.msra.mxu0 0.0
        %917 = vmatprep.subr.mxu0 0.0
        %918 = vmatpush1.msra.mxu0 0.0
        %919 = vmatprep.subr.mxu0 0.0
        %920 = vmatpush1.msra.mxu0 0.0
        %921 = vmatprep.subr.mxu0 0.0
        %922 = vmatpush1.msra.mxu0 0.0
        %923 = vmatprep.subr.mxu0 0.0
        %924 = vmatpush1.msra.mxu0 0.0
        %925 = vmatprep.subr.mxu0 0.0
        %926 = vmatpush1.msra.mxu0 0.0
        %927 = vmatprep.subr.mxu0 0.0
        %928 = vmatpush1.msra.mxu0 0.0
        %929 = vmatprep.subr.mxu0 0.0
        %930 = vmatpush1.msra.mxu0 0.0
        %931 = vmatprep.subr.mxu0 0.0
        %932 = vmatpush1.msra.mxu0 0.0
        %933 = vmatprep.subr.mxu0 0.0
        %934 = vmatpush1.msra.mxu0 0.0
        %935 = vmatprep.subr.mxu0 0.0
        %936 = vmatpush1.msra.mxu0 0.0
        %937 = vmatprep.subr.mxu0 0.0
        %938 = vmatpush1.msra.mxu0 0.0
        %939 = vmatprep.subr.mxu0 0.0
        %940 = vmatpush1.msra.mxu0 0.0
        %941 = vmatprep.subr.mxu0 0.0
        %942 = vmatpush1.msra.mxu0 0.0
        %943 = vmatprep.subr.mxu0 0.0
        %944 = vmatpush1.msra.mxu0 0.0
        %945 = vmatprep.subr.mxu0 0.0
        %946 = vmatpush1.msra.mxu0 0.0
        %947 = vmatprep.subr.mxu0 0.0
        %948 = vmatpush1.msra.mxu0 0.0
        %949 = vmatprep.subr.mxu0 0.0
        %950 = vmatpush1.msra.mxu0 0.0
        %951 = vmatprep.subr.mxu0 0.0
        %952 = vmatpush1.msra.mxu0 0.0
        %953 = vmatprep.mubr.f32.mxu0 0.0
        %v954 = vand.u32 %v730, 4294901760
        %v955 = vsub.f32 %v730, %v954
        %956 = vmatmul.mubr.f32.gmra.mrb[0].mxu0 %v955
        %v957 = vpop.f32.mrb[0].mxu0
        %v958 = vadd.f32 %v884, %v957
        %v959 = vpop.f32.mrb[0].mxu0
        %960 = vdwg.mxu0
        %961 = vmatprep.subr.mxu0 0.0
        %v962 = vand.u32 %v733, 4294901760
        %963 = vmatpush1.msra.mxu0 %v962
        %964 = vmatprep.subr.mxu0 0.0
        %965 = vmatpush1.msra.mxu0 0.0
        %966 = vmatprep.subr.mxu0 0.0
        %967 = vmatpush1.msra.mxu0 0.0
        %968 = vmatprep.subr.mxu0 0.0
        %969 = vmatpush1.msra.mxu0 0.0
        %970 = vmatprep.subr.mxu0 0.0
        %971 = vmatpush1.msra.mxu0 0.0
        %972 = vmatprep.subr.mxu0 0.0
        %973 = vmatpush1.msra.mxu0 0.0
        %974 = vmatprep.subr.mxu0 0.0
        %975 = vmatpush1.msra.mxu0 0.0
        %976 = vmatprep.subr.mxu0 0.0
        %977 = vmatpush1.msra.mxu0 0.0
        %978 = vmatprep.subr.mxu0 0.0
        %979 = vmatpush1.msra.mxu0 0.0
        %980 = vmatprep.subr.mxu0 0.0
        %981 = vmatpush1.msra.mxu0 0.0
        %982 = vmatprep.subr.mxu0 0.0
        %983 = vmatpush1.msra.mxu0 0.0
        %984 = vmatprep.subr.mxu0 0.0
        %985 = vmatpush1.msra.mxu0 0.0
        %986 = vmatprep.subr.mxu0 0.0
        %987 = vmatpush1.msra.mxu0 0.0
        %988 = vmatprep.subr.mxu0 0.0
        %989 = vmatpush1.msra.mxu0 0.0
        %990 = vmatprep.subr.mxu0 0.0
        %991 = vmatpush1.msra.mxu0 0.0
        %992 = vmatprep.subr.mxu0 0.0
        %993 = vmatpush1.msra.mxu0 0.0
        %994 = vmatprep.subr.mxu0 0.0
        %995 = vmatpush1.msra.mxu0 0.0
        %996 = vmatprep.subr.mxu0 0.0
        %997 = vmatpush1.msra.mxu0 0.0
        %998 = vmatprep.subr.mxu0 0.0
        %999 = vmatpush1.msra.mxu0 0.0
        %1000 = vmatprep.subr.mxu0 0.0
        %1001 = vmatpush1.msra.mxu0 0.0
        %1002 = vmatprep.subr.mxu0 0.0
        %1003 = vmatpush1.msra.mxu0 0.0
        %1004 = vmatprep.subr.mxu0 0.0
        %1005 = vmatpush1.msra.mxu0 0.0
        %1006 = vmatprep.subr.mxu0 0.0
        %1007 = vmatpush1.msra.mxu0 0.0
        %1008 = vmatprep.subr.mxu0 0.0
        %1009 = vmatpush1.msra.mxu0 0.0
        %1010 = vmatprep.subr.mxu0 0.0
        %1011 = vmatpush1.msra.mxu0 0.0
        %1012 = vmatprep.subr.mxu0 0.0
        %1013 = vmatpush1.msra.mxu0 0.0
        %1014 = vmatprep.subr.mxu0 0.0
        %1015 = vmatpush1.msra.mxu0 0.0
        %1016 = vmatprep.subr.mxu0 0.0
        %1017 = vmatpush1.msra.mxu0 0.0
        %1018 = vmatprep.subr.mxu0 0.0
        %1019 = vmatpush1.msra.mxu0 0.0
        %1020 = vmatprep.subr.mxu0 0.0
        %1021 = vmatpush1.msra.mxu0 0.0
        %1022 = vmatprep.subr.mxu0 0.0
        %1023 = vmatpush1.msra.mxu0 0.0
        %1024 = vmatprep.subr.mxu0 0.0
        %1025 = vmatpush1.msra.mxu0 0.0
        %1026 = vmatprep.mubr.f32.mxu0 0.0
        %v1027 = vand.u32 %v730, 4294901760
        %v1028 = vsub.f32 %v730, %v1027
        %v1029 = vand.u32 %v1028, 4294901760
        %1030 = vmatmul.mubr.f32.gmra.mrb[0].mxu0 %v1029
        %v1031 = vpop.f32.mrb[0].mxu0
        %v1032 = vadd.f32 %v958, %v1031
        %v1033 = vpop.f32.mrb[0].mxu0
        %1034 = vdwg.mxu0
        %1035 = vmatprep.subr.mxu0 0.0
        %v1036 = vand.u32 %v733, 4294901760
        %v1037 = vsub.f32 %v733, %v1036
        %v1038 = vand.u32 %v1037, 4294901760
        %1039 = vmatpush1.msra.mxu0 %v1038
        %1040 = vmatprep.subr.mxu0 0.0
        %1041 = vmatpush1.msra.mxu0 0.0
        %1042 = vmatprep.subr.mxu0 0.0
        %1043 = vmatpush1.msra.mxu0 0.0
        %1044 = vmatprep.subr.mxu0 0.0
        %1045 = vmatpush1.msra.mxu0 0.0
        %1046 = vmatprep.subr.mxu0 0.0
        %1047 = vmatpush1.msra.mxu0 0.0
        %1048 = vmatprep.subr.mxu0 0.0
        %1049 = vmatpush1.msra.mxu0 0.0
        %1050 = vmatprep.subr.mxu0 0.0
        %1051 = vmatpush1.msra.mxu0 0.0
        %1052 = vmatprep.subr.mxu0 0.0
        %1053 = vmatpush1.msra.mxu0 0.0
        %1054 = vmatprep.subr.mxu0 0.0
        %1055 = vmatpush1.msra.mxu0 0.0
        %1056 = vmatprep.subr.mxu0 0.0
        %1057 = vmatpush1.msra.mxu0 0.0
        %1058 = vmatprep.subr.mxu0 0.0
        %1059 = vmatpush1.msra.mxu0 0.0
        %1060 = vmatprep.subr.mxu0 0.0
        %1061 = vmatpush1.msra.mxu0 0.0
        %1062 = vmatprep.subr.mxu0 0.0
        %1063 = vmatpush1.msra.mxu0 0.0
        %1064 = vmatprep.subr.mxu0 0.0
        %1065 = vmatpush1.msra.mxu0 0.0
        %1066 = vmatprep.subr.mxu0 0.0
        %1067 = vmatpush1.msra.mxu0 0.0
        %1068 = vmatprep.subr.mxu0 0.0
        %1069 = vmatpush1.msra.mxu0 0.0
        %1070 = vmatprep.subr.mxu0 0.0
        %1071 = vmatpush1.msra.mxu0 0.0
        %1072 = vmatprep.subr.mxu0 0.0
        %1073 = vmatpush1.msra.mxu0 0.0
        %1074 = vmatprep.subr.mxu0 0.0
        %1075 = vmatpush1.msra.mxu0 0.0
        %1076 = vmatprep.subr.mxu0 0.0
        %1077 = vmatpush1.msra.mxu0 0.0
        %1078 = vmatprep.subr.mxu0 0.0
        %1079 = vmatpush1.msra.mxu0 0.0
        %1080 = vmatprep.subr.mxu0 0.0
        %1081 = vmatpush1.msra.mxu0 0.0
        %1082 = vmatprep.subr.mxu0 0.0
        %1083 = vmatpush1.msra.mxu0 0.0
        %1084 = vmatprep.subr.mxu0 0.0
        %1085 = vmatpush1.msra.mxu0 0.0
        %1086 = vmatprep.subr.mxu0 0.0
        %1087 = vmatpush1.msra.mxu0 0.0
        %1088 = vmatprep.subr.mxu0 0.0
        %1089 = vmatpush1.msra.mxu0 0.0
        %1090 = vmatprep.subr.mxu0 0.0
        %1091 = vmatpush1.msra.mxu0 0.0
        %1092 = vmatprep.subr.mxu0 0.0
        %1093 = vmatpush1.msra.mxu0 0.0
        %1094 = vmatprep.subr.mxu0 0.0
        %1095 = vmatpush1.msra.mxu0 0.0
        %1096 = vmatprep.subr.mxu0 0.0
        %1097 = vmatpush1.msra.mxu0 0.0
        %1098 = vmatprep.subr.mxu0 0.0
        %1099 = vmatpush1.msra.mxu0 0.0
        %1100 = vmatprep.subr.mxu0 0.0
        %1101 = vmatpush1.msra.mxu0 0.0
        %1102 = vmatprep.mubr.f32.mxu0 0.0
        %v1103 = vand.u32 %v730, 4294901760
        %1104 = vmatmul.mubr.f32.gmra.mrb[0].mxu0 %v1103
        %v1105 = vpop.f32.mrb[0].mxu0
        %v1106 = vadd.f32 %v1032, %v1105
        %v1107 = vpop.f32.mrb[0].mxu0
        %1108 = vdwg.mxu0
        %1109 = vmatprep.subr.mxu0 0.0
        %v1110 = vand.u32 %v733, 4294901760
        %1111 = vmatpush1.msra.mxu0 %v1110
        %1112 = vmatprep.subr.mxu0 0.0
        %1113 = vmatpush1.msra.mxu0 0.0
        %1114 = vmatprep.subr.mxu0 0.0
        %1115 = vmatpush1.msra.mxu0 0.0
        %1116 = vmatprep.subr.mxu0 0.0
        %1117 = vmatpush1.msra.mxu0 0.0
        %1118 = vmatprep.subr.mxu0 0.0
        %1119 = vmatpush1.msra.mxu0 0.0
        %1120 = vmatprep.subr.mxu0 0.0
        %1121 = vmatpush1.msra.mxu0 0.0
        %1122 = vmatprep.subr.mxu0 0.0
        %1123 = vmatpush1.msra.mxu0 0.0
        %1124 = vmatprep.subr.mxu0 0.0
        %1125 = vmatpush1.msra.mxu0 0.0
        %1126 = vmatprep.subr.mxu0 0.0
        %1127 = vmatpush1.msra.mxu0 0.0
        %1128 = vmatprep.subr.mxu0 0.0
        %1129 = vmatpush1.msra.mxu0 0.0
        %1130 = vmatprep.subr.mxu0 0.0
        %1131 = vmatpush1.msra.mxu0 0.0
        %1132 = vmatprep.subr.mxu0 0.0
        %1133 = vmatpush1.msra.mxu0 0.0
        %1134 = vmatprep.subr.mxu0 0.0
        %1135 = vmatpush1.msra.mxu0 0.0
        %1136 = vmatprep.subr.mxu0 0.0
        %1137 = vmatpush1.msra.mxu0 0.0
        %1138 = vmatprep.subr.mxu0 0.0
        %1139 = vmatpush1.msra.mxu0 0.0
        %1140 = vmatprep.subr.mxu0 0.0
        %1141 = vmatpush1.msra.mxu0 0.0
        %1142 = vmatprep.subr.mxu0 0.0
        %1143 = vmatpush1.msra.mxu0 0.0
        %1144 = vmatprep.subr.mxu0 0.0
        %1145 = vmatpush1.msra.mxu0 0.0
        %1146 = vmatprep.subr.mxu0 0.0
        %1147 = vmatpush1.msra.mxu0 0.0
        %1148 = vmatprep.subr.mxu0 0.0
        %1149 = vmatpush1.msra.mxu0 0.0
        %1150 = vmatprep.subr.mxu0 0.0
        %1151 = vmatpush1.msra.mxu0 0.0
        %1152 = vmatprep.subr.mxu0 0.0
        %1153 = vmatpush1.msra.mxu0 0.0
        %1154 = vmatprep.subr.mxu0 0.0
        %1155 = vmatpush1.msra.mxu0 0.0
        %1156 = vmatprep.subr.mxu0 0.0
        %1157 = vmatpush1.msra.mxu0 0.0
        %1158 = vmatprep.subr.mxu0 0.0
        %1159 = vmatpush1.msra.mxu0 0.0
        %1160 = vmatprep.subr.mxu0 0.0
        %1161 = vmatpush1.msra.mxu0 0.0
        %1162 = vmatprep.subr.mxu0 0.0
        %1163 = vmatpush1.msra.mxu0 0.0
        %1164 = vmatprep.subr.mxu0 0.0
        %1165 = vmatpush1.msra.mxu0 0.0
        %1166 = vmatprep.subr.mxu0 0.0
        %1167 = vmatpush1.msra.mxu0 0.0
        %1168 = vmatprep.subr.mxu0 0.0
        %1169 = vmatpush1.msra.mxu0 0.0
        %1170 = vmatprep.subr.mxu0 0.0
        %1171 = vmatpush1.msra.mxu0 0.0
        %1172 = vmatprep.subr.mxu0 0.0
        %1173 = vmatpush1.msra.mxu0 0.0
        %1174 = vmatprep.mubr.f32.mxu0 0.0
        %v1175 = vand.u32 %v730, 4294901760
        %1176 = vmatmul.mubr.f32.gmra.mrb[0].mxu0 %v1175
        %v1177 = vpop.f32.mrb[0].mxu0
        %v1178 = vadd.f32 %v1106, %v1177
        %v1179 = vpop.f32.mrb[0].mxu0
        %1180 = vdwg.mxu0
        %1181 = vrot.lane.b32.xlu0 %v261, 127
        %v1182 = vpop.permute.xlu0 %1181
        %v1183 = vadd.s32 %v266, 1
        %vm1184 = vcmp.ge.s32.totalorder %v1183, 0
        %vm1185 = vcmp.lt.s32.totalorder %v1183, 128
        %vm1186 = vmand %vm1184, %vm1185
        %v1187 = vsel %vm1186, %v1182, 0.0
        %s1188 = scalar_lea.vmem %s2, 16
        %v1189 = vld [vmem:[%s1188] sm:$0xff]
        %v1191 = vsel %vm275, %v1189, 0
        %v1194 = vsel %vm279, %v1187, 0
        %1196 = vmatprep.subr.mxu0 0.0
        %v1197 = vand.u32 %v1194, 4294901760
        %1198 = vmatpush1.msra.mxu0 %v1197
        %1199 = vmatprep.subr.mxu0 0.0
        %1200 = vmatpush1.msra.mxu0 0.0
        %1201 = vmatprep.subr.mxu0 0.0
        %1202 = vmatpush1.msra.mxu0 0.0
        %1203 = vmatprep.subr.mxu0 0.0
        %1204 = vmatpush1.msra.mxu0 0.0
        %1205 = vmatprep.subr.mxu0 0.0
        %1206 = vmatpush1.msra.mxu0 0.0
        %1207 = vmatprep.subr.mxu0 0.0
        %1208 = vmatpush1.msra.mxu0 0.0
        %1209 = vmatprep.subr.mxu0 0.0
        %1210 = vmatpush1.msra.mxu0 0.0
        %1211 = vmatprep.subr.mxu0 0.0
        %1212 = vmatpush1.msra.mxu0 0.0
        %1213 = vmatprep.subr.mxu0 0.0
        %1214 = vmatpush1.msra.mxu0 0.0
        %1215 = vmatprep.subr.mxu0 0.0
        %1216 = vmatpush1.msra.mxu0 0.0
        %1217 = vmatprep.subr.mxu0 0.0
        %1218 = vmatpush1.msra.mxu0 0.0
        %1219 = vmatprep.subr.mxu0 0.0
        %1220 = vmatpush1.msra.mxu0 0.0
        %1221 = vmatprep.subr.mxu0 0.0
        %1222 = vmatpush1.msra.mxu0 0.0
        %1223 = vmatprep.subr.mxu0 0.0
        %1224 = vmatpush1.msra.mxu0 0.0
        %1225 = vmatprep.subr.mxu0 0.0
        %1226 = vmatpush1.msra.mxu0 0.0
        %1227 = vmatprep.subr.mxu0 0.0
        %1228 = vmatpush1.msra.mxu0 0.0
        %1229 = vmatprep.subr.mxu0 0.0
        %1230 = vmatpush1.msra.mxu0 0.0
        %1231 = vmatprep.subr.mxu0 0.0
        %1232 = vmatpush1.msra.mxu0 0.0
        %1233 = vmatprep.subr.mxu0 0.0
        %1234 = vmatpush1.msra.mxu0 0.0
        %1235 = vmatprep.subr.mxu0 0.0
        %1236 = vmatpush1.msra.mxu0 0.0
        %1237 = vmatprep.subr.mxu0 0.0
        %1238 = vmatpush1.msra.mxu0 0.0
        %1239 = vmatprep.subr.mxu0 0.0
        %1240 = vmatpush1.msra.mxu0 0.0
        %1241 = vmatprep.subr.mxu0 0.0
        %1242 = vmatpush1.msra.mxu0 0.0
        %1243 = vmatprep.subr.mxu0 0.0
        %1244 = vmatpush1.msra.mxu0 0.0
        %1245 = vmatprep.subr.mxu0 0.0
        %1246 = vmatpush1.msra.mxu0 0.0
        %1247 = vmatprep.subr.mxu0 0.0
        %1248 = vmatpush1.msra.mxu0 0.0
        %1249 = vmatprep.subr.mxu0 0.0
        %1250 = vmatpush1.msra.mxu0 0.0
        %1251 = vmatprep.subr.mxu0 0.0
        %1252 = vmatpush1.msra.mxu0 0.0
        %1253 = vmatprep.subr.mxu0 0.0
        %1254 = vmatpush1.msra.mxu0 0.0
        %1255 = vmatprep.subr.mxu0 0.0
        %1256 = vmatpush1.msra.mxu0 0.0
        %1257 = vmatprep.subr.mxu0 0.0
        %1258 = vmatpush1.msra.mxu0 0.0
        %1259 = vmatprep.subr.mxu0 0.0
        %1260 = vmatpush1.msra.mxu0 0.0
        %1261 = vmatprep.mubr.f32.mxu0 0.0
        %v1262 = vand.u32 %v1191, 4294901760
        %v1263 = vsub.f32 %v1191, %v1262
        %v1264 = vand.u32 %v1263, 4294901760
        %v1265 = vsub.f32 %v1263, %v1264
        %v1266 = vand.u32 %v1265, 4294901760
        %1267 = vmatmul.mubr.f32.gmra.mrb[0].mxu0 %v1266
        %v1268 = vpop.f32.mrb[0].mxu0
        %v1269 = vadd.f32 0.0, %v1268
        %v1270 = vpop.f32.mrb[0].mxu0
        %1271 = vdwg.mxu0
        %1272 = vmatprep.subr.mxu0 0.0
        %v1273 = vand.u32 %v1194, 4294901760
        %v1274 = vsub.f32 %v1194, %v1273
        %v1275 = vand.u32 %v1274, 4294901760
        %v1276 = vsub.f32 %v1274, %v1275
        %v1277 = vand.u32 %v1276, 4294901760
        %1278 = vmatpush1.msra.mxu0 %v1277
        %1279 = vmatprep.subr.mxu0 0.0
        %1280 = vmatpush1.msra.mxu0 0.0
        %1281 = vmatprep.subr.mxu0 0.0
        %1282 = vmatpush1.msra.mxu0 0.0
        %1283 = vmatprep.subr.mxu0 0.0
        %1284 = vmatpush1.msra.mxu0 0.0
        %1285 = vmatprep.subr.mxu0 0.0
        %1286 = vmatpush1.msra.mxu0 0.0
        %1287 = vmatprep.subr.mxu0 0.0
        %1288 = vmatpush1.msra.mxu0 0.0
        %1289 = vmatprep.subr.mxu0 0.0
        %1290 = vmatpush1.msra.mxu0 0.0
        %1291 = vmatprep.subr.mxu0 0.0
        %1292 = vmatpush1.msra.mxu0 0.0
        %1293 = vmatprep.subr.mxu0 0.0
        %1294 = vmatpush1.msra.mxu0 0.0
        %1295 = vmatprep.subr.mxu0 0.0
        %1296 = vmatpush1.msra.mxu0 0.0
        %1297 = vmatprep.subr.mxu0 0.0
        %1298 = vmatpush1.msra.mxu0 0.0
        %1299 = vmatprep.subr.mxu0 0.0
        %1300 = vmatpush1.msra.mxu0 0.0
        %1301 = vmatprep.subr.mxu0 0.0
        %1302 = vmatpush1.msra.mxu0 0.0
        %1303 = vmatprep.subr.mxu0 0.0
        %1304 = vmatpush1.msra.mxu0 0.0
        %1305 = vmatprep.subr.mxu0 0.0
        %1306 = vmatpush1.msra.mxu0 0.0
        %1307 = vmatprep.subr.mxu0 0.0
        %1308 = vmatpush1.msra.mxu0 0.0
        %1309 = vmatprep.subr.mxu0 0.0
        %1310 = vmatpush1.msra.mxu0 0.0
        %1311 = vmatprep.subr.mxu0 0.0
        %1312 = vmatpush1.msra.mxu0 0.0
        %1313 = vmatprep.subr.mxu0 0.0
        %1314 = vmatpush1.msra.mxu0 0.0
        %1315 = vmatprep.subr.mxu0 0.0
        %1316 = vmatpush1.msra.mxu0 0.0
        %1317 = vmatprep.subr.mxu0 0.0
        %1318 = vmatpush1.msra.mxu0 0.0
        %1319 = vmatprep.subr.mxu0 0.0
        %1320 = vmatpush1.msra.mxu0 0.0
        %1321 = vmatprep.subr.mxu0 0.0
        %1322 = vmatpush1.msra.mxu0 0.0
        %1323 = vmatprep.subr.mxu0 0.0
        %1324 = vmatpush1.msra.mxu0 0.0
        %1325 = vmatprep.subr.mxu0 0.0
        %1326 = vmatpush1.msra.mxu0 0.0
        %1327 = vmatprep.subr.mxu0 0.0
        %1328 = vmatpush1.msra.mxu0 0.0
        %1329 = vmatprep.subr.mxu0 0.0
        %1330 = vmatpush1.msra.mxu0 0.0
        %1331 = vmatprep.subr.mxu0 0.0
        %1332 = vmatpush1.msra.mxu0 0.0
        %1333 = vmatprep.subr.mxu0 0.0
        %1334 = vmatpush1.msra.mxu0 0.0
        %1335 = vmatprep.subr.mxu0 0.0
        %1336 = vmatpush1.msra.mxu0 0.0
        %1337 = vmatprep.subr.mxu0 0.0
        %1338 = vmatpush1.msra.mxu0 0.0
        %1339 = vmatprep.subr.mxu0 0.0
        %1340 = vmatpush1.msra.mxu0 0.0
        %1341 = vmatprep.mubr.f32.mxu0 0.0
        %v1342 = vand.u32 %v1191, 4294901760
        %1343 = vmatmul.mubr.f32.gmra.mrb[0].mxu0 %v1342
        %v1344 = vpop.f32.mrb[0].mxu0
        %v1345 = vadd.f32 %v1269, %v1344
        %v1346 = vpop.f32.mrb[0].mxu0
        %1347 = vdwg.mxu0
        %1348 = vmatprep.subr.mxu0 0.0
        %v1349 = vand.u32 %v1194, 4294901760
        %v1350 = vsub.f32 %v1194, %v1349
        %1351 = vmatpush1.msra.mxu0 %v1350
        %1352 = vmatprep.subr.mxu0 0.0
        %1353 = vmatpush1.msra.mxu0 0.0
        %1354 = vmatprep.subr.mxu0 0.0
        %1355 = vmatpush1.msra.mxu0 0.0
        %1356 = vmatprep.subr.mxu0 0.0
        %1357 = vmatpush1.msra.mxu0 0.0
        %1358 = vmatprep.subr.mxu0 0.0
        %1359 = vmatpush1.msra.mxu0 0.0
        %1360 = vmatprep.subr.mxu0 0.0
        %1361 = vmatpush1.msra.mxu0 0.0
        %1362 = vmatprep.subr.mxu0 0.0
        %1363 = vmatpush1.msra.mxu0 0.0
        %1364 = vmatprep.subr.mxu0 0.0
        %1365 = vmatpush1.msra.mxu0 0.0
        %1366 = vmatprep.subr.mxu0 0.0
        %1367 = vmatpush1.msra.mxu0 0.0
        %1368 = vmatprep.subr.mxu0 0.0
        %1369 = vmatpush1.msra.mxu0 0.0
        %1370 = vmatprep.subr.mxu0 0.0
        %1371 = vmatpush1.msra.mxu0 0.0
        %1372 = vmatprep.subr.mxu0 0.0
        %1373 = vmatpush1.msra.mxu0 0.0
        %1374 = vmatprep.subr.mxu0 0.0
        %1375 = vmatpush1.msra.mxu0 0.0
        %1376 = vmatprep.subr.mxu0 0.0
        %1377 = vmatpush1.msra.mxu0 0.0
        %1378 = vmatprep.subr.mxu0 0.0
        %1379 = vmatpush1.msra.mxu0 0.0
        %1380 = vmatprep.subr.mxu0 0.0
        %1381 = vmatpush1.msra.mxu0 0.0
        %1382 = vmatprep.subr.mxu0 0.0
        %1383 = vmatpush1.msra.mxu0 0.0
        %1384 = vmatprep.subr.mxu0 0.0
        %1385 = vmatpush1.msra.mxu0 0.0
        %1386 = vmatprep.subr.mxu0 0.0
        %1387 = vmatpush1.msra.mxu0 0.0
        %1388 = vmatprep.subr.mxu0 0.0
        %1389 = vmatpush1.msra.mxu0 0.0
        %1390 = vmatprep.subr.mxu0 0.0
        %1391 = vmatpush1.msra.mxu0 0.0
        %1392 = vmatprep.subr.mxu0 0.0
        %1393 = vmatpush1.msra.mxu0 0.0
        %1394 = vmatprep.subr.mxu0 0.0
        %1395 = vmatpush1.msra.mxu0 0.0
        %1396 = vmatprep.subr.mxu0 0.0
        %1397 = vmatpush1.msra.mxu0 0.0
        %1398 = vmatprep.subr.mxu0 0.0
        %1399 = vmatpush1.msra.mxu0 0.0
        %1400 = vmatprep.subr.mxu0 0.0
        %1401 = vmatpush1.msra.mxu0 0.0
        %1402 = vmatprep.subr.mxu0 0.0
        %1403 = vmatpush1.msra.mxu0 0.0
        %1404 = vmatprep.subr.mxu0 0.0
        %1405 = vmatpush1.msra.mxu0 0.0
        %1406 = vmatprep.subr.mxu0 0.0
        %1407 = vmatpush1.msra.mxu0 0.0
        %1408 = vmatprep.subr.mxu0 0.0
        %1409 = vmatpush1.msra.mxu0 0.0
        %1410 = vmatprep.subr.mxu0 0.0
        %1411 = vmatpush1.msra.mxu0 0.0
        %1412 = vmatprep.subr.mxu0 0.0
        %1413 = vmatpush1.msra.mxu0 0.0
        %1414 = vmatprep.mubr.f32.mxu0 0.0
        %v1415 = vand.u32 %v1191, 4294901760
        %v1416 = vsub.f32 %v1191, %v1415
        %1417 = vmatmul.mubr.f32.gmra.mrb[0].mxu0 %v1416
        %v1418 = vpop.f32.mrb[0].mxu0
        %v1419 = vadd.f32 %v1345, %v1418
        %v1420 = vpop.f32.mrb[0].mxu0
        %1421 = vdwg.mxu0
        %1422 = vmatprep.subr.mxu0 0.0
        %v1423 = vand.u32 %v1194, 4294901760
        %1424 = vmatpush1.msra.mxu0 %v1423
        %1425 = vmatprep.subr.mxu0 0.0
        %1426 = vmatpush1.msra.mxu0 0.0
        %1427 = vmatprep.subr.mxu0 0.0
        %1428 = vmatpush1.msra.mxu0 0.0
        %1429 = vmatprep.subr.mxu0 0.0
        %1430 = vmatpush1.msra.mxu0 0.0
        %1431 = vmatprep.subr.mxu0 0.0
        %1432 = vmatpush1.msra.mxu0 0.0
        %1433 = vmatprep.subr.mxu0 0.0
        %1434 = vmatpush1.msra.mxu0 0.0
        %1435 = vmatprep.subr.mxu0 0.0
        %1436 = vmatpush1.msra.mxu0 0.0
        %1437 = vmatprep.subr.mxu0 0.0
        %1438 = vmatpush1.msra.mxu0 0.0
        %1439 = vmatprep.subr.mxu0 0.0
        %1440 = vmatpush1.msra.mxu0 0.0
        %1441 = vmatprep.subr.mxu0 0.0
        %1442 = vmatpush1.msra.mxu0 0.0
        %1443 = vmatprep.subr.mxu0 0.0
        %1444 = vmatpush1.msra.mxu0 0.0
        %1445 = vmatprep.subr.mxu0 0.0
        %1446 = vmatpush1.msra.mxu0 0.0
        %1447 = vmatprep.subr.mxu0 0.0
        %1448 = vmatpush1.msra.mxu0 0.0
        %1449 = vmatprep.subr.mxu0 0.0
        %1450 = vmatpush1.msra.mxu0 0.0
        %1451 = vmatprep.subr.mxu0 0.0
        %1452 = vmatpush1.msra.mxu0 0.0
        %1453 = vmatprep.subr.mxu0 0.0
        %1454 = vmatpush1.msra.mxu0 0.0
        %1455 = vmatprep.subr.mxu0 0.0
        %1456 = vmatpush1.msra.mxu0 0.0
        %1457 = vmatprep.subr.mxu0 0.0
        %1458 = vmatpush1.msra.mxu0 0.0
        %1459 = vmatprep.subr.mxu0 0.0
        %1460 = vmatpush1.msra.mxu0 0.0
        %1461 = vmatprep.subr.mxu0 0.0
        %1462 = vmatpush1.msra.mxu0 0.0
        %1463 = vmatprep.subr.mxu0 0.0
        %1464 = vmatpush1.msra.mxu0 0.0
        %1465 = vmatprep.subr.mxu0 0.0
        %1466 = vmatpush1.msra.mxu0 0.0
        %1467 = vmatprep.subr.mxu0 0.0
        %1468 = vmatpush1.msra.mxu0 0.0
        %1469 = vmatprep.subr.mxu0 0.0
        %1470 = vmatpush1.msra.mxu0 0.0
        %1471 = vmatprep.subr.mxu0 0.0
        %1472 = vmatpush1.msra.mxu0 0.0
        %1473 = vmatprep.subr.mxu0 0.0
        %1474 = vmatpush1.msra.mxu0 0.0
        %1475 = vmatprep.subr.mxu0 0.0
        %1476 = vmatpush1.msra.mxu0 0.0
        %1477 = vmatprep.subr.mxu0 0.0
        %1478 = vmatpush1.msra.mxu0 0.0
        %1479 = vmatprep.subr.mxu0 0.0
        %1480 = vmatpush1.msra.mxu0 0.0
        %1481 = vmatprep.subr.mxu0 0.0
        %1482 = vmatpush1.msra.mxu0 0.0
        %1483 = vmatprep.subr.mxu0 0.0
        %1484 = vmatpush1.msra.mxu0 0.0
        %1485 = vmatprep.subr.mxu0 0.0
        %1486 = vmatpush1.msra.mxu0 0.0
        %1487 = vmatprep.mubr.f32.mxu0 0.0
        %v1488 = vand.u32 %v1191, 4294901760
        %v1489 = vsub.f32 %v1191, %v1488
        %v1490 = vand.u32 %v1489, 4294901760
        %1491 = vmatmul.mubr.f32.gmra.mrb[0].mxu0 %v1490
        %v1492 = vpop.f32.mrb[0].mxu0
        %v1493 = vadd.f32 %v1419, %v1492
        %v1494 = vpop.f32.mrb[0].mxu0
        %1495 = vdwg.mxu0
        %1496 = vmatprep.subr.mxu0 0.0
        %v1497 = vand.u32 %v1194, 4294901760
        %v1498 = vsub.f32 %v1194, %v1497
        %v1499 = vand.u32 %v1498, 4294901760
        %1500 = vmatpush1.msra.mxu0 %v1499
        %1501 = vmatprep.subr.mxu0 0.0
        %1502 = vmatpush1.msra.mxu0 0.0
        %1503 = vmatprep.subr.mxu0 0.0
        %1504 = vmatpush1.msra.mxu0 0.0
        %1505 = vmatprep.subr.mxu0 0.0
        %1506 = vmatpush1.msra.mxu0 0.0
        %1507 = vmatprep.subr.mxu0 0.0
        %1508 = vmatpush1.msra.mxu0 0.0
        %1509 = vmatprep.subr.mxu0 0.0
        %1510 = vmatpush1.msra.mxu0 0.0
        %1511 = vmatprep.subr.mxu0 0.0
        %1512 = vmatpush1.msra.mxu0 0.0
        %1513 = vmatprep.subr.mxu0 0.0
        %1514 = vmatpush1.msra.mxu0 0.0
        %1515 = vmatprep.subr.mxu0 0.0
        %1516 = vmatpush1.msra.mxu0 0.0
        %1517 = vmatprep.subr.mxu0 0.0
        %1518 = vmatpush1.msra.mxu0 0.0
        %1519 = vmatprep.subr.mxu0 0.0
        %1520 = vmatpush1.msra.mxu0 0.0
        %1521 = vmatprep.subr.mxu0 0.0
        %1522 = vmatpush1.msra.mxu0 0.0
        %1523 = vmatprep.subr.mxu0 0.0
        %1524 = vmatpush1.msra.mxu0 0.0
        %1525 = vmatprep.subr.mxu0 0.0
        %1526 = vmatpush1.msra.mxu0 0.0
        %1527 = vmatprep.subr.mxu0 0.0
        %1528 = vmatpush1.msra.mxu0 0.0
        %1529 = vmatprep.subr.mxu0 0.0
        %1530 = vmatpush1.msra.mxu0 0.0
        %1531 = vmatprep.subr.mxu0 0.0
        %1532 = vmatpush1.msra.mxu0 0.0
        %1533 = vmatprep.subr.mxu0 0.0
        %1534 = vmatpush1.msra.mxu0 0.0
        %1535 = vmatprep.subr.mxu0 0.0
        %1536 = vmatpush1.msra.mxu0 0.0
        %1537 = vmatprep.subr.mxu0 0.0
        %1538 = vmatpush1.msra.mxu0 0.0
        %1539 = vmatprep.subr.mxu0 0.0
        %1540 = vmatpush1.msra.mxu0 0.0
        %1541 = vmatprep.subr.mxu0 0.0
        %1542 = vmatpush1.msra.mxu0 0.0
        %1543 = vmatprep.subr.mxu0 0.0
        %1544 = vmatpush1.msra.mxu0 0.0
        %1545 = vmatprep.subr.mxu0 0.0
        %1546 = vmatpush1.msra.mxu0 0.0
        %1547 = vmatprep.subr.mxu0 0.0
        %1548 = vmatpush1.msra.mxu0 0.0
        %1549 = vmatprep.subr.mxu0 0.0
        %1550 = vmatpush1.msra.mxu0 0.0
        %1551 = vmatprep.subr.mxu0 0.0
        %1552 = vmatpush1.msra.mxu0 0.0
        %1553 = vmatprep.subr.mxu0 0.0
        %1554 = vmatpush1.msra.mxu0 0.0
        %1555 = vmatprep.subr.mxu0 0.0
        %1556 = vmatpush1.msra.mxu0 0.0
        %1557 = vmatprep.subr.mxu0 0.0
        %1558 = vmatpush1.msra.mxu0 0.0
        %1559 = vmatprep.subr.mxu0 0.0
        %1560 = vmatpush1.msra.mxu0 0.0
        %1561 = vmatprep.subr.mxu0 0.0
        %1562 = vmatpush1.msra.mxu0 0.0
        %1563 = vmatprep.mubr.f32.mxu0 0.0
        %v1564 = vand.u32 %v1191, 4294901760
        %1565 = vmatmul.mubr.f32.gmra.mrb[0].mxu0 %v1564
        %v1566 = vpop.f32.mrb[0].mxu0
        %v1567 = vadd.f32 %v1493, %v1566
        %v1568 = vpop.f32.mrb[0].mxu0
        %1569 = vdwg.mxu0
        %1570 = vmatprep.subr.mxu0 0.0
        %v1571 = vand.u32 %v1194, 4294901760
        %1572 = vmatpush1.msra.mxu0 %v1571
        %1573 = vmatprep.subr.mxu0 0.0
        %1574 = vmatpush1.msra.mxu0 0.0
        %1575 = vmatprep.subr.mxu0 0.0
        %1576 = vmatpush1.msra.mxu0 0.0
        %1577 = vmatprep.subr.mxu0 0.0
        %1578 = vmatpush1.msra.mxu0 0.0
        %1579 = vmatprep.subr.mxu0 0.0
        %1580 = vmatpush1.msra.mxu0 0.0
        %1581 = vmatprep.subr.mxu0 0.0
        %1582 = vmatpush1.msra.mxu0 0.0
        %1583 = vmatprep.subr.mxu0 0.0
        %1584 = vmatpush1.msra.mxu0 0.0
        %1585 = vmatprep.subr.mxu0 0.0
        %1586 = vmatpush1.msra.mxu0 0.0
        %1587 = vmatprep.subr.mxu0 0.0
        %1588 = vmatpush1.msra.mxu0 0.0
        %1589 = vmatprep.subr.mxu0 0.0
        %1590 = vmatpush1.msra.mxu0 0.0
        %1591 = vmatprep.subr.mxu0 0.0
        %1592 = vmatpush1.msra.mxu0 0.0
        %1593 = vmatprep.subr.mxu0 0.0
        %1594 = vmatpush1.msra.mxu0 0.0
        %1595 = vmatprep.subr.mxu0 0.0
        %1596 = vmatpush1.msra.mxu0 0.0
        %1597 = vmatprep.subr.mxu0 0.0
        %1598 = vmatpush1.msra.mxu0 0.0
        %1599 = vmatprep.subr.mxu0 0.0
        %1600 = vmatpush1.msra.mxu0 0.0
        %1601 = vmatprep.subr.mxu0 0.0
        %1602 = vmatpush1.msra.mxu0 0.0
        %1603 = vmatprep.subr.mxu0 0.0
        %1604 = vmatpush1.msra.mxu0 0.0
        %1605 = vmatprep.subr.mxu0 0.0
        %1606 = vmatpush1.msra.mxu0 0.0
        %1607 = vmatprep.subr.mxu0 0.0
        %1608 = vmatpush1.msra.mxu0 0.0
        %1609 = vmatprep.subr.mxu0 0.0
        %1610 = vmatpush1.msra.mxu0 0.0
        %1611 = vmatprep.subr.mxu0 0.0
        %1612 = vmatpush1.msra.mxu0 0.0
        %1613 = vmatprep.subr.mxu0 0.0
        %1614 = vmatpush1.msra.mxu0 0.0
        %1615 = vmatprep.subr.mxu0 0.0
        %1616 = vmatpush1.msra.mxu0 0.0
        %1617 = vmatprep.subr.mxu0 0.0
        %1618 = vmatpush1.msra.mxu0 0.0
        %1619 = vmatprep.subr.mxu0 0.0
        %1620 = vmatpush1.msra.mxu0 0.0
        %1621 = vmatprep.subr.mxu0 0.0
        %1622 = vmatpush1.msra.mxu0 0.0
        %1623 = vmatprep.subr.mxu0 0.0
        %1624 = vmatpush1.msra.mxu0 0.0
        %1625 = vmatprep.subr.mxu0 0.0
        %1626 = vmatpush1.msra.mxu0 0.0
        %1627 = vmatprep.subr.mxu0 0.0
        %1628 = vmatpush1.msra.mxu0 0.0
        %1629 = vmatprep.subr.mxu0 0.0
        %1630 = vmatpush1.msra.mxu0 0.0
        %1631 = vmatprep.subr.mxu0 0.0
        %1632 = vmatpush1.msra.mxu0 0.0
        %1633 = vmatprep.subr.mxu0 0.0
        %1634 = vmatpush1.msra.mxu0 0.0
        %1635 = vmatprep.mubr.f32.mxu0 0.0
        %v1636 = vand.u32 %v1191, 4294901760
        %1637 = vmatmul.mubr.f32.gmra.mrb[0].mxu0 %v1636
        %v1638 = vpop.f32.mrb[0].mxu0
        %v1639 = vadd.f32 %v1567, %v1638
        %v1640 = vpop.f32.mrb[0].mxu0
        %1641 = vdwg.mxu0
        %v1642 = vadd.f32 %v1178, %v1639
        %v1643 = vld [vmem:[%s3] sm:$0xff]
        %1645 = vset.pattern.permute.xlu0 0
        %1646 = vperm.xlu0 %1645, %v1643
        %v1647 = vpop.permute.xlu0 %1646
        %v1649 = vadd.f32 %v1642, %v1647
        %v1651 = vlaneseq
        %v1652 = vshrl.u32 %v1651, 7
        %v1653 = vsub.s32 0, %v1652
        %v1654 = vrot.slane %v262, %v1653
        %v1656 = vmul.f32 %v1649, %v1654
        %v1657 = vmax.f32 %v1656, 0.0
        %1658 = vrot.lane.b32.xlu0 %v1657, 1
        %v1659 = vpop.permute.xlu0 %1658
        %v1660 = vsel %vm270, %v1659, 0.0
        %v1661 = vld [vmem:[%s4] sm:$0xf]
        %s1662 = scalar_lea.vmem %s4, 4
        %v1663 = vld [vmem:[%s1662] sm:$0xf]
        %vm1664 = vcmask 64512
        %v1666 = vsel %vm1664, %v1663, 0
        %1668 = vmatprep.subr.mxu0 0.0
        %v1669 = vand.u32 %v1657, 4294901760
        %1670 = vmatpush1.msra.mxu0 %v1669
        %1671 = vmatprep.subr.mxu0 0.0
        %1672 = vmatpush1.msra.mxu0 0.0
        %1673 = vmatprep.subr.mxu0 0.0
        %1674 = vmatpush1.msra.mxu0 0.0
        %1675 = vmatprep.subr.mxu0 0.0
        %1676 = vmatpush1.msra.mxu0 0.0
        %1677 = vmatprep.subr.mxu0 0.0
        %1678 = vmatpush1.msra.mxu0 0.0
        %1679 = vmatprep.subr.mxu0 0.0
        %1680 = vmatpush1.msra.mxu0 0.0
        %1681 = vmatprep.subr.mxu0 0.0
        %1682 = vmatpush1.msra.mxu0 0.0
        %1683 = vmatprep.subr.mxu0 0.0
        %1684 = vmatpush1.msra.mxu0 0.0
        %1685 = vmatprep.subr.mxu0 0.0
        %1686 = vmatpush1.msra.mxu0 0.0
        %1687 = vmatprep.subr.mxu0 0.0
        %1688 = vmatpush1.msra.mxu0 0.0
        %1689 = vmatprep.subr.mxu0 0.0
        %1690 = vmatpush1.msra.mxu0 0.0
        %1691 = vmatprep.subr.mxu0 0.0
        %1692 = vmatpush1.msra.mxu0 0.0
        %1693 = vmatprep.subr.mxu0 0.0
        %1694 = vmatpush1.msra.mxu0 0.0
        %1695 = vmatprep.subr.mxu0 0.0
        %1696 = vmatpush1.msra.mxu0 0.0
        %1697 = vmatprep.subr.mxu0 0.0
        %1698 = vmatpush1.msra.mxu0 0.0
        %1699 = vmatprep.subr.mxu0 0.0
        %1700 = vmatpush1.msra.mxu0 0.0
        %1701 = vmatprep.subr.mxu0 0.0
        %1702 = vmatpush1.msra.mxu0 0.0
        %1703 = vmatprep.subr.mxu0 0.0
        %1704 = vmatpush1.msra.mxu0 0.0
        %1705 = vmatprep.subr.mxu0 0.0
        %1706 = vmatpush1.msra.mxu0 0.0
        %1707 = vmatprep.subr.mxu0 0.0
        %1708 = vmatpush1.msra.mxu0 0.0
        %1709 = vmatprep.subr.mxu0 0.0
        %1710 = vmatpush1.msra.mxu0 0.0
        %1711 = vmatprep.subr.mxu0 0.0
        %1712 = vmatpush1.msra.mxu0 0.0
        %1713 = vmatprep.subr.mxu0 0.0
        %1714 = vmatpush1.msra.mxu0 0.0
        %1715 = vmatprep.subr.mxu0 0.0
        %1716 = vmatpush1.msra.mxu0 0.0
        %1717 = vmatprep.subr.mxu0 0.0
        %1718 = vmatpush1.msra.mxu0 0.0
        %1719 = vmatprep.subr.mxu0 0.0
        %1720 = vmatpush1.msra.mxu0 0.0
        %1721 = vmatprep.subr.mxu0 0.0
        %1722 = vmatpush1.msra.mxu0 0.0
        %1723 = vmatprep.subr.mxu0 0.0
        %1724 = vmatpush1.msra.mxu0 0.0
        %1725 = vmatprep.subr.mxu0 0.0
        %1726 = vmatpush1.msra.mxu0 0.0
        %1727 = vmatprep.subr.mxu0 0.0
        %1728 = vmatpush1.msra.mxu0 0.0
        %1729 = vmatprep.subr.mxu0 0.0
        %1730 = vmatpush1.msra.mxu0 0.0
        %1731 = vmatprep.subr.mxu0 0.0
        %1732 = vmatpush1.msra.mxu0 0.0
        %1733 = vmatprep.mubr.f32.mxu0 0.0
        %v1734 = vand.u32 %v1666, 4294901760
        %v1735 = vsub.f32 %v1666, %v1734
        %v1736 = vand.u32 %v1735, 4294901760
        %v1737 = vsub.f32 %v1735, %v1736
        %v1738 = vand.u32 %v1737, 4294901760
        %1739 = vmatmul.mubr.f32.gmra.mrb[0].mxu0 %v1738
        %v1740 = vpop.f32.mrb[0].mxu0
        %v1741 = vadd.f32 0.0, %v1740
        %v1742 = vpop.f32.mrb[0].mxu0
        %1743 = vdwg.mxu0
        %1744 = vmatprep.subr.mxu0 0.0
        %v1745 = vand.u32 %v1657, 4294901760
        %v1746 = vsub.f32 %v1657, %v1745
        %v1747 = vand.u32 %v1746, 4294901760
        %v1748 = vsub.f32 %v1746, %v1747
        %v1749 = vand.u32 %v1748, 4294901760
        %1750 = vmatpush1.msra.mxu0 %v1749
        %1751 = vmatprep.subr.mxu0 0.0
        %1752 = vmatpush1.msra.mxu0 0.0
        %1753 = vmatprep.subr.mxu0 0.0
        %1754 = vmatpush1.msra.mxu0 0.0
        %1755 = vmatprep.subr.mxu0 0.0
        %1756 = vmatpush1.msra.mxu0 0.0
        %1757 = vmatprep.subr.mxu0 0.0
        %1758 = vmatpush1.msra.mxu0 0.0
        %1759 = vmatprep.subr.mxu0 0.0
        %1760 = vmatpush1.msra.mxu0 0.0
        %1761 = vmatprep.subr.mxu0 0.0
        %1762 = vmatpush1.msra.mxu0 0.0
        %1763 = vmatprep.subr.mxu0 0.0
        %1764 = vmatpush1.msra.mxu0 0.0
        %1765 = vmatprep.subr.mxu0 0.0
        %1766 = vmatpush1.msra.mxu0 0.0
        %1767 = vmatprep.subr.mxu0 0.0
        %1768 = vmatpush1.msra.mxu0 0.0
        %1769 = vmatprep.subr.mxu0 0.0
        %1770 = vmatpush1.msra.mxu0 0.0
        %1771 = vmatprep.subr.mxu0 0.0
        %1772 = vmatpush1.msra.mxu0 0.0
        %1773 = vmatprep.subr.mxu0 0.0
        %1774 = vmatpush1.msra.mxu0 0.0
        %1775 = vmatprep.subr.mxu0 0.0
        %1776 = vmatpush1.msra.mxu0 0.0
        %1777 = vmatprep.subr.mxu0 0.0
        %1778 = vmatpush1.msra.mxu0 0.0
        %1779 = vmatprep.subr.mxu0 0.0
        %1780 = vmatpush1.msra.mxu0 0.0
        %1781 = vmatprep.subr.mxu0 0.0
        %1782 = vmatpush1.msra.mxu0 0.0
        %1783 = vmatprep.subr.mxu0 0.0
        %1784 = vmatpush1.msra.mxu0 0.0
        %1785 = vmatprep.subr.mxu0 0.0
        %1786 = vmatpush1.msra.mxu0 0.0
        %1787 = vmatprep.subr.mxu0 0.0
        %1788 = vmatpush1.msra.mxu0 0.0
        %1789 = vmatprep.subr.mxu0 0.0
        %1790 = vmatpush1.msra.mxu0 0.0
        %1791 = vmatprep.subr.mxu0 0.0
        %1792 = vmatpush1.msra.mxu0 0.0
        %1793 = vmatprep.subr.mxu0 0.0
        %1794 = vmatpush1.msra.mxu0 0.0
        %1795 = vmatprep.subr.mxu0 0.0
        %1796 = vmatpush1.msra.mxu0 0.0
        %1797 = vmatprep.subr.mxu0 0.0
        %1798 = vmatpush1.msra.mxu0 0.0
        %1799 = vmatprep.subr.mxu0 0.0
        %1800 = vmatpush1.msra.mxu0 0.0
        %1801 = vmatprep.subr.mxu0 0.0
        %1802 = vmatpush1.msra.mxu0 0.0
        %1803 = vmatprep.subr.mxu0 0.0
        %1804 = vmatpush1.msra.mxu0 0.0
        %1805 = vmatprep.subr.mxu0 0.0
        %1806 = vmatpush1.msra.mxu0 0.0
        %1807 = vmatprep.subr.mxu0 0.0
        %1808 = vmatpush1.msra.mxu0 0.0
        %1809 = vmatprep.subr.mxu0 0.0
        %1810 = vmatpush1.msra.mxu0 0.0
        %1811 = vmatprep.subr.mxu0 0.0
        %1812 = vmatpush1.msra.mxu0 0.0
        %1813 = vmatprep.mubr.f32.mxu0 0.0
        %v1814 = vand.u32 %v1666, 4294901760
        %1815 = vmatmul.mubr.f32.gmra.mrb[0].mxu0 %v1814
        %v1816 = vpop.f32.mrb[0].mxu0
        %v1817 = vadd.f32 %v1741, %v1816
        %v1818 = vpop.f32.mrb[0].mxu0
        %1819 = vdwg.mxu0
        %1820 = vmatprep.subr.mxu0 0.0
        %v1821 = vand.u32 %v1657, 4294901760
        %v1822 = vsub.f32 %v1657, %v1821
        %1823 = vmatpush1.msra.mxu0 %v1822
        %1824 = vmatprep.subr.mxu0 0.0
        %1825 = vmatpush1.msra.mxu0 0.0
        %1826 = vmatprep.subr.mxu0 0.0
        %1827 = vmatpush1.msra.mxu0 0.0
        %1828 = vmatprep.subr.mxu0 0.0
        %1829 = vmatpush1.msra.mxu0 0.0
        %1830 = vmatprep.subr.mxu0 0.0
        %1831 = vmatpush1.msra.mxu0 0.0
        %1832 = vmatprep.subr.mxu0 0.0
        %1833 = vmatpush1.msra.mxu0 0.0
        %1834 = vmatprep.subr.mxu0 0.0
        %1835 = vmatpush1.msra.mxu0 0.0
        %1836 = vmatprep.subr.mxu0 0.0
        %1837 = vmatpush1.msra.mxu0 0.0
        %1838 = vmatprep.subr.mxu0 0.0
        %1839 = vmatpush1.msra.mxu0 0.0
        %1840 = vmatprep.subr.mxu0 0.0
        %1841 = vmatpush1.msra.mxu0 0.0
        %1842 = vmatprep.subr.mxu0 0.0
        %1843 = vmatpush1.msra.mxu0 0.0
        %1844 = vmatprep.subr.mxu0 0.0
        %1845 = vmatpush1.msra.mxu0 0.0
        %1846 = vmatprep.subr.mxu0 0.0
        %1847 = vmatpush1.msra.mxu0 0.0
        %1848 = vmatprep.subr.mxu0 0.0
        %1849 = vmatpush1.msra.mxu0 0.0
        %1850 = vmatprep.subr.mxu0 0.0
        %1851 = vmatpush1.msra.mxu0 0.0
        %1852 = vmatprep.subr.mxu0 0.0
        %1853 = vmatpush1.msra.mxu0 0.0
        %1854 = vmatprep.subr.mxu0 0.0
        %1855 = vmatpush1.msra.mxu0 0.0
        %1856 = vmatprep.subr.mxu0 0.0
        %1857 = vmatpush1.msra.mxu0 0.0
        %1858 = vmatprep.subr.mxu0 0.0
        %1859 = vmatpush1.msra.mxu0 0.0
        %1860 = vmatprep.subr.mxu0 0.0
        %1861 = vmatpush1.msra.mxu0 0.0
        %1862 = vmatprep.subr.mxu0 0.0
        %1863 = vmatpush1.msra.mxu0 0.0
        %1864 = vmatprep.subr.mxu0 0.0
        %1865 = vmatpush1.msra.mxu0 0.0
        %1866 = vmatprep.subr.mxu0 0.0
        %1867 = vmatpush1.msra.mxu0 0.0
        %1868 = vmatprep.subr.mxu0 0.0
        %1869 = vmatpush1.msra.mxu0 0.0
        %1870 = vmatprep.subr.mxu0 0.0
        %1871 = vmatpush1.msra.mxu0 0.0
        %1872 = vmatprep.subr.mxu0 0.0
        %1873 = vmatpush1.msra.mxu0 0.0
        %1874 = vmatprep.subr.mxu0 0.0
        %1875 = vmatpush1.msra.mxu0 0.0
        %1876 = vmatprep.subr.mxu0 0.0
        %1877 = vmatpush1.msra.mxu0 0.0
        %1878 = vmatprep.subr.mxu0 0.0
        %1879 = vmatpush1.msra.mxu0 0.0
        %1880 = vmatprep.subr.mxu0 0.0
        %1881 = vmatpush1.msra.mxu0 0.0
        %1882 = vmatprep.subr.mxu0 0.0
        %1883 = vmatpush1.msra.mxu0 0.0
        %1884 = vmatprep.subr.mxu0 0.0
        %1885 = vmatpush1.msra.mxu0 0.0
        %1886 = vmatprep.mubr.f32.mxu0 0.0
        %v1887 = vand.u32 %v1666, 4294901760
        %v1888 = vsub.f32 %v1666, %v1887
        %1889 = vmatmul.mubr.f32.gmra.mrb[0].mxu0 %v1888
        %v1890 = vpop.f32.mrb[0].mxu0
        %v1891 = vadd.f32 %v1817, %v1890
        %v1892 = vpop.f32.mrb[0].mxu0
        %1893 = vdwg.mxu0
        %1894 = vmatprep.subr.mxu0 0.0
        %v1895 = vand.u32 %v1657, 4294901760
        %1896 = vmatpush1.msra.mxu0 %v1895
        %1897 = vmatprep.subr.mxu0 0.0
        %1898 = vmatpush1.msra.mxu0 0.0
        %1899 = vmatprep.subr.mxu0 0.0
        %1900 = vmatpush1.msra.mxu0 0.0
        %1901 = vmatprep.subr.mxu0 0.0
        %1902 = vmatpush1.msra.mxu0 0.0
        %1903 = vmatprep.subr.mxu0 0.0
        %1904 = vmatpush1.msra.mxu0 0.0
        %1905 = vmatprep.subr.mxu0 0.0
        %1906 = vmatpush1.msra.mxu0 0.0
        %1907 = vmatprep.subr.mxu0 0.0
        %1908 = vmatpush1.msra.mxu0 0.0
        %1909 = vmatprep.subr.mxu0 0.0
        %1910 = vmatpush1.msra.mxu0 0.0
        %1911 = vmatprep.subr.mxu0 0.0
        %1912 = vmatpush1.msra.mxu0 0.0
        %1913 = vmatprep.subr.mxu0 0.0
        %1914 = vmatpush1.msra.mxu0 0.0
        %1915 = vmatprep.subr.mxu0 0.0
        %1916 = vmatpush1.msra.mxu0 0.0
        %1917 = vmatprep.subr.mxu0 0.0
        %1918 = vmatpush1.msra.mxu0 0.0
        %1919 = vmatprep.subr.mxu0 0.0
        %1920 = vmatpush1.msra.mxu0 0.0
        %1921 = vmatprep.subr.mxu0 0.0
        %1922 = vmatpush1.msra.mxu0 0.0
        %1923 = vmatprep.subr.mxu0 0.0
        %1924 = vmatpush1.msra.mxu0 0.0
        %1925 = vmatprep.subr.mxu0 0.0
        %1926 = vmatpush1.msra.mxu0 0.0
        %1927 = vmatprep.subr.mxu0 0.0
        %1928 = vmatpush1.msra.mxu0 0.0
        %1929 = vmatprep.subr.mxu0 0.0
        %1930 = vmatpush1.msra.mxu0 0.0
        %1931 = vmatprep.subr.mxu0 0.0
        %1932 = vmatpush1.msra.mxu0 0.0
        %1933 = vmatprep.subr.mxu0 0.0
        %1934 = vmatpush1.msra.mxu0 0.0
        %1935 = vmatprep.subr.mxu0 0.0
        %1936 = vmatpush1.msra.mxu0 0.0
        %1937 = vmatprep.subr.mxu0 0.0
        %1938 = vmatpush1.msra.mxu0 0.0
        %1939 = vmatprep.subr.mxu0 0.0
        %1940 = vmatpush1.msra.mxu0 0.0
        %1941 = vmatprep.subr.mxu0 0.0
        %1942 = vmatpush1.msra.mxu0 0.0
        %1943 = vmatprep.subr.mxu0 0.0
        %1944 = vmatpush1.msra.mxu0 0.0
        %1945 = vmatprep.subr.mxu0 0.0
        %1946 = vmatpush1.msra.mxu0 0.0
        %1947 = vmatprep.subr.mxu0 0.0
        %1948 = vmatpush1.msra.mxu0 0.0
        %1949 = vmatprep.subr.mxu0 0.0
        %1950 = vmatpush1.msra.mxu0 0.0
        %1951 = vmatprep.subr.mxu0 0.0
        %1952 = vmatpush1.msra.mxu0 0.0
        %1953 = vmatprep.subr.mxu0 0.0
        %1954 = vmatpush1.msra.mxu0 0.0
        %1955 = vmatprep.subr.mxu0 0.0
        %1956 = vmatpush1.msra.mxu0 0.0
        %1957 = vmatprep.subr.mxu0 0.0
        %1958 = vmatpush1.msra.mxu0 0.0
        %1959 = vmatprep.mubr.f32.mxu0 0.0
        %v1960 = vand.u32 %v1666, 4294901760
        %v1961 = vsub.f32 %v1666, %v1960
        %v1962 = vand.u32 %v1961, 4294901760
        %1963 = vmatmul.mubr.f32.gmra.mrb[0].mxu0 %v1962
        %v1964 = vpop.f32.mrb[0].mxu0
        %v1965 = vadd.f32 %v1891, %v1964
        %v1966 = vpop.f32.mrb[0].mxu0
        %1967 = vdwg.mxu0
        %1968 = vmatprep.subr.mxu0 0.0
        %v1969 = vand.u32 %v1657, 4294901760
        %v1970 = vsub.f32 %v1657, %v1969
        %v1971 = vand.u32 %v1970, 4294901760
        %1972 = vmatpush1.msra.mxu0 %v1971
        %1973 = vmatprep.subr.mxu0 0.0
        %1974 = vmatpush1.msra.mxu0 0.0
        %1975 = vmatprep.subr.mxu0 0.0
        %1976 = vmatpush1.msra.mxu0 0.0
        %1977 = vmatprep.subr.mxu0 0.0
        %1978 = vmatpush1.msra.mxu0 0.0
        %1979 = vmatprep.subr.mxu0 0.0
        %1980 = vmatpush1.msra.mxu0 0.0
        %1981 = vmatprep.subr.mxu0 0.0
        %1982 = vmatpush1.msra.mxu0 0.0
        %1983 = vmatprep.subr.mxu0 0.0
        %1984 = vmatpush1.msra.mxu0 0.0
        %1985 = vmatprep.subr.mxu0 0.0
        %1986 = vmatpush1.msra.mxu0 0.0
        %1987 = vmatprep.subr.mxu0 0.0
        %1988 = vmatpush1.msra.mxu0 0.0
        %1989 = vmatprep.subr.mxu0 0.0
        %1990 = vmatpush1.msra.mxu0 0.0
        %1991 = vmatprep.subr.mxu0 0.0
        %1992 = vmatpush1.msra.mxu0 0.0
        %1993 = vmatprep.subr.mxu0 0.0
        %1994 = vmatpush1.msra.mxu0 0.0
        %1995 = vmatprep.subr.mxu0 0.0
        %1996 = vmatpush1.msra.mxu0 0.0
        %1997 = vmatprep.subr.mxu0 0.0
        %1998 = vmatpush1.msra.mxu0 0.0
        %1999 = vmatprep.subr.mxu0 0.0
        %2000 = vmatpush1.msra.mxu0 0.0
        %2001 = vmatprep.subr.mxu0 0.0
        %2002 = vmatpush1.msra.mxu0 0.0
        %2003 = vmatprep.subr.mxu0 0.0
        %2004 = vmatpush1.msra.mxu0 0.0
        %2005 = vmatprep.subr.mxu0 0.0
        %2006 = vmatpush1.msra.mxu0 0.0
        %2007 = vmatprep.subr.mxu0 0.0
        %2008 = vmatpush1.msra.mxu0 0.0
        %2009 = vmatprep.subr.mxu0 0.0
        %2010 = vmatpush1.msra.mxu0 0.0
        %2011 = vmatprep.subr.mxu0 0.0
        %2012 = vmatpush1.msra.mxu0 0.0
        %2013 = vmatprep.subr.mxu0 0.0
        %2014 = vmatpush1.msra.mxu0 0.0
        %2015 = vmatprep.subr.mxu0 0.0
        %2016 = vmatpush1.msra.mxu0 0.0
        %2017 = vmatprep.subr.mxu0 0.0
        %2018 = vmatpush1.msra.mxu0 0.0
        %2019 = vmatprep.subr.mxu0 0.0
        %2020 = vmatpush1.msra.mxu0 0.0
        %2021 = vmatprep.subr.mxu0 0.0
        %2022 = vmatpush1.msra.mxu0 0.0
        %2023 = vmatprep.subr.mxu0 0.0
        %2024 = vmatpush1.msra.mxu0 0.0
        %2025 = vmatprep.subr.mxu0 0.0
        %2026 = vmatpush1.msra.mxu0 0.0
        %2027 = vmatprep.subr.mxu0 0.0
        %2028 = vmatpush1.msra.mxu0 0.0
        %2029 = vmatprep.subr.mxu0 0.0
        %2030 = vmatpush1.msra.mxu0 0.0
        %2031 = vmatprep.subr.mxu0 0.0
        %2032 = vmatpush1.msra.mxu0 0.0
        %2033 = vmatprep.subr.mxu0 0.0
        %2034 = vmatpush1.msra.mxu0 0.0
        %2035 = vmatprep.mubr.f32.mxu0 0.0
        %v2036 = vand.u32 %v1666, 4294901760
        %2037 = vmatmul.mubr.f32.gmra.mrb[0].mxu0 %v2036
        %v2038 = vpop.f32.mrb[0].mxu0
        %v2039 = vadd.f32 %v1965, %v2038
        %v2040 = vpop.f32.mrb[0].mxu0
        %2041 = vdwg.mxu0
        %2042 = vmatprep.subr.mxu0 0.0
        %v2043 = vand.u32 %v1657, 4294901760
        %2044 = vmatpush1.msra.mxu0 %v2043
        %2045 = vmatprep.subr.mxu0 0.0
        %2046 = vmatpush1.msra.mxu0 0.0
        %2047 = vmatprep.subr.mxu0 0.0
        %2048 = vmatpush1.msra.mxu0 0.0
        %2049 = vmatprep.subr.mxu0 0.0
        %2050 = vmatpush1.msra.mxu0 0.0
        %2051 = vmatprep.subr.mxu0 0.0
        %2052 = vmatpush1.msra.mxu0 0.0
        %2053 = vmatprep.subr.mxu0 0.0
        %2054 = vmatpush1.msra.mxu0 0.0
        %2055 = vmatprep.subr.mxu0 0.0
        %2056 = vmatpush1.msra.mxu0 0.0
        %2057 = vmatprep.subr.mxu0 0.0
        %2058 = vmatpush1.msra.mxu0 0.0
        %2059 = vmatprep.subr.mxu0 0.0
        %2060 = vmatpush1.msra.mxu0 0.0
        %2061 = vmatprep.subr.mxu0 0.0
        %2062 = vmatpush1.msra.mxu0 0.0
        %2063 = vmatprep.subr.mxu0 0.0
        %2064 = vmatpush1.msra.mxu0 0.0
        %2065 = vmatprep.subr.mxu0 0.0
        %2066 = vmatpush1.msra.mxu0 0.0
        %2067 = vmatprep.subr.mxu0 0.0
        %2068 = vmatpush1.msra.mxu0 0.0
        %2069 = vmatprep.subr.mxu0 0.0
        %2070 = vmatpush1.msra.mxu0 0.0
        %2071 = vmatprep.subr.mxu0 0.0
        %2072 = vmatpush1.msra.mxu0 0.0
        %2073 = vmatprep.subr.mxu0 0.0
        %2074 = vmatpush1.msra.mxu0 0.0
        %2075 = vmatprep.subr.mxu0 0.0
        %2076 = vmatpush1.msra.mxu0 0.0
        %2077 = vmatprep.subr.mxu0 0.0
        %2078 = vmatpush1.msra.mxu0 0.0
        %2079 = vmatprep.subr.mxu0 0.0
        %2080 = vmatpush1.msra.mxu0 0.0
        %2081 = vmatprep.subr.mxu0 0.0
        %2082 = vmatpush1.msra.mxu0 0.0
        %2083 = vmatprep.subr.mxu0 0.0
        %2084 = vmatpush1.msra.mxu0 0.0
        %2085 = vmatprep.subr.mxu0 0.0
        %2086 = vmatpush1.msra.mxu0 0.0
        %2087 = vmatprep.subr.mxu0 0.0
        %2088 = vmatpush1.msra.mxu0 0.0
        %2089 = vmatprep.subr.mxu0 0.0
        %2090 = vmatpush1.msra.mxu0 0.0
        %2091 = vmatprep.subr.mxu0 0.0
        %2092 = vmatpush1.msra.mxu0 0.0
        %2093 = vmatprep.subr.mxu0 0.0
        %2094 = vmatpush1.msra.mxu0 0.0
        %2095 = vmatprep.subr.mxu0 0.0
        %2096 = vmatpush1.msra.mxu0 0.0
        %2097 = vmatprep.subr.mxu0 0.0
        %2098 = vmatpush1.msra.mxu0 0.0
        %2099 = vmatprep.subr.mxu0 0.0
        %2100 = vmatpush1.msra.mxu0 0.0
        %2101 = vmatprep.subr.mxu0 0.0
        %2102 = vmatpush1.msra.mxu0 0.0
        %2103 = vmatprep.subr.mxu0 0.0
        %2104 = vmatpush1.msra.mxu0 0.0
        %2105 = vmatprep.subr.mxu0 0.0
        %2106 = vmatpush1.msra.mxu0 0.0
        %2107 = vmatprep.mubr.f32.mxu0 0.0
        %v2108 = vand.u32 %v1666, 4294901760
        %2109 = vmatmul.mubr.f32.gmra.mrb[0].mxu0 %v2108
        %v2110 = vpop.f32.mrb[0].mxu0
        %v2111 = vadd.f32 %v2039, %v2110
        %v2112 = vpop.f32.mrb[0].mxu0
        %2113 = vdwg.mxu0
        %v2115 = vsel %vm1664, %v1661, 0
        %2117 = vmatprep.subr.mxu0 0.0
        %v2118 = vand.u32 %v1660, 4294901760
        %2119 = vmatpush1.msra.mxu0 %v2118
        %2120 = vmatprep.subr.mxu0 0.0
        %2121 = vmatpush1.msra.mxu0 0.0
        %2122 = vmatprep.subr.mxu0 0.0
        %2123 = vmatpush1.msra.mxu0 0.0
        %2124 = vmatprep.subr.mxu0 0.0
        %2125 = vmatpush1.msra.mxu0 0.0
        %2126 = vmatprep.subr.mxu0 0.0
        %2127 = vmatpush1.msra.mxu0 0.0
        %2128 = vmatprep.subr.mxu0 0.0
        %2129 = vmatpush1.msra.mxu0 0.0
        %2130 = vmatprep.subr.mxu0 0.0
        %2131 = vmatpush1.msra.mxu0 0.0
        %2132 = vmatprep.subr.mxu0 0.0
        %2133 = vmatpush1.msra.mxu0 0.0
        %2134 = vmatprep.subr.mxu0 0.0
        %2135 = vmatpush1.msra.mxu0 0.0
        %2136 = vmatprep.subr.mxu0 0.0
        %2137 = vmatpush1.msra.mxu0 0.0
        %2138 = vmatprep.subr.mxu0 0.0
        %2139 = vmatpush1.msra.mxu0 0.0
        %2140 = vmatprep.subr.mxu0 0.0
        %2141 = vmatpush1.msra.mxu0 0.0
        %2142 = vmatprep.subr.mxu0 0.0
        %2143 = vmatpush1.msra.mxu0 0.0
        %2144 = vmatprep.subr.mxu0 0.0
        %2145 = vmatpush1.msra.mxu0 0.0
        %2146 = vmatprep.subr.mxu0 0.0
        %2147 = vmatpush1.msra.mxu0 0.0
        %2148 = vmatprep.subr.mxu0 0.0
        %2149 = vmatpush1.msra.mxu0 0.0
        %2150 = vmatprep.subr.mxu0 0.0
        %2151 = vmatpush1.msra.mxu0 0.0
        %2152 = vmatprep.subr.mxu0 0.0
        %2153 = vmatpush1.msra.mxu0 0.0
        %2154 = vmatprep.subr.mxu0 0.0
        %2155 = vmatpush1.msra.mxu0 0.0
        %2156 = vmatprep.subr.mxu0 0.0
        %2157 = vmatpush1.msra.mxu0 0.0
        %2158 = vmatprep.subr.mxu0 0.0
        %2159 = vmatpush1.msra.mxu0 0.0
        %2160 = vmatprep.subr.mxu0 0.0
        %2161 = vmatpush1.msra.mxu0 0.0
        %2162 = vmatprep.subr.mxu0 0.0
        %2163 = vmatpush1.msra.mxu0 0.0
        %2164 = vmatprep.subr.mxu0 0.0
        %2165 = vmatpush1.msra.mxu0 0.0
        %2166 = vmatprep.subr.mxu0 0.0
        %2167 = vmatpush1.msra.mxu0 0.0
        %2168 = vmatprep.subr.mxu0 0.0
        %2169 = vmatpush1.msra.mxu0 0.0
        %2170 = vmatprep.subr.mxu0 0.0
        %2171 = vmatpush1.msra.mxu0 0.0
        %2172 = vmatprep.subr.mxu0 0.0
        %2173 = vmatpush1.msra.mxu0 0.0
        %2174 = vmatprep.subr.mxu0 0.0
        %2175 = vmatpush1.msra.mxu0 0.0
        %2176 = vmatprep.subr.mxu0 0.0
        %2177 = vmatpush1.msra.mxu0 0.0
        %2178 = vmatprep.subr.mxu0 0.0
        %2179 = vmatpush1.msra.mxu0 0.0
        %2180 = vmatprep.subr.mxu0 0.0
        %2181 = vmatpush1.msra.mxu0 0.0
        %2182 = vmatprep.mubr.f32.mxu0 0.0
        %v2183 = vand.u32 %v2115, 4294901760
        %v2184 = vsub.f32 %v2115, %v2183
        %v2185 = vand.u32 %v2184, 4294901760
        %v2186 = vsub.f32 %v2184, %v2185
        %v2187 = vand.u32 %v2186, 4294901760
        %2188 = vmatmul.mubr.f32.gmra.mrb[0].mxu0 %v2187
        %v2189 = vpop.f32.mrb[0].mxu0
        %v2190 = vadd.f32 %v2111, %v2189
        %v2191 = vpop.f32.mrb[0].mxu0
        %2192 = vdwg.mxu0
        %2193 = vmatprep.subr.mxu0 0.0
        %v2194 = vand.u32 %v1660, 4294901760
        %v2195 = vsub.f32 %v1660, %v2194
        %v2196 = vand.u32 %v2195, 4294901760
        %v2197 = vsub.f32 %v2195, %v2196
        %v2198 = vand.u32 %v2197, 4294901760
        %2199 = vmatpush1.msra.mxu0 %v2198
        %2200 = vmatprep.subr.mxu0 0.0
        %2201 = vmatpush1.msra.mxu0 0.0
        %2202 = vmatprep.subr.mxu0 0.0
        %2203 = vmatpush1.msra.mxu0 0.0
        %2204 = vmatprep.subr.mxu0 0.0
        %2205 = vmatpush1.msra.mxu0 0.0
        %2206 = vmatprep.subr.mxu0 0.0
        %2207 = vmatpush1.msra.mxu0 0.0
        %2208 = vmatprep.subr.mxu0 0.0
        %2209 = vmatpush1.msra.mxu0 0.0
        %2210 = vmatprep.subr.mxu0 0.0
        %2211 = vmatpush1.msra.mxu0 0.0
        %2212 = vmatprep.subr.mxu0 0.0
        %2213 = vmatpush1.msra.mxu0 0.0
        %2214 = vmatprep.subr.mxu0 0.0
        %2215 = vmatpush1.msra.mxu0 0.0
        %2216 = vmatprep.subr.mxu0 0.0
        %2217 = vmatpush1.msra.mxu0 0.0
        %2218 = vmatprep.subr.mxu0 0.0
        %2219 = vmatpush1.msra.mxu0 0.0
        %2220 = vmatprep.subr.mxu0 0.0
        %2221 = vmatpush1.msra.mxu0 0.0
        %2222 = vmatprep.subr.mxu0 0.0
        %2223 = vmatpush1.msra.mxu0 0.0
        %2224 = vmatprep.subr.mxu0 0.0
        %2225 = vmatpush1.msra.mxu0 0.0
        %2226 = vmatprep.subr.mxu0 0.0
        %2227 = vmatpush1.msra.mxu0 0.0
        %2228 = vmatprep.subr.mxu0 0.0
        %2229 = vmatpush1.msra.mxu0 0.0
        %2230 = vmatprep.subr.mxu0 0.0
        %2231 = vmatpush1.msra.mxu0 0.0
        %2232 = vmatprep.subr.mxu0 0.0
        %2233 = vmatpush1.msra.mxu0 0.0
        %2234 = vmatprep.subr.mxu0 0.0
        %2235 = vmatpush1.msra.mxu0 0.0
        %2236 = vmatprep.subr.mxu0 0.0
        %2237 = vmatpush1.msra.mxu0 0.0
        %2238 = vmatprep.subr.mxu0 0.0
        %2239 = vmatpush1.msra.mxu0 0.0
        %2240 = vmatprep.subr.mxu0 0.0
        %2241 = vmatpush1.msra.mxu0 0.0
        %2242 = vmatprep.subr.mxu0 0.0
        %2243 = vmatpush1.msra.mxu0 0.0
        %2244 = vmatprep.subr.mxu0 0.0
        %2245 = vmatpush1.msra.mxu0 0.0
        %2246 = vmatprep.subr.mxu0 0.0
        %2247 = vmatpush1.msra.mxu0 0.0
        %2248 = vmatprep.subr.mxu0 0.0
        %2249 = vmatpush1.msra.mxu0 0.0
        %2250 = vmatprep.subr.mxu0 0.0
        %2251 = vmatpush1.msra.mxu0 0.0
        %2252 = vmatprep.subr.mxu0 0.0
        %2253 = vmatpush1.msra.mxu0 0.0
        %2254 = vmatprep.subr.mxu0 0.0
        %2255 = vmatpush1.msra.mxu0 0.0
        %2256 = vmatprep.subr.mxu0 0.0
        %2257 = vmatpush1.msra.mxu0 0.0
        %2258 = vmatprep.subr.mxu0 0.0
        %2259 = vmatpush1.msra.mxu0 0.0
        %2260 = vmatprep.subr.mxu0 0.0
        %2261 = vmatpush1.msra.mxu0 0.0
        %2262 = vmatprep.mubr.f32.mxu0 0.0
        %v2263 = vand.u32 %v2115, 4294901760
        %2264 = vmatmul.mubr.f32.gmra.mrb[0].mxu0 %v2263
        %v2265 = vpop.f32.mrb[0].mxu0
        %v2266 = vadd.f32 %v2190, %v2265
        %v2267 = vpop.f32.mrb[0].mxu0
        %2268 = vdwg.mxu0
        %2269 = vmatprep.subr.mxu0 0.0
        %v2270 = vand.u32 %v1660, 4294901760
        %v2271 = vsub.f32 %v1660, %v2270
        %2272 = vmatpush1.msra.mxu0 %v2271
        %2273 = vmatprep.subr.mxu0 0.0
        %2274 = vmatpush1.msra.mxu0 0.0
        %2275 = vmatprep.subr.mxu0 0.0
        %2276 = vmatpush1.msra.mxu0 0.0
        %2277 = vmatprep.subr.mxu0 0.0
        %2278 = vmatpush1.msra.mxu0 0.0
        %2279 = vmatprep.subr.mxu0 0.0
        %2280 = vmatpush1.msra.mxu0 0.0
        %2281 = vmatprep.subr.mxu0 0.0
        %2282 = vmatpush1.msra.mxu0 0.0
        %2283 = vmatprep.subr.mxu0 0.0
        %2284 = vmatpush1.msra.mxu0 0.0
        %2285 = vmatprep.subr.mxu0 0.0
        %2286 = vmatpush1.msra.mxu0 0.0
        %2287 = vmatprep.subr.mxu0 0.0
        %2288 = vmatpush1.msra.mxu0 0.0
        %2289 = vmatprep.subr.mxu0 0.0
        %2290 = vmatpush1.msra.mxu0 0.0
        %2291 = vmatprep.subr.mxu0 0.0
        %2292 = vmatpush1.msra.mxu0 0.0
        %2293 = vmatprep.subr.mxu0 0.0
        %2294 = vmatpush1.msra.mxu0 0.0
        %2295 = vmatprep.subr.mxu0 0.0
        %2296 = vmatpush1.msra.mxu0 0.0
        %2297 = vmatprep.subr.mxu0 0.0
        %2298 = vmatpush1.msra.mxu0 0.0
        %2299 = vmatprep.subr.mxu0 0.0
        %2300 = vmatpush1.msra.mxu0 0.0
        %2301 = vmatprep.subr.mxu0 0.0
        %2302 = vmatpush1.msra.mxu0 0.0
        %2303 = vmatprep.subr.mxu0 0.0
        %2304 = vmatpush1.msra.mxu0 0.0
        %2305 = vmatprep.subr.mxu0 0.0
        %2306 = vmatpush1.msra.mxu0 0.0
        %2307 = vmatprep.subr.mxu0 0.0
        %2308 = vmatpush1.msra.mxu0 0.0
        %2309 = vmatprep.subr.mxu0 0.0
        %2310 = vmatpush1.msra.mxu0 0.0
        %2311 = vmatprep.subr.mxu0 0.0
        %2312 = vmatpush1.msra.mxu0 0.0
        %2313 = vmatprep.subr.mxu0 0.0
        %2314 = vmatpush1.msra.mxu0 0.0
        %2315 = vmatprep.subr.mxu0 0.0
        %2316 = vmatpush1.msra.mxu0 0.0
        %2317 = vmatprep.subr.mxu0 0.0
        %2318 = vmatpush1.msra.mxu0 0.0
        %2319 = vmatprep.subr.mxu0 0.0
        %2320 = vmatpush1.msra.mxu0 0.0
        %2321 = vmatprep.subr.mxu0 0.0
        %2322 = vmatpush1.msra.mxu0 0.0
        %2323 = vmatprep.subr.mxu0 0.0
        %2324 = vmatpush1.msra.mxu0 0.0
        %2325 = vmatprep.subr.mxu0 0.0
        %2326 = vmatpush1.msra.mxu0 0.0
        %2327 = vmatprep.subr.mxu0 0.0
        %2328 = vmatpush1.msra.mxu0 0.0
        %2329 = vmatprep.subr.mxu0 0.0
        %2330 = vmatpush1.msra.mxu0 0.0
        %2331 = vmatprep.subr.mxu0 0.0
        %2332 = vmatpush1.msra.mxu0 0.0
        %2333 = vmatprep.subr.mxu0 0.0
        %2334 = vmatpush1.msra.mxu0 0.0
        %2335 = vmatprep.mubr.f32.mxu0 0.0
        %v2336 = vand.u32 %v2115, 4294901760
        %v2337 = vsub.f32 %v2115, %v2336
        %2338 = vmatmul.mubr.f32.gmra.mrb[0].mxu0 %v2337
        %v2339 = vpop.f32.mrb[0].mxu0
        %v2340 = vadd.f32 %v2266, %v2339
        %v2341 = vpop.f32.mrb[0].mxu0
        %2342 = vdwg.mxu0
        %2343 = vmatprep.subr.mxu0 0.0
        %v2344 = vand.u32 %v1660, 4294901760
        %2345 = vmatpush1.msra.mxu0 %v2344
        %2346 = vmatprep.subr.mxu0 0.0
        %2347 = vmatpush1.msra.mxu0 0.0
        %2348 = vmatprep.subr.mxu0 0.0
        %2349 = vmatpush1.msra.mxu0 0.0
        %2350 = vmatprep.subr.mxu0 0.0
        %2351 = vmatpush1.msra.mxu0 0.0
        %2352 = vmatprep.subr.mxu0 0.0
        %2353 = vmatpush1.msra.mxu0 0.0
        %2354 = vmatprep.subr.mxu0 0.0
        %2355 = vmatpush1.msra.mxu0 0.0
        %2356 = vmatprep.subr.mxu0 0.0
        %2357 = vmatpush1.msra.mxu0 0.0
        %2358 = vmatprep.subr.mxu0 0.0
        %2359 = vmatpush1.msra.mxu0 0.0
        %2360 = vmatprep.subr.mxu0 0.0
        %2361 = vmatpush1.msra.mxu0 0.0
        %2362 = vmatprep.subr.mxu0 0.0
        %2363 = vmatpush1.msra.mxu0 0.0
        %2364 = vmatprep.subr.mxu0 0.0
        %2365 = vmatpush1.msra.mxu0 0.0
        %2366 = vmatprep.subr.mxu0 0.0
        %2367 = vmatpush1.msra.mxu0 0.0
        %2368 = vmatprep.subr.mxu0 0.0
        %2369 = vmatpush1.msra.mxu0 0.0
        %2370 = vmatprep.subr.mxu0 0.0
        %2371 = vmatpush1.msra.mxu0 0.0
        %2372 = vmatprep.subr.mxu0 0.0
        %2373 = vmatpush1.msra.mxu0 0.0
        %2374 = vmatprep.subr.mxu0 0.0
        %2375 = vmatpush1.msra.mxu0 0.0
        %2376 = vmatprep.subr.mxu0 0.0
        %2377 = vmatpush1.msra.mxu0 0.0
        %2378 = vmatprep.subr.mxu0 0.0
        %2379 = vmatpush1.msra.mxu0 0.0
        %2380 = vmatprep.subr.mxu0 0.0
        %2381 = vmatpush1.msra.mxu0 0.0
        %2382 = vmatprep.subr.mxu0 0.0
        %2383 = vmatpush1.msra.mxu0 0.0
        %2384 = vmatprep.subr.mxu0 0.0
        %2385 = vmatpush1.msra.mxu0 0.0
        %2386 = vmatprep.subr.mxu0 0.0
        %2387 = vmatpush1.msra.mxu0 0.0
        %2388 = vmatprep.subr.mxu0 0.0
        %2389 = vmatpush1.msra.mxu0 0.0
        %2390 = vmatprep.subr.mxu0 0.0
        %2391 = vmatpush1.msra.mxu0 0.0
        %2392 = vmatprep.subr.mxu0 0.0
        %2393 = vmatpush1.msra.mxu0 0.0
        %2394 = vmatprep.subr.mxu0 0.0
        %2395 = vmatpush1.msra.mxu0 0.0
        %2396 = vmatprep.subr.mxu0 0.0
        %2397 = vmatpush1.msra.mxu0 0.0
        %2398 = vmatprep.subr.mxu0 0.0
        %2399 = vmatpush1.msra.mxu0 0.0
        %2400 = vmatprep.subr.mxu0 0.0
        %2401 = vmatpush1.msra.mxu0 0.0
        %2402 = vmatprep.subr.mxu0 0.0
        %2403 = vmatpush1.msra.mxu0 0.0
        %2404 = vmatprep.subr.mxu0 0.0
        %2405 = vmatpush1.msra.mxu0 0.0
        %2406 = vmatprep.subr.mxu0 0.0
        %2407 = vmatpush1.msra.mxu0 0.0
        %2408 = vmatprep.mubr.f32.mxu0 0.0
        %v2409 = vand.u32 %v2115, 4294901760
        %v2410 = vsub.f32 %v2115, %v2409
        %v2411 = vand.u32 %v2410, 4294901760
        %2412 = vmatmul.mubr.f32.gmra.mrb[0].mxu0 %v2411
        %v2413 = vpop.f32.mrb[0].mxu0
        %v2414 = vadd.f32 %v2340, %v2413
        %v2415 = vpop.f32.mrb[0].mxu0
        %2416 = vdwg.mxu0
        %2417 = vmatprep.subr.mxu0 0.0
        %v2418 = vand.u32 %v1660, 4294901760
        %v2419 = vsub.f32 %v1660, %v2418
        %v2420 = vand.u32 %v2419, 4294901760
        %2421 = vmatpush1.msra.mxu0 %v2420
        %2422 = vmatprep.subr.mxu0 0.0
        %2423 = vmatpush1.msra.mxu0 0.0
        %2424 = vmatprep.subr.mxu0 0.0
        %2425 = vmatpush1.msra.mxu0 0.0
        %2426 = vmatprep.subr.mxu0 0.0
        %2427 = vmatpush1.msra.mxu0 0.0
        %2428 = vmatprep.subr.mxu0 0.0
        %2429 = vmatpush1.msra.mxu0 0.0
        %2430 = vmatprep.subr.mxu0 0.0
        %2431 = vmatpush1.msra.mxu0 0.0
        %2432 = vmatprep.subr.mxu0 0.0
        %2433 = vmatpush1.msra.mxu0 0.0
        %2434 = vmatprep.subr.mxu0 0.0
        %2435 = vmatpush1.msra.mxu0 0.0
        %2436 = vmatprep.subr.mxu0 0.0
        %2437 = vmatpush1.msra.mxu0 0.0
        %2438 = vmatprep.subr.mxu0 0.0
        %2439 = vmatpush1.msra.mxu0 0.0
        %2440 = vmatprep.subr.mxu0 0.0
        %2441 = vmatpush1.msra.mxu0 0.0
        %2442 = vmatprep.subr.mxu0 0.0
        %2443 = vmatpush1.msra.mxu0 0.0
        %2444 = vmatprep.subr.mxu0 0.0
        %2445 = vmatpush1.msra.mxu0 0.0
        %2446 = vmatprep.subr.mxu0 0.0
        %2447 = vmatpush1.msra.mxu0 0.0
        %2448 = vmatprep.subr.mxu0 0.0
        %2449 = vmatpush1.msra.mxu0 0.0
        %2450 = vmatprep.subr.mxu0 0.0
        %2451 = vmatpush1.msra.mxu0 0.0
        %2452 = vmatprep.subr.mxu0 0.0
        %2453 = vmatpush1.msra.mxu0 0.0
        %2454 = vmatprep.subr.mxu0 0.0
        %2455 = vmatpush1.msra.mxu0 0.0
        %2456 = vmatprep.subr.mxu0 0.0
        %2457 = vmatpush1.msra.mxu0 0.0
        %2458 = vmatprep.subr.mxu0 0.0
        %2459 = vmatpush1.msra.mxu0 0.0
        %2460 = vmatprep.subr.mxu0 0.0
        %2461 = vmatpush1.msra.mxu0 0.0
        %2462 = vmatprep.subr.mxu0 0.0
        %2463 = vmatpush1.msra.mxu0 0.0
        %2464 = vmatprep.subr.mxu0 0.0
        %2465 = vmatpush1.msra.mxu0 0.0
        %2466 = vmatprep.subr.mxu0 0.0
        %2467 = vmatpush1.msra.mxu0 0.0
        %2468 = vmatprep.subr.mxu0 0.0
        %2469 = vmatpush1.msra.mxu0 0.0
        %2470 = vmatprep.subr.mxu0 0.0
        %2471 = vmatpush1.msra.mxu0 0.0
        %2472 = vmatprep.subr.mxu0 0.0
        %2473 = vmatpush1.msra.mxu0 0.0
        %2474 = vmatprep.subr.mxu0 0.0
        %2475 = vmatpush1.msra.mxu0 0.0
        %2476 = vmatprep.subr.mxu0 0.0
        %2477 = vmatpush1.msra.mxu0 0.0
        %2478 = vmatprep.subr.mxu0 0.0
        %2479 = vmatpush1.msra.mxu0 0.0
        %2480 = vmatprep.subr.mxu0 0.0
        %2481 = vmatpush1.msra.mxu0 0.0
        %2482 = vmatprep.subr.mxu0 0.0
        %2483 = vmatpush1.msra.mxu0 0.0
        %2484 = vmatprep.mubr.f32.mxu0 0.0
        %v2485 = vand.u32 %v2115, 4294901760
        %2486 = vmatmul.mubr.f32.gmra.mrb[0].mxu0 %v2485
        %v2487 = vpop.f32.mrb[0].mxu0
        %v2488 = vadd.f32 %v2414, %v2487
        %v2489 = vpop.f32.mrb[0].mxu0
        %2490 = vdwg.mxu0
        %2491 = vmatprep.subr.mxu0 0.0
        %v2492 = vand.u32 %v1660, 4294901760
        %2493 = vmatpush1.msra.mxu0 %v2492
        %2494 = vmatprep.subr.mxu0 0.0
        %2495 = vmatpush1.msra.mxu0 0.0
        %2496 = vmatprep.subr.mxu0 0.0
        %2497 = vmatpush1.msra.mxu0 0.0
        %2498 = vmatprep.subr.mxu0 0.0
        %2499 = vmatpush1.msra.mxu0 0.0
        %2500 = vmatprep.subr.mxu0 0.0
        %2501 = vmatpush1.msra.mxu0 0.0
        %2502 = vmatprep.subr.mxu0 0.0
        %2503 = vmatpush1.msra.mxu0 0.0
        %2504 = vmatprep.subr.mxu0 0.0
        %2505 = vmatpush1.msra.mxu0 0.0
        %2506 = vmatprep.subr.mxu0 0.0
        %2507 = vmatpush1.msra.mxu0 0.0
        %2508 = vmatprep.subr.mxu0 0.0
        %2509 = vmatpush1.msra.mxu0 0.0
        %2510 = vmatprep.subr.mxu0 0.0
        %2511 = vmatpush1.msra.mxu0 0.0
        %2512 = vmatprep.subr.mxu0 0.0
        %2513 = vmatpush1.msra.mxu0 0.0
        %2514 = vmatprep.subr.mxu0 0.0
        %2515 = vmatpush1.msra.mxu0 0.0
        %2516 = vmatprep.subr.mxu0 0.0
        %2517 = vmatpush1.msra.mxu0 0.0
        %2518 = vmatprep.subr.mxu0 0.0
        %2519 = vmatpush1.msra.mxu0 0.0
        %2520 = vmatprep.subr.mxu0 0.0
        %2521 = vmatpush1.msra.mxu0 0.0
        %2522 = vmatprep.subr.mxu0 0.0
        %2523 = vmatpush1.msra.mxu0 0.0
        %2524 = vmatprep.subr.mxu0 0.0
        %2525 = vmatpush1.msra.mxu0 0.0
        %2526 = vmatprep.subr.mxu0 0.0
        %2527 = vmatpush1.msra.mxu0 0.0
        %2528 = vmatprep.subr.mxu0 0.0
        %2529 = vmatpush1.msra.mxu0 0.0
        %2530 = vmatprep.subr.mxu0 0.0
        %2531 = vmatpush1.msra.mxu0 0.0
        %2532 = vmatprep.subr.mxu0 0.0
        %2533 = vmatpush1.msra.mxu0 0.0
        %2534 = vmatprep.subr.mxu0 0.0
        %2535 = vmatpush1.msra.mxu0 0.0
        %2536 = vmatprep.subr.mxu0 0.0
        %2537 = vmatpush1.msra.mxu0 0.0
        %2538 = vmatprep.subr.mxu0 0.0
        %2539 = vmatpush1.msra.mxu0 0.0
        %2540 = vmatprep.subr.mxu0 0.0
        %2541 = vmatpush1.msra.mxu0 0.0
        %2542 = vmatprep.subr.mxu0 0.0
        %2543 = vmatpush1.msra.mxu0 0.0
        %2544 = vmatprep.subr.mxu0 0.0
        %2545 = vmatpush1.msra.mxu0 0.0
        %2546 = vmatprep.subr.mxu0 0.0
        %2547 = vmatpush1.msra.mxu0 0.0
        %2548 = vmatprep.subr.mxu0 0.0
        %2549 = vmatpush1.msra.mxu0 0.0
        %2550 = vmatprep.subr.mxu0 0.0
        %2551 = vmatpush1.msra.mxu0 0.0
        %2552 = vmatprep.subr.mxu0 0.0
        %2553 = vmatpush1.msra.mxu0 0.0
        %2554 = vmatprep.subr.mxu0 0.0
        %2555 = vmatpush1.msra.mxu0 0.0
        %2556 = vmatprep.mubr.f32.mxu0 0.0
        %v2557 = vand.u32 %v2115, 4294901760
        %2558 = vmatmul.mubr.f32.gmra.mrb[0].mxu0 %v2557
        %v2559 = vpop.f32.mrb[0].mxu0
        %v2560 = vadd.f32 %v2488, %v2559
        %v2561 = vpop.f32.mrb[0].mxu0
        %2562 = vdwg.mxu0
        %2563 = vrot.lane.b32.xlu0 %v1657, 127
        %v2564 = vpop.permute.xlu0 %2563
        %v2565 = vsel %vm1186, %v2564, 0.0
        %s2566 = scalar_lea.vmem %s4, 8
        %v2567 = vld [vmem:[%s2566] sm:$0xf]
        %v2569 = vsel %vm1664, %v2567, 0
        %2571 = vmatprep.subr.mxu0 0.0
        %v2572 = vand.u32 %v2565, 4294901760
        %2573 = vmatpush1.msra.mxu0 %v2572
        %2574 = vmatprep.subr.mxu0 0.0
        %2575 = vmatpush1.msra.mxu0 0.0
        %2576 = vmatprep.subr.mxu0 0.0
        %2577 = vmatpush1.msra.mxu0 0.0
        %2578 = vmatprep.subr.mxu0 0.0
        %2579 = vmatpush1.msra.mxu0 0.0
        %2580 = vmatprep.subr.mxu0 0.0
        %2581 = vmatpush1.msra.mxu0 0.0
        %2582 = vmatprep.subr.mxu0 0.0
        %2583 = vmatpush1.msra.mxu0 0.0
        %2584 = vmatprep.subr.mxu0 0.0
        %2585 = vmatpush1.msra.mxu0 0.0
        %2586 = vmatprep.subr.mxu0 0.0
        %2587 = vmatpush1.msra.mxu0 0.0
        %2588 = vmatprep.subr.mxu0 0.0
        %2589 = vmatpush1.msra.mxu0 0.0
        %2590 = vmatprep.subr.mxu0 0.0
        %2591 = vmatpush1.msra.mxu0 0.0
        %2592 = vmatprep.subr.mxu0 0.0
        %2593 = vmatpush1.msra.mxu0 0.0
        %2594 = vmatprep.subr.mxu0 0.0
        %2595 = vmatpush1.msra.mxu0 0.0
        %2596 = vmatprep.subr.mxu0 0.0
        %2597 = vmatpush1.msra.mxu0 0.0
        %2598 = vmatprep.subr.mxu0 0.0
        %2599 = vmatpush1.msra.mxu0 0.0
        %2600 = vmatprep.subr.mxu0 0.0
        %2601 = vmatpush1.msra.mxu0 0.0
        %2602 = vmatprep.subr.mxu0 0.0
        %2603 = vmatpush1.msra.mxu0 0.0
        %2604 = vmatprep.subr.mxu0 0.0
        %2605 = vmatpush1.msra.mxu0 0.0
        %2606 = vmatprep.subr.mxu0 0.0
        %2607 = vmatpush1.msra.mxu0 0.0
        %2608 = vmatprep.subr.mxu0 0.0
        %2609 = vmatpush1.msra.mxu0 0.0
        %2610 = vmatprep.subr.mxu0 0.0
        %2611 = vmatpush1.msra.mxu0 0.0
        %2612 = vmatprep.subr.mxu0 0.0
        %2613 = vmatpush1.msra.mxu0 0.0
        %2614 = vmatprep.subr.mxu0 0.0
        %2615 = vmatpush1.msra.mxu0 0.0
        %2616 = vmatprep.subr.mxu0 0.0
        %2617 = vmatpush1.msra.mxu0 0.0
        %2618 = vmatprep.subr.mxu0 0.0
        %2619 = vmatpush1.msra.mxu0 0.0
        %2620 = vmatprep.subr.mxu0 0.0
        %2621 = vmatpush1.msra.mxu0 0.0
        %2622 = vmatprep.subr.mxu0 0.0
        %2623 = vmatpush1.msra.mxu0 0.0
        %2624 = vmatprep.subr.mxu0 0.0
        %2625 = vmatpush1.msra.mxu0 0.0
        %2626 = vmatprep.subr.mxu0 0.0
        %2627 = vmatpush1.msra.mxu0 0.0
        %2628 = vmatprep.subr.mxu0 0.0
        %2629 = vmatpush1.msra.mxu0 0.0
        %2630 = vmatprep.subr.mxu0 0.0
        %2631 = vmatpush1.msra.mxu0 0.0
        %2632 = vmatprep.subr.mxu0 0.0
        %2633 = vmatpush1.msra.mxu0 0.0
        %2634 = vmatprep.subr.mxu0 0.0
        %2635 = vmatpush1.msra.mxu0 0.0
        %2636 = vmatprep.mubr.f32.mxu0 0.0
        %v2637 = vand.u32 %v2569, 4294901760
        %v2638 = vsub.f32 %v2569, %v2637
        %v2639 = vand.u32 %v2638, 4294901760
        %v2640 = vsub.f32 %v2638, %v2639
        %v2641 = vand.u32 %v2640, 4294901760
        %2642 = vmatmul.mubr.f32.gmra.mrb[0].mxu0 %v2641
        %v2643 = vpop.f32.mrb[0].mxu0
        %v2644 = vadd.f32 0.0, %v2643
        %v2645 = vpop.f32.mrb[0].mxu0
        %2646 = vdwg.mxu0
        %2647 = vmatprep.subr.mxu0 0.0
        %v2648 = vand.u32 %v2565, 4294901760
        %v2649 = vsub.f32 %v2565, %v2648
        %v2650 = vand.u32 %v2649, 4294901760
        %v2651 = vsub.f32 %v2649, %v2650
        %v2652 = vand.u32 %v2651, 4294901760
        %2653 = vmatpush1.msra.mxu0 %v2652
        %2654 = vmatprep.subr.mxu0 0.0
        %2655 = vmatpush1.msra.mxu0 0.0
        %2656 = vmatprep.subr.mxu0 0.0
        %2657 = vmatpush1.msra.mxu0 0.0
        %2658 = vmatprep.subr.mxu0 0.0
        %2659 = vmatpush1.msra.mxu0 0.0
        %2660 = vmatprep.subr.mxu0 0.0
        %2661 = vmatpush1.msra.mxu0 0.0
        %2662 = vmatprep.subr.mxu0 0.0
        %2663 = vmatpush1.msra.mxu0 0.0
        %2664 = vmatprep.subr.mxu0 0.0
        %2665 = vmatpush1.msra.mxu0 0.0
        %2666 = vmatprep.subr.mxu0 0.0
        %2667 = vmatpush1.msra.mxu0 0.0
        %2668 = vmatprep.subr.mxu0 0.0
        %2669 = vmatpush1.msra.mxu0 0.0
        %2670 = vmatprep.subr.mxu0 0.0
        %2671 = vmatpush1.msra.mxu0 0.0
        %2672 = vmatprep.subr.mxu0 0.0
        %2673 = vmatpush1.msra.mxu0 0.0
        %2674 = vmatprep.subr.mxu0 0.0
        %2675 = vmatpush1.msra.mxu0 0.0
        %2676 = vmatprep.subr.mxu0 0.0
        %2677 = vmatpush1.msra.mxu0 0.0
        %2678 = vmatprep.subr.mxu0 0.0
        %2679 = vmatpush1.msra.mxu0 0.0
        %2680 = vmatprep.subr.mxu0 0.0
        %2681 = vmatpush1.msra.mxu0 0.0
        %2682 = vmatprep.subr.mxu0 0.0
        %2683 = vmatpush1.msra.mxu0 0.0
        %2684 = vmatprep.subr.mxu0 0.0
        %2685 = vmatpush1.msra.mxu0 0.0
        %2686 = vmatprep.subr.mxu0 0.0
        %2687 = vmatpush1.msra.mxu0 0.0
        %2688 = vmatprep.subr.mxu0 0.0
        %2689 = vmatpush1.msra.mxu0 0.0
        %2690 = vmatprep.subr.mxu0 0.0
        %2691 = vmatpush1.msra.mxu0 0.0
        %2692 = vmatprep.subr.mxu0 0.0
        %2693 = vmatpush1.msra.mxu0 0.0
        %2694 = vmatprep.subr.mxu0 0.0
        %2695 = vmatpush1.msra.mxu0 0.0
        %2696 = vmatprep.subr.mxu0 0.0
        %2697 = vmatpush1.msra.mxu0 0.0
        %2698 = vmatprep.subr.mxu0 0.0
        %2699 = vmatpush1.msra.mxu0 0.0
        %2700 = vmatprep.subr.mxu0 0.0
        %2701 = vmatpush1.msra.mxu0 0.0
        %2702 = vmatprep.subr.mxu0 0.0
        %2703 = vmatpush1.msra.mxu0 0.0
        %2704 = vmatprep.subr.mxu0 0.0
        %2705 = vmatpush1.msra.mxu0 0.0
        %2706 = vmatprep.subr.mxu0 0.0
        %2707 = vmatpush1.msra.mxu0 0.0
        %2708 = vmatprep.subr.mxu0 0.0
        %2709 = vmatpush1.msra.mxu0 0.0
        %2710 = vmatprep.subr.mxu0 0.0
        %2711 = vmatpush1.msra.mxu0 0.0
        %2712 = vmatprep.subr.mxu0 0.0
        %2713 = vmatpush1.msra.mxu0 0.0
        %2714 = vmatprep.subr.mxu0 0.0
        %2715 = vmatpush1.msra.mxu0 0.0
        %2716 = vmatprep.mubr.f32.mxu0 0.0
        %v2717 = vand.u32 %v2569, 4294901760
        %2718 = vmatmul.mubr.f32.gmra.mrb[0].mxu0 %v2717
        %v2719 = vpop.f32.mrb[0].mxu0
        %v2720 = vadd.f32 %v2644, %v2719
        %v2721 = vpop.f32.mrb[0].mxu0
        %2722 = vdwg.mxu0
        %2723 = vmatprep.subr.mxu0 0.0
        %v2724 = vand.u32 %v2565, 4294901760
        %v2725 = vsub.f32 %v2565, %v2724
        %2726 = vmatpush1.msra.mxu0 %v2725
        %2727 = vmatprep.subr.mxu0 0.0
        %2728 = vmatpush1.msra.mxu0 0.0
        %2729 = vmatprep.subr.mxu0 0.0
        %2730 = vmatpush1.msra.mxu0 0.0
        %2731 = vmatprep.subr.mxu0 0.0
        %2732 = vmatpush1.msra.mxu0 0.0
        %2733 = vmatprep.subr.mxu0 0.0
        %2734 = vmatpush1.msra.mxu0 0.0
        %2735 = vmatprep.subr.mxu0 0.0
        %2736 = vmatpush1.msra.mxu0 0.0
        %2737 = vmatprep.subr.mxu0 0.0
        %2738 = vmatpush1.msra.mxu0 0.0
        %2739 = vmatprep.subr.mxu0 0.0
        %2740 = vmatpush1.msra.mxu0 0.0
        %2741 = vmatprep.subr.mxu0 0.0
        %2742 = vmatpush1.msra.mxu0 0.0
        %2743 = vmatprep.subr.mxu0 0.0
        %2744 = vmatpush1.msra.mxu0 0.0
        %2745 = vmatprep.subr.mxu0 0.0
        %2746 = vmatpush1.msra.mxu0 0.0
        %2747 = vmatprep.subr.mxu0 0.0
        %2748 = vmatpush1.msra.mxu0 0.0
        %2749 = vmatprep.subr.mxu0 0.0
        %2750 = vmatpush1.msra.mxu0 0.0
        %2751 = vmatprep.subr.mxu0 0.0
        %2752 = vmatpush1.msra.mxu0 0.0
        %2753 = vmatprep.subr.mxu0 0.0
        %2754 = vmatpush1.msra.mxu0 0.0
        %2755 = vmatprep.subr.mxu0 0.0
        %2756 = vmatpush1.msra.mxu0 0.0
        %2757 = vmatprep.subr.mxu0 0.0
        %2758 = vmatpush1.msra.mxu0 0.0
        %2759 = vmatprep.subr.mxu0 0.0
        %2760 = vmatpush1.msra.mxu0 0.0
        %2761 = vmatprep.subr.mxu0 0.0
        %2762 = vmatpush1.msra.mxu0 0.0
        %2763 = vmatprep.subr.mxu0 0.0
        %2764 = vmatpush1.msra.mxu0 0.0
        %2765 = vmatprep.subr.mxu0 0.0
        %2766 = vmatpush1.msra.mxu0 0.0
        %2767 = vmatprep.subr.mxu0 0.0
        %2768 = vmatpush1.msra.mxu0 0.0
        %2769 = vmatprep.subr.mxu0 0.0
        %2770 = vmatpush1.msra.mxu0 0.0
        %2771 = vmatprep.subr.mxu0 0.0
        %2772 = vmatpush1.msra.mxu0 0.0
        %2773 = vmatprep.subr.mxu0 0.0
        %2774 = vmatpush1.msra.mxu0 0.0
        %2775 = vmatprep.subr.mxu0 0.0
        %2776 = vmatpush1.msra.mxu0 0.0
        %2777 = vmatprep.subr.mxu0 0.0
        %2778 = vmatpush1.msra.mxu0 0.0
        %2779 = vmatprep.subr.mxu0 0.0
        %2780 = vmatpush1.msra.mxu0 0.0
        %2781 = vmatprep.subr.mxu0 0.0
        %2782 = vmatpush1.msra.mxu0 0.0
        %2783 = vmatprep.subr.mxu0 0.0
        %2784 = vmatpush1.msra.mxu0 0.0
        %2785 = vmatprep.subr.mxu0 0.0
        %2786 = vmatpush1.msra.mxu0 0.0
        %2787 = vmatprep.subr.mxu0 0.0
        %2788 = vmatpush1.msra.mxu0 0.0
        %2789 = vmatprep.mubr.f32.mxu0 0.0
        %v2790 = vand.u32 %v2569, 4294901760
        %v2791 = vsub.f32 %v2569, %v2790
        %2792 = vmatmul.mubr.f32.gmra.mrb[0].mxu0 %v2791
        %v2793 = vpop.f32.mrb[0].mxu0
        %v2794 = vadd.f32 %v2720, %v2793
        %v2795 = vpop.f32.mrb[0].mxu0
        %2796 = vdwg.mxu0
        %2797 = vmatprep.subr.mxu0 0.0
        %v2798 = vand.u32 %v2565, 4294901760
        %2799 = vmatpush1.msra.mxu0 %v2798
        %2800 = vmatprep.subr.mxu0 0.0
        %2801 = vmatpush1.msra.mxu0 0.0
        %2802 = vmatprep.subr.mxu0 0.0
        %2803 = vmatpush1.msra.mxu0 0.0
        %2804 = vmatprep.subr.mxu0 0.0
        %2805 = vmatpush1.msra.mxu0 0.0
        %2806 = vmatprep.subr.mxu0 0.0
        %2807 = vmatpush1.msra.mxu0 0.0
        %2808 = vmatprep.subr.mxu0 0.0
        %2809 = vmatpush1.msra.mxu0 0.0
        %2810 = vmatprep.subr.mxu0 0.0
        %2811 = vmatpush1.msra.mxu0 0.0
        %2812 = vmatprep.subr.mxu0 0.0
        %2813 = vmatpush1.msra.mxu0 0.0
        %2814 = vmatprep.subr.mxu0 0.0
        %2815 = vmatpush1.msra.mxu0 0.0
        %2816 = vmatprep.subr.mxu0 0.0
        %2817 = vmatpush1.msra.mxu0 0.0
        %2818 = vmatprep.subr.mxu0 0.0
        %2819 = vmatpush1.msra.mxu0 0.0
        %2820 = vmatprep.subr.mxu0 0.0
        %2821 = vmatpush1.msra.mxu0 0.0
        %2822 = vmatprep.subr.mxu0 0.0
        %2823 = vmatpush1.msra.mxu0 0.0
        %2824 = vmatprep.subr.mxu0 0.0
        %2825 = vmatpush1.msra.mxu0 0.0
        %2826 = vmatprep.subr.mxu0 0.0
        %2827 = vmatpush1.msra.mxu0 0.0
        %2828 = vmatprep.subr.mxu0 0.0
        %2829 = vmatpush1.msra.mxu0 0.0
        %2830 = vmatprep.subr.mxu0 0.0
        %2831 = vmatpush1.msra.mxu0 0.0
        %2832 = vmatprep.subr.mxu0 0.0
        %2833 = vmatpush1.msra.mxu0 0.0
        %2834 = vmatprep.subr.mxu0 0.0
        %2835 = vmatpush1.msra.mxu0 0.0
        %2836 = vmatprep.subr.mxu0 0.0
        %2837 = vmatpush1.msra.mxu0 0.0
        %2838 = vmatprep.subr.mxu0 0.0
        %2839 = vmatpush1.msra.mxu0 0.0
        %2840 = vmatprep.subr.mxu0 0.0
        %2841 = vmatpush1.msra.mxu0 0.0
        %2842 = vmatprep.subr.mxu0 0.0
        %2843 = vmatpush1.msra.mxu0 0.0
        %2844 = vmatprep.subr.mxu0 0.0
        %2845 = vmatpush1.msra.mxu0 0.0
        %2846 = vmatprep.subr.mxu0 0.0
        %2847 = vmatpush1.msra.mxu0 0.0
        %2848 = vmatprep.subr.mxu0 0.0
        %2849 = vmatpush1.msra.mxu0 0.0
        %2850 = vmatprep.subr.mxu0 0.0
        %2851 = vmatpush1.msra.mxu0 0.0
        %2852 = vmatprep.subr.mxu0 0.0
        %2853 = vmatpush1.msra.mxu0 0.0
        %2854 = vmatprep.subr.mxu0 0.0
        %2855 = vmatpush1.msra.mxu0 0.0
        %2856 = vmatprep.subr.mxu0 0.0
        %2857 = vmatpush1.msra.mxu0 0.0
        %2858 = vmatprep.subr.mxu0 0.0
        %2859 = vmatpush1.msra.mxu0 0.0
        %2860 = vmatprep.subr.mxu0 0.0
        %2861 = vmatpush1.msra.mxu0 0.0
        %2862 = vmatprep.mubr.f32.mxu0 0.0
        %v2863 = vand.u32 %v2569, 4294901760
        %v2864 = vsub.f32 %v2569, %v2863
        %v2865 = vand.u32 %v2864, 4294901760
        %2866 = vmatmul.mubr.f32.gmra.mrb[0].mxu0 %v2865
        %v2867 = vpop.f32.mrb[0].mxu0
        %v2868 = vadd.f32 %v2794, %v2867
        %v2869 = vpop.f32.mrb[0].mxu0
        %2870 = vdwg.mxu0
        %2871 = vmatprep.subr.mxu0 0.0
        %v2872 = vand.u32 %v2565, 4294901760
        %v2873 = vsub.f32 %v2565, %v2872
        %v2874 = vand.u32 %v2873, 4294901760
        %2875 = vmatpush1.msra.mxu0 %v2874
        %2876 = vmatprep.subr.mxu0 0.0
        %2877 = vmatpush1.msra.mxu0 0.0
        %2878 = vmatprep.subr.mxu0 0.0
        %2879 = vmatpush1.msra.mxu0 0.0
        %2880 = vmatprep.subr.mxu0 0.0
        %2881 = vmatpush1.msra.mxu0 0.0
        %2882 = vmatprep.subr.mxu0 0.0
        %2883 = vmatpush1.msra.mxu0 0.0
        %2884 = vmatprep.subr.mxu0 0.0
        %2885 = vmatpush1.msra.mxu0 0.0
        %2886 = vmatprep.subr.mxu0 0.0
        %2887 = vmatpush1.msra.mxu0 0.0
        %2888 = vmatprep.subr.mxu0 0.0
        %2889 = vmatpush1.msra.mxu0 0.0
        %2890 = vmatprep.subr.mxu0 0.0
        %2891 = vmatpush1.msra.mxu0 0.0
        %2892 = vmatprep.subr.mxu0 0.0
        %2893 = vmatpush1.msra.mxu0 0.0
        %2894 = vmatprep.subr.mxu0 0.0
        %2895 = vmatpush1.msra.mxu0 0.0
        %2896 = vmatprep.subr.mxu0 0.0
        %2897 = vmatpush1.msra.mxu0 0.0
        %2898 = vmatprep.subr.mxu0 0.0
        %2899 = vmatpush1.msra.mxu0 0.0
        %2900 = vmatprep.subr.mxu0 0.0
        %2901 = vmatpush1.msra.mxu0 0.0
        %2902 = vmatprep.subr.mxu0 0.0
        %2903 = vmatpush1.msra.mxu0 0.0
        %2904 = vmatprep.subr.mxu0 0.0
        %2905 = vmatpush1.msra.mxu0 0.0
        %2906 = vmatprep.subr.mxu0 0.0
        %2907 = vmatpush1.msra.mxu0 0.0
        %2908 = vmatprep.subr.mxu0 0.0
        %2909 = vmatpush1.msra.mxu0 0.0
        %2910 = vmatprep.subr.mxu0 0.0
        %2911 = vmatpush1.msra.mxu0 0.0
        %2912 = vmatprep.subr.mxu0 0.0
        %2913 = vmatpush1.msra.mxu0 0.0
        %2914 = vmatprep.subr.mxu0 0.0
        %2915 = vmatpush1.msra.mxu0 0.0
        %2916 = vmatprep.subr.mxu0 0.0
        %2917 = vmatpush1.msra.mxu0 0.0
        %2918 = vmatprep.subr.mxu0 0.0
        %2919 = vmatpush1.msra.mxu0 0.0
        %2920 = vmatprep.subr.mxu0 0.0
        %2921 = vmatpush1.msra.mxu0 0.0
        %2922 = vmatprep.subr.mxu0 0.0
        %2923 = vmatpush1.msra.mxu0 0.0
        %2924 = vmatprep.subr.mxu0 0.0
        %2925 = vmatpush1.msra.mxu0 0.0
        %2926 = vmatprep.subr.mxu0 0.0
        %2927 = vmatpush1.msra.mxu0 0.0
        %2928 = vmatprep.subr.mxu0 0.0
        %2929 = vmatpush1.msra.mxu0 0.0
        %2930 = vmatprep.subr.mxu0 0.0
        %2931 = vmatpush1.msra.mxu0 0.0
        %2932 = vmatprep.subr.mxu0 0.0
        %2933 = vmatpush1.msra.mxu0 0.0
        %2934 = vmatprep.subr.mxu0 0.0
        %2935 = vmatpush1.msra.mxu0 0.0
        %2936 = vmatprep.subr.mxu0 0.0
        %2937 = vmatpush1.msra.mxu0 0.0
        %2938 = vmatprep.mubr.f32.mxu0 0.0
        %v2939 = vand.u32 %v2569, 4294901760
        %2940 = vmatmul.mubr.f32.gmra.mrb[0].mxu0 %v2939
        %v2941 = vpop.f32.mrb[0].mxu0
        %v2942 = vadd.f32 %v2868, %v2941
        %v2943 = vpop.f32.mrb[0].mxu0
        %2944 = vdwg.mxu0
        %2945 = vmatprep.subr.mxu0 0.0
        %v2946 = vand.u32 %v2565, 4294901760
        %2947 = vmatpush1.msra.mxu0 %v2946
        %2948 = vmatprep.subr.mxu0 0.0
        %2949 = vmatpush1.msra.mxu0 0.0
        %2950 = vmatprep.subr.mxu0 0.0
        %2951 = vmatpush1.msra.mxu0 0.0
        %2952 = vmatprep.subr.mxu0 0.0
        %2953 = vmatpush1.msra.mxu0 0.0
        %2954 = vmatprep.subr.mxu0 0.0
        %2955 = vmatpush1.msra.mxu0 0.0
        %2956 = vmatprep.subr.mxu0 0.0
        %2957 = vmatpush1.msra.mxu0 0.0
        %2958 = vmatprep.subr.mxu0 0.0
        %2959 = vmatpush1.msra.mxu0 0.0
        %2960 = vmatprep.subr.mxu0 0.0
        %2961 = vmatpush1.msra.mxu0 0.0
        %2962 = vmatprep.subr.mxu0 0.0
        %2963 = vmatpush1.msra.mxu0 0.0
        %2964 = vmatprep.subr.mxu0 0.0
        %2965 = vmatpush1.msra.mxu0 0.0
        %2966 = vmatprep.subr.mxu0 0.0
        %2967 = vmatpush1.msra.mxu0 0.0
        %2968 = vmatprep.subr.mxu0 0.0
        %2969 = vmatpush1.msra.mxu0 0.0
        %2970 = vmatprep.subr.mxu0 0.0
        %2971 = vmatpush1.msra.mxu0 0.0
        %2972 = vmatprep.subr.mxu0 0.0
        %2973 = vmatpush1.msra.mxu0 0.0
        %2974 = vmatprep.subr.mxu0 0.0
        %2975 = vmatpush1.msra.mxu0 0.0
        %2976 = vmatprep.subr.mxu0 0.0
        %2977 = vmatpush1.msra.mxu0 0.0
        %2978 = vmatprep.subr.mxu0 0.0
        %2979 = vmatpush1.msra.mxu0 0.0
        %2980 = vmatprep.subr.mxu0 0.0
        %2981 = vmatpush1.msra.mxu0 0.0
        %2982 = vmatprep.subr.mxu0 0.0
        %2983 = vmatpush1.msra.mxu0 0.0
        %2984 = vmatprep.subr.mxu0 0.0
        %2985 = vmatpush1.msra.mxu0 0.0
        %2986 = vmatprep.subr.mxu0 0.0
        %2987 = vmatpush1.msra.mxu0 0.0
        %2988 = vmatprep.subr.mxu0 0.0
        %2989 = vmatpush1.msra.mxu0 0.0
        %2990 = vmatprep.subr.mxu0 0.0
        %2991 = vmatpush1.msra.mxu0 0.0
        %2992 = vmatprep.subr.mxu0 0.0
        %2993 = vmatpush1.msra.mxu0 0.0
        %2994 = vmatprep.subr.mxu0 0.0
        %2995 = vmatpush1.msra.mxu0 0.0
        %2996 = vmatprep.subr.mxu0 0.0
        %2997 = vmatpush1.msra.mxu0 0.0
        %2998 = vmatprep.subr.mxu0 0.0
        %2999 = vmatpush1.msra.mxu0 0.0
        %3000 = vmatprep.subr.mxu0 0.0
        %3001 = vmatpush1.msra.mxu0 0.0
        %3002 = vmatprep.subr.mxu0 0.0
        %3003 = vmatpush1.msra.mxu0 0.0
        %3004 = vmatprep.subr.mxu0 0.0
        %3005 = vmatpush1.msra.mxu0 0.0
        %3006 = vmatprep.subr.mxu0 0.0
        %3007 = vmatpush1.msra.mxu0 0.0
        %3008 = vmatprep.subr.mxu0 0.0
        %3009 = vmatpush1.msra.mxu0 0.0
        %3010 = vmatprep.mubr.f32.mxu0 0.0
        %v3011 = vand.u32 %v2569, 4294901760
        %3012 = vmatmul.mubr.f32.gmra.mrb[0].mxu0 %v3011
        %v3013 = vpop.f32.mrb[0].mxu0
        %v3014 = vadd.f32 %v2942, %v3013
        %v3015 = vpop.f32.mrb[0].mxu0
        %3016 = vdwg.mxu0
        %v3017 = vadd.f32 %v2560, %v3014
        %v3018 = vld [vmem:[%s5] sm:$0xf]
        %3020 = vset.pattern.permute.xlu0 0
        %3021 = vperm.xlu0 %3020, %v3018
        %v3022 = vpop.permute.xlu0 %3021
        %v3024 = vadd.f32 %v3017, %v3022
        %v3025 = vmul.f32 %v3024, %v1654
        %v3026 = vadd.f32 %v3025, %v261
        %v3027 = vmax.f32 %v3026, 0.0
        %3028 = vst [vmem:[%s253] sm:$0xf] %v3027
        %s3029 = sand.u32 %s164, 1
        %s3030 = scalar_lea.sflag [#allocation3], %s3029
        %s3031 = sand.u32 %s164, 1
        %s3032 = smul.addr %s3031, 4
        %s3033 = scalar_lea.vmem [#allocation2], %s3032
        // Predicated region
        $region45: #{tpu_custom_call.1} parent=43 // pred_check
          %p3034 = pneg %p174
        $region46: #{tpu_custom_call.1} parent=43 // pred_check_branch
          %3036 = sbr.rel (%p3034) target = $region48
        $region47: #{tpu_custom_call.1} parent=43 // pred_region
          %s3038 = ssub.s32 64, 64
          %3039 = vsyncadd %s3030, %s3038
          %s3040 = smul.addr %s20, 64
          %s3041 = scalar_lea.hbm %s6, %s3040
          %s3043 = sshll.u32 %s3033, 4
          %s3044 = int_to_ptr.vmem [resolvable:$true] %s3043
          %3046 = dma.vmem_to_hbm [thread:$0]  %s3044, 64, %s3041, %s3030
        $region48: #{tpu_custom_call.1} parent=43 // pred_fallthru
          _
      $region44: #{tpu_custom_call.1} parent=5 // pred_fallthru
        _
      %p3047 = scmp.le.s32.totalorder 2, %s15
      // Predicated region
      $region49: #{tpu_custom_call.1} parent=5 // pred_check
        %p3048 = pneg %p3047
      $region50: #{tpu_custom_call.1} parent=5 // pred_check_branch
        %3050 = sbr.rel (%p3048) target = $region52
      $region51: #{tpu_custom_call.1} parent=5 // pred_region
        %s3051 = ssub.s32 %s15, 2
        // Predicated region
        $region53: #{tpu_custom_call.1} parent=51 // pred_check
          %p3052 = pneg %p180
        $region54: #{tpu_custom_call.1} parent=51 // pred_check_branch
          %3054 = sbr.rel (%p3052) target = $region56
        $region55: #{tpu_custom_call.1} parent=51 // pred_region
          %s3055 = sand.u32 %s165, 1
          %s3056 = scalar_lea.sflag [#allocation3], %s3055
          %s3057 = sand.u32 %s165, 1
          %s3058 = smul.addr %s3057, 4
          %s3059 = scalar_lea.vmem [#allocation2], %s3058
          %3060 = dma.done %s3056, 64
        $region56: #{tpu_custom_call.1} parent=51 // pred_fallthru
          _
      $region52: #{tpu_custom_call.1} parent=5 // pred_fallthru
        _
    $region6: #{tpu_custom_call.1} parent=1 // loop_footer
      %s19 = sadd.s32 1, %s15
    $region7: #{tpu_custom_call.1} parent=1 // loop_footer_branch
      %14 = sbr.rel target = $region3
    $region8: #{tpu_custom_call.1} parent=1 // loop_exit
      _
    %3061 = vsyncpa [#allocation3], 1
    %s3062 = scalar_lea.sflag [#allocation3], 1
    %3063 = vsyncpa %s3062, 1

</llo_original>
